<compile_context>
chip_gen: v7x
topology: tpu7x:2x2x1
jax: 0.10.0
libtpu: 0.0.40
codegen_flags: <defaults>
</compile_context>

<pallas_src>
import jax
import jax.numpy as jnp
from jax.experimental import pallas as pl
from jax.experimental.pallas import tpu as pltpu  # noqa: F401

EPS = 1e-3  # BatchNorm2d eps=0.001


def bn_add_kernel(x_ref, res_ref, gb_ref, o_ref):
    # x_ref, res_ref, o_ref: (N, C, H, W) full-array blocks (native NCHW).
    # gb_ref: (C, 1, 2) -- gamma at [..., 0], beta at [..., 1].
    x = x_ref[...]
    res = res_ref[...]
    gamma = gb_ref[:, :, 0:1]  # (C, 1, 1) -> broadcasts against (N, C, H, W)
    beta = gb_ref[:, :, 1:2]   # (C, 1, 1)

    # Stats always accumulate in f32 (casts are static no-ops for f32 inputs).
    xf = x if x.dtype == jnp.float32 else x.astype(jnp.float32)

    inv_n = jnp.float32(1.0 / (x.shape[0] * x.shape[2] * x.shape[3]))

    # One pass over x: sum and sum-of-squares, reduced lane -> sublane -> batch.
    s1 = jnp.sum(xf, axis=3, keepdims=True)
    s1 = jnp.sum(s1, axis=2, keepdims=True)
    s1 = jnp.sum(s1, axis=0, keepdims=True)           # (1, C, 1, 1)
    s2 = jnp.sum(xf * xf, axis=3, keepdims=True)
    s2 = jnp.sum(s2, axis=2, keepdims=True)
    s2 = jnp.sum(s2, axis=0, keepdims=True)           # (1, C, 1, 1)

    mean = s1 * inv_n
    # Clamp: E[x^2] - mean^2 can go slightly negative from fp32 cancellation.
    var = jnp.maximum(s2 * inv_n - mean * mean, 0.0)  # biased variance
    inv_std = jax.lax.rsqrt(var + EPS)                # EUP, (1, C, 1, 1)

    scale = gamma * inv_std                           # (1, C, 1, 1)
    shift = beta - mean * scale                       # (1, C, 1, 1)

    if x.dtype == jnp.float32:
        resf = res if res.dtype == jnp.float32 else res.astype(jnp.float32)
        y = xf * scale + shift + resf
    else:
        # bf16 apply path: f32 stats, native-dtype elementwise apply + store.
        y = (x * scale.astype(x.dtype) + shift.astype(x.dtype)
             + res.astype(x.dtype))
    o_ref[...] = y.astype(o_ref.dtype)


def prepare_bn_params(gamma, beta):
    """Pack (gamma, beta) -> (C, 1, 2) once at init time (one DMA per call)."""
    c = gamma.shape[0]
    gb = jnp.stack([gamma.astype(jnp.float32), beta.astype(jnp.float32)],
                   axis=-1)
    return gb.reshape(c, 1, 2)


@jax.jit
def batchnorm_add(x_nchw, res_nchw, gb):
    N, C, H, W = x_nchw.shape
    return pl.pallas_call(
        bn_add_kernel,
        out_shape=jax.ShapeDtypeStruct((N, C, H, W), x_nchw.dtype),
        in_specs=[
            pl.BlockSpec((N, C, H, W), lambda: (0, 0, 0, 0)),
            pl.BlockSpec((N, C, H, W), lambda: (0, 0, 0, 0)),
            pl.BlockSpec((C, 1, 2), lambda: (0, 0, 0)),
        ],
        out_specs=pl.BlockSpec((N, C, H, W), lambda: (0, 0, 0, 0)),
    )(x_nchw, res_nchw, gb)


if __name__ == "__main__":
    key = jax.random.PRNGKey(0)
    k1, k2, k3, k4 = jax.random.split(key, 4)

    N, C, H, W = 1, 48, 14, 14
    x102 = jax.random.normal(k1, (N, C, H, W), dtype=jnp.float32)
    x89 = jax.random.normal(k2, (N, C, H, W), dtype=jnp.float32)

    # Module default init is weight=1, bias=0; use non-trivial values here to
    # exercise the affine path.
    gamma = 1.0 + 0.1 * jax.random.normal(k3, (C,), dtype=jnp.float32)
    beta = 0.1 * jax.random.normal(k4, (C,), dtype=jnp.float32)

    gb = prepare_bn_params(gamma, beta)
    out = batchnorm_add(x102, x89, gb)
    jax.block_until_ready(out)

    # Pure-JAX reference: training-mode BN (biased variance) + residual add.
    xf = x102.astype(jnp.float32)
    mean = jnp.mean(xf, axis=(0, 2, 3), keepdims=True)
    var = jnp.mean((xf - mean) ** 2, axis=(0, 2, 3), keepdims=True)
    ref = ((xf - mean) / jnp.sqrt(var + EPS) * gamma.reshape(1, C, 1, 1)
           + beta.reshape(1, C, 1, 1) + x89)
    assert jnp.allclose(out, ref, atol=1e-4, rtol=1e-4), "mismatch vs reference"

    print("KERNEL_OK")
</pallas_src>

<mosaic_0001>
module attributes {stable_mosaic.version = 11 : i64} {
  func.func @bn_add_kernel(%arg0: memref<1x48x14x14xf32, #tpu.memory_space<vmem>>, %arg1: memref<1x48x14x14xf32, #tpu.memory_space<vmem>>, %arg2: memref<48x1x2xf32, #tpu.memory_space<vmem>>, %arg3: memref<1x48x14x14xf32, #tpu.memory_space<vmem>>) attributes {dimension_semantics = [], scalar_prefetch = 0 : i64, scratch_operands = 0 : i64, tpu.core_type = #tpu.core_type<tc>} {
    %c0 = arith.constant 0 : index
    %c0_0 = arith.constant 0 : index
    %c0_1 = arith.constant 0 : index
    %c0_2 = arith.constant 0 : index
    %0 = vector.load %arg0[%c0, %c0_0, %c0_1, %c0_2] : memref<1x48x14x14xf32, #tpu.memory_space<vmem>>, vector<1x48x14x14xf32>
    %c0_3 = arith.constant 0 : index
    %c0_4 = arith.constant 0 : index
    %c0_5 = arith.constant 0 : index
    %c0_6 = arith.constant 0 : index
    %1 = vector.load %arg1[%c0_3, %c0_4, %c0_5, %c0_6] : memref<1x48x14x14xf32, #tpu.memory_space<vmem>>, vector<1x48x14x14xf32>
    %c0_7 = arith.constant 0 : index
    %c0_8 = arith.constant 0 : index
    %c0_9 = arith.constant 0 : index
    %2 = vector.load %arg2[%c0_7, %c0_8, %c0_9] : memref<48x1x2xf32, #tpu.memory_space<vmem>>, vector<48x1x1xf32>
    %c0_10 = arith.constant 0 : index
    %c0_11 = arith.constant 0 : index
    %c1 = arith.constant 1 : index
    %3 = vector.load %arg2[%c0_10, %c0_11, %c1] : memref<48x1x2xf32, #tpu.memory_space<vmem>>, vector<48x1x1xf32>
    %cst = arith.constant dense<0.000000e+00> : vector<1x48x14xf32>
    %4 = vector.multi_reduction <add>, %0, %cst [3] : vector<1x48x14x14xf32> to vector<1x48x14xf32>
    %5 = vector.shape_cast %4 : vector<1x48x14xf32> to vector<1x48x14x1xf32>
    %cst_12 = arith.constant dense<0.000000e+00> : vector<1x48x1xf32>
    %6 = vector.multi_reduction <add>, %5, %cst_12 [2] : vector<1x48x14x1xf32> to vector<1x48x1xf32>
    %7 = vector.shape_cast %6 : vector<1x48x1xf32> to vector<1x48x1x1xf32>
    %cst_13 = arith.constant dense<0.000000e+00> : vector<48x1x1xf32>
    %8 = vector.multi_reduction <add>, %7, %cst_13 [0] : vector<1x48x1x1xf32> to vector<48x1x1xf32>
    %9 = vector.shape_cast %8 : vector<48x1x1xf32> to vector<1x48x1x1xf32>
    %10 = arith.mulf %0, %0 : vector<1x48x14x14xf32>
    %cst_14 = arith.constant dense<0.000000e+00> : vector<1x48x14xf32>
    %11 = vector.multi_reduction <add>, %10, %cst_14 [3] : vector<1x48x14x14xf32> to vector<1x48x14xf32>
    %12 = vector.shape_cast %11 : vector<1x48x14xf32> to vector<1x48x14x1xf32>
    %cst_15 = arith.constant dense<0.000000e+00> : vector<1x48x1xf32>
    %13 = vector.multi_reduction <add>, %12, %cst_15 [2] : vector<1x48x14x1xf32> to vector<1x48x1xf32>
    %14 = vector.shape_cast %13 : vector<1x48x1xf32> to vector<1x48x1x1xf32>
    %cst_16 = arith.constant dense<0.000000e+00> : vector<48x1x1xf32>
    %15 = vector.multi_reduction <add>, %14, %cst_16 [0] : vector<1x48x1x1xf32> to vector<48x1x1xf32>
    %16 = vector.shape_cast %15 : vector<48x1x1xf32> to vector<1x48x1x1xf32>
    %cst_17 = arith.constant 0.00510204071 : f32
    %17 = vector.broadcast %cst_17 : f32 to vector<1x48x1x1xf32>
    %18 = arith.mulf %9, %17 : vector<1x48x1x1xf32>
    %cst_18 = arith.constant 0.00510204071 : f32
    %19 = vector.broadcast %cst_18 : f32 to vector<1x48x1x1xf32>
    %20 = arith.mulf %16, %19 : vector<1x48x1x1xf32>
    %21 = arith.mulf %18, %18 : vector<1x48x1x1xf32>
    %22 = arith.subf %20, %21 : vector<1x48x1x1xf32>
    %cst_19 = arith.constant 0.000000e+00 : f32
    %23 = vector.broadcast %cst_19 : f32 to vector<1x48x1x1xf32>
    %24 = arith.maximumf %22, %23 : vector<1x48x1x1xf32>
    %cst_20 = arith.constant 1.000000e-03 : f32
    %25 = vector.broadcast %cst_20 : f32 to vector<1x48x1x1xf32>
    %26 = arith.addf %24, %25 : vector<1x48x1x1xf32>
    %27 = math.rsqrt %26 : vector<1x48x1x1xf32>
    %28 = vector.shape_cast %2 : vector<48x1x1xf32> to vector<1x48x1x1xf32>
    %29 = arith.mulf %28, %27 : vector<1x48x1x1xf32>
    %30 = arith.mulf %18, %29 : vector<1x48x1x1xf32>
    %31 = vector.shape_cast %3 : vector<48x1x1xf32> to vector<1x48x1x1xf32>
    %32 = arith.subf %31, %30 : vector<1x48x1x1xf32>
    %33 = vector.broadcast %29 : vector<1x48x1x1xf32> to vector<1x48x14x14xf32>
    %34 = arith.mulf %0, %33 : vector<1x48x14x14xf32>
    %35 = vector.broadcast %32 : vector<1x48x1x1xf32> to vector<1x48x14x14xf32>
    %36 = arith.addf %34, %35 : vector<1x48x14x14xf32>
    %37 = arith.addf %36, %1 : vector<1x48x14x14xf32>
    %c0_21 = arith.constant 0 : index
    %c0_22 = arith.constant 0 : index
    %c0_23 = arith.constant 0 : index
    %c0_24 = arith.constant 0 : index
    %38 = vector.load %arg3[%c0_21, %c0_22, %c0_23, %c0_24] : memref<1x48x14x14xf32, #tpu.memory_space<vmem>>, vector<1x48x14x14xf32>
    tpu.vector_store %arg3[%c0_21, %c0_22, %c0_23, %c0_24], %37 {strides = array<i32>} : memref<1x48x14x14xf32, #tpu.memory_space<vmem>>, vector<1x48x14x14xf32>,
    return
  }
}

</mosaic_0001>

<llo_original>
// kernel: batchnorm_add.1
$region0: #{batchnorm_add.1}
  #allocation0 [shape = 'u32[]', space=smem, size = 0x4, offset = 0x4, fixed_abs, tag = 'smem constant byte address 0x4 - core index']
  #allocation1 [shape = 'u32[144,128]{1,0:T(1,128)}', space=vmem, size = 0x12000, scoped, tag = 'internal scratch']
  %s0 = inlined_call_operand.vmem [shape: f32[1,48,14,14], index: 0, kind: input, shape index: {}]
  %s1 = inlined_call_operand.vmem [shape: f32[1,48,14,14], index: 1, kind: input, shape index: {}]
  %s2 = inlined_call_operand.vmem [shape: f32[48,1,2], index: 2, kind: input, shape index: {}]
  %s3 = inlined_call_operand.vmem [shape: f32[1,48,14,14], index: 3, kind: output, shape index: {}]
  %s4 = sld [smem:[#allocation0]]
  $region22: #{batchnorm_add.1} parent=0
    _
  %s6 = ssub.s32 1, %s4
  %s7 = scalar_select 0, %s6, %s4
  // Predicated region
  $region2: #{batchnorm_add.1} parent=0 // pred_check
    _
  $region3: #{batchnorm_add.1} parent=0 // pred_check_branch
    %9 = sbr.rel (0) target = $region5
  $region4: #{batchnorm_add.1} parent=0 // pred_region
    _
  $region5: #{batchnorm_add.1} parent=0 // pred_fallthru
    _
  // Predicated region
  $region6: #{batchnorm_add.1} parent=0 // pred_check
    _
  $region7: #{batchnorm_add.1} parent=0 // pred_check_branch
    %11 = sbr.rel (0) target = $region9
  $region8: #{batchnorm_add.1} parent=0 // pred_region
    _
  $region9: #{batchnorm_add.1} parent=0 // pred_fallthru
    _
  // Predicated region
  $region10: #{batchnorm_add.1} parent=0 // pred_check
    _
  $region11: #{batchnorm_add.1} parent=0 // pred_check_branch
    %13 = sbr.rel (0) target = $region13
  $region12: #{batchnorm_add.1} parent=0 // pred_region
    _
  $region13: #{batchnorm_add.1} parent=0 // pred_fallthru
    _
  %v14 = vld [vmem:[%s0] sm:$0xff]
  %v15 = vld [vmem:[%s0 + $0x8] sm:$0x3f]
  %v16 = vld [vmem:[%s0 + $0x10] sm:$0xff]
  %v17 = vld [vmem:[%s0 + $0x18] sm:$0x3f]
  %v18 = vld [vmem:[%s0 + $0x20] sm:$0xff]
  %v19 = vld [vmem:[%s0 + $0x28] sm:$0x3f]
  %v20 = vld [vmem:[%s0 + $0x30] sm:$0xff]
  %v21 = vld [vmem:[%s0 + $0x38] sm:$0x3f]
  %v22 = vld [vmem:[%s0 + $0x40] sm:$0xff]
  %v23 = vld [vmem:[%s0 + $0x48] sm:$0x3f]
  %v24 = vld [vmem:[%s0 + $0x50] sm:$0xff]
  %v25 = vld [vmem:[%s0 + $0x58] sm:$0x3f]
  %v26 = vld [vmem:[%s0 + $0x60] sm:$0xff]
  %v27 = vld [vmem:[%s0 + $0x68] sm:$0x3f]
  %v28 = vld [vmem:[%s0 + $0x70] sm:$0xff]
  %v29 = vld [vmem:[%s0 + $0x78] sm:$0x3f]
  %v30 = vld [vmem:[%s0 + $0x80] sm:$0xff]
  %v31 = vld [vmem:[%s0 + $0x88] sm:$0x3f]
  %v32 = vld [vmem:[%s0 + $0x90] sm:$0xff]
  %v33 = vld [vmem:[%s0 + $0x98] sm:$0x3f]
  %v34 = vld [vmem:[%s0 + $0xa0] sm:$0xff]
  %v35 = vld [vmem:[%s0 + $0xa8] sm:$0x3f]
  %v36 = vld [vmem:[%s0 + $0xb0] sm:$0xff]
  %v37 = vld [vmem:[%s0 + $0xb8] sm:$0x3f]
  %v38 = vld [vmem:[%s0 + $0xc0] sm:$0xff]
  %v39 = vld [vmem:[%s0 + $0xc8] sm:$0x3f]
  %v40 = vld [vmem:[%s0 + $0xd0] sm:$0xff]
  %v41 = vld [vmem:[%s0 + $0xd8] sm:$0x3f]
  %v42 = vld [vmem:[%s0 + $0xe0] sm:$0xff]
  %v43 = vld [vmem:[%s0 + $0xe8] sm:$0x3f]
  %v44 = vld [vmem:[%s0 + $0xf0] sm:$0xff]
  %v45 = vld [vmem:[%s0 + $0xf8] sm:$0x3f]
  %v46 = vld [vmem:[%s0 + $0x100] sm:$0xff]
  %v47 = vld [vmem:[%s0 + $0x108] sm:$0x3f]
  %v48 = vld [vmem:[%s0 + $0x110] sm:$0xff]
  %v49 = vld [vmem:[%s0 + $0x118] sm:$0x3f]
  %v50 = vld [vmem:[%s0 + $0x120] sm:$0xff]
  %v51 = vld [vmem:[%s0 + $0x128] sm:$0x3f]
  %v52 = vld [vmem:[%s0 + $0x130] sm:$0xff]
  %v53 = vld [vmem:[%s0 + $0x138] sm:$0x3f]
  %v54 = vld [vmem:[%s0 + $0x140] sm:$0xff]
  %v55 = vld [vmem:[%s0 + $0x148] sm:$0x3f]
  %v56 = vld [vmem:[%s0 + $0x150] sm:$0xff]
  %v57 = vld [vmem:[%s0 + $0x158] sm:$0x3f]
  %v58 = vld [vmem:[%s0 + $0x160] sm:$0xff]
  %v59 = vld [vmem:[%s0 + $0x168] sm:$0x3f]
  %v60 = vld [vmem:[%s0 + $0x170] sm:$0xff]
  %v61 = vld [vmem:[%s0 + $0x178] sm:$0x3f]
  %v62 = vld [vmem:[%s0 + $0x180] sm:$0xff]
  %v63 = vld [vmem:[%s0 + $0x188] sm:$0x3f]
  %v64 = vld [vmem:[%s0 + $0x190] sm:$0xff]
  %v65 = vld [vmem:[%s0 + $0x198] sm:$0x3f]
  %v66 = vld [vmem:[%s0 + $0x1a0] sm:$0xff]
  %v67 = vld [vmem:[%s0 + $0x1a8] sm:$0x3f]
  %v68 = vld [vmem:[%s0 + $0x1b0] sm:$0xff]
  %v69 = vld [vmem:[%s0 + $0x1b8] sm:$0x3f]
  %v70 = vld [vmem:[%s0 + $0x1c0] sm:$0xff]
  %v71 = vld [vmem:[%s0 + $0x1c8] sm:$0x3f]
  %v72 = vld [vmem:[%s0 + $0x1d0] sm:$0xff]
  %v73 = vld [vmem:[%s0 + $0x1d8] sm:$0x3f]
  %v74 = vld [vmem:[%s0 + $0x1e0] sm:$0xff]
  %v75 = vld [vmem:[%s0 + $0x1e8] sm:$0x3f]
  %v76 = vld [vmem:[%s0 + $0x1f0] sm:$0xff]
  %v77 = vld [vmem:[%s0 + $0x1f8] sm:$0x3f]
  %v78 = vld [vmem:[%s0 + $0x200] sm:$0xff]
  %v79 = vld [vmem:[%s0 + $0x208] sm:$0x3f]
  %v80 = vld [vmem:[%s0 + $0x210] sm:$0xff]
  %v81 = vld [vmem:[%s0 + $0x218] sm:$0x3f]
  %v82 = vld [vmem:[%s0 + $0x220] sm:$0xff]
  %v83 = vld [vmem:[%s0 + $0x228] sm:$0x3f]
  %v84 = vld [vmem:[%s0 + $0x230] sm:$0xff]
  %v85 = vld [vmem:[%s0 + $0x238] sm:$0x3f]
  %v86 = vld [vmem:[%s0 + $0x240] sm:$0xff]
  %v87 = vld [vmem:[%s0 + $0x248] sm:$0x3f]
  %v88 = vld [vmem:[%s0 + $0x250] sm:$0xff]
  %v89 = vld [vmem:[%s0 + $0x258] sm:$0x3f]
  %v90 = vld [vmem:[%s0 + $0x260] sm:$0xff]
  %v91 = vld [vmem:[%s0 + $0x268] sm:$0x3f]
  %v92 = vld [vmem:[%s0 + $0x270] sm:$0xff]
  %v93 = vld [vmem:[%s0 + $0x278] sm:$0x3f]
  %v94 = vld [vmem:[%s0 + $0x280] sm:$0xff]
  %v95 = vld [vmem:[%s0 + $0x288] sm:$0x3f]
  %v96 = vld [vmem:[%s0 + $0x290] sm:$0xff]
  %v97 = vld [vmem:[%s0 + $0x298] sm:$0x3f]
  %v98 = vld [vmem:[%s0 + $0x2a0] sm:$0xff]
  %v99 = vld [vmem:[%s0 + $0x2a8] sm:$0x3f]
  %v100 = vld [vmem:[%s0 + $0x2b0] sm:$0xff]
  %v101 = vld [vmem:[%s0 + $0x2b8] sm:$0x3f]
  %v102 = vld [vmem:[%s0 + $0x2c0] sm:$0xff]
  %v103 = vld [vmem:[%s0 + $0x2c8] sm:$0x3f]
  %v104 = vld [vmem:[%s0 + $0x2d0] sm:$0xff]
  %v105 = vld [vmem:[%s0 + $0x2d8] sm:$0x3f]
  %v106 = vld [vmem:[%s0 + $0x2e0] sm:$0xff]
  %v107 = vld [vmem:[%s0 + $0x2e8] sm:$0x3f]
  %v108 = vld [vmem:[%s0 + $0x2f0] sm:$0xff]
  %v109 = vld [vmem:[%s0 + $0x2f8] sm:$0x3f]
  %v110 = vld [vmem:[%s1] sm:$0xff]
  %v111 = vld [vmem:[%s1 + $0x8] sm:$0x3f]
  %v112 = vld [vmem:[%s1 + $0x10] sm:$0xff]
  %v113 = vld [vmem:[%s1 + $0x18] sm:$0x3f]
  %v114 = vld [vmem:[%s1 + $0x20] sm:$0xff]
  %v115 = vld [vmem:[%s1 + $0x28] sm:$0x3f]
  %v116 = vld [vmem:[%s1 + $0x30] sm:$0xff]
  %v117 = vld [vmem:[%s1 + $0x38] sm:$0x3f]
  %v118 = vld [vmem:[%s1 + $0x40] sm:$0xff]
  %v119 = vld [vmem:[%s1 + $0x48] sm:$0x3f]
  %v120 = vld [vmem:[%s1 + $0x50] sm:$0xff]
  %v121 = vld [vmem:[%s1 + $0x58] sm:$0x3f]
  %v122 = vld [vmem:[%s1 + $0x60] sm:$0xff]
  %v123 = vld [vmem:[%s1 + $0x68] sm:$0x3f]
  %v124 = vld [vmem:[%s1 + $0x70] sm:$0xff]
  %v125 = vld [vmem:[%s1 + $0x78] sm:$0x3f]
  %v126 = vld [vmem:[%s1 + $0x80] sm:$0xff]
  %v127 = vld [vmem:[%s1 + $0x88] sm:$0x3f]
  %v128 = vld [vmem:[%s1 + $0x90] sm:$0xff]
  %v129 = vld [vmem:[%s1 + $0x98] sm:$0x3f]
  %v130 = vld [vmem:[%s1 + $0xa0] sm:$0xff]
  %v131 = vld [vmem:[%s1 + $0xa8] sm:$0x3f]
  %v132 = vld [vmem:[%s1 + $0xb0] sm:$0xff]
  %v133 = vld [vmem:[%s1 + $0xb8] sm:$0x3f]
  %v134 = vld [vmem:[%s1 + $0xc0] sm:$0xff]
  %v135 = vld [vmem:[%s1 + $0xc8] sm:$0x3f]
  %v136 = vld [vmem:[%s1 + $0xd0] sm:$0xff]
  %v137 = vld [vmem:[%s1 + $0xd8] sm:$0x3f]
  %v138 = vld [vmem:[%s1 + $0xe0] sm:$0xff]
  %v139 = vld [vmem:[%s1 + $0xe8] sm:$0x3f]
  %v140 = vld [vmem:[%s1 + $0xf0] sm:$0xff]
  %v141 = vld [vmem:[%s1 + $0xf8] sm:$0x3f]
  %v142 = vld [vmem:[%s1 + $0x100] sm:$0xff]
  %v143 = vld [vmem:[%s1 + $0x108] sm:$0x3f]
  %v144 = vld [vmem:[%s1 + $0x110] sm:$0xff]
  %v145 = vld [vmem:[%s1 + $0x118] sm:$0x3f]
  %v146 = vld [vmem:[%s1 + $0x120] sm:$0xff]
  %v147 = vld [vmem:[%s1 + $0x128] sm:$0x3f]
  %v148 = vld [vmem:[%s1 + $0x130] sm:$0xff]
  %v149 = vld [vmem:[%s1 + $0x138] sm:$0x3f]
  %v150 = vld [vmem:[%s1 + $0x140] sm:$0xff]
  %v151 = vld [vmem:[%s1 + $0x148] sm:$0x3f]
  %v152 = vld [vmem:[%s1 + $0x150] sm:$0xff]
  %v153 = vld [vmem:[%s1 + $0x158] sm:$0x3f]
  %v154 = vld [vmem:[%s1 + $0x160] sm:$0xff]
  %v155 = vld [vmem:[%s1 + $0x168] sm:$0x3f]
  %v156 = vld [vmem:[%s1 + $0x170] sm:$0xff]
  %v157 = vld [vmem:[%s1 + $0x178] sm:$0x3f]
  %v158 = vld [vmem:[%s1 + $0x180] sm:$0xff]
  %v159 = vld [vmem:[%s1 + $0x188] sm:$0x3f]
  %v160 = vld [vmem:[%s1 + $0x190] sm:$0xff]
  %v161 = vld [vmem:[%s1 + $0x198] sm:$0x3f]
  %v162 = vld [vmem:[%s1 + $0x1a0] sm:$0xff]
  %v163 = vld [vmem:[%s1 + $0x1a8] sm:$0x3f]
  %v164 = vld [vmem:[%s1 + $0x1b0] sm:$0xff]
  %v165 = vld [vmem:[%s1 + $0x1b8] sm:$0x3f]
  %v166 = vld [vmem:[%s1 + $0x1c0] sm:$0xff]
  %v167 = vld [vmem:[%s1 + $0x1c8] sm:$0x3f]
  %v168 = vld [vmem:[%s1 + $0x1d0] sm:$0xff]
  %v169 = vld [vmem:[%s1 + $0x1d8] sm:$0x3f]
  %v170 = vld [vmem:[%s1 + $0x1e0] sm:$0xff]
  %v171 = vld [vmem:[%s1 + $0x1e8] sm:$0x3f]
  %v172 = vld [vmem:[%s1 + $0x1f0] sm:$0xff]
  %v173 = vld [vmem:[%s1 + $0x1f8] sm:$0x3f]
  %v174 = vld [vmem:[%s1 + $0x200] sm:$0xff]
  %v175 = vld [vmem:[%s1 + $0x208] sm:$0x3f]
  %v176 = vld [vmem:[%s1 + $0x210] sm:$0xff]
  %v177 = vld [vmem:[%s1 + $0x218] sm:$0x3f]
  %v178 = vld [vmem:[%s1 + $0x220] sm:$0xff]
  %v179 = vld [vmem:[%s1 + $0x228] sm:$0x3f]
  %v180 = vld [vmem:[%s1 + $0x230] sm:$0xff]
  %v181 = vld [vmem:[%s1 + $0x238] sm:$0x3f]
  %v182 = vld [vmem:[%s1 + $0x240] sm:$0xff]
  %v183 = vld [vmem:[%s1 + $0x248] sm:$0x3f]
  %v184 = vld [vmem:[%s1 + $0x250] sm:$0xff]
  %v185 = vld [vmem:[%s1 + $0x258] sm:$0x3f]
  %v186 = vld [vmem:[%s1 + $0x260] sm:$0xff]
  %v187 = vld [vmem:[%s1 + $0x268] sm:$0x3f]
  %v188 = vld [vmem:[%s1 + $0x270] sm:$0xff]
  %v189 = vld [vmem:[%s1 + $0x278] sm:$0x3f]
  %v190 = vld [vmem:[%s1 + $0x280] sm:$0xff]
  %v191 = vld [vmem:[%s1 + $0x288] sm:$0x3f]
  %v192 = vld [vmem:[%s1 + $0x290] sm:$0xff]
  %v193 = vld [vmem:[%s1 + $0x298] sm:$0x3f]
  %v194 = vld [vmem:[%s1 + $0x2a0] sm:$0xff]
  %v195 = vld [vmem:[%s1 + $0x2a8] sm:$0x3f]
  %v196 = vld [vmem:[%s1 + $0x2b0] sm:$0xff]
  %v197 = vld [vmem:[%s1 + $0x2b8] sm:$0x3f]
  %v198 = vld [vmem:[%s1 + $0x2c0] sm:$0xff]
  %v199 = vld [vmem:[%s1 + $0x2c8] sm:$0x3f]
  %v200 = vld [vmem:[%s1 + $0x2d0] sm:$0xff]
  %v201 = vld [vmem:[%s1 + $0x2d8] sm:$0x3f]
  %v202 = vld [vmem:[%s1 + $0x2e0] sm:$0xff]
  %v203 = vld [vmem:[%s1 + $0x2e8] sm:$0x3f]
  %v204 = vld [vmem:[%s1 + $0x2f0] sm:$0xff]
  %v205 = vld [vmem:[%s1 + $0x2f8] sm:$0x3f]
  %v206 = vld [vmem:[%s2] sm:$0x1]
  %v207 = vld [vmem:[%s2 + $0x1] sm:$0x1]
  %v208 = vld [vmem:[%s2 + $0x2] sm:$0x1]
  %v209 = vld [vmem:[%s2 + $0x3] sm:$0x1]
  %v210 = vld [vmem:[%s2 + $0x4] sm:$0x1]
  %v211 = vld [vmem:[%s2 + $0x5] sm:$0x1]
  %v212 = vld [vmem:[%s2 + $0x6] sm:$0x1]
  %v213 = vld [vmem:[%s2 + $0x7] sm:$0x1]
  %v214 = vld [vmem:[%s2 + $0x8] sm:$0x1]
  %v215 = vld [vmem:[%s2 + $0x9] sm:$0x1]
  %v216 = vld [vmem:[%s2 + $0xa] sm:$0x1]
  %v217 = vld [vmem:[%s2 + $0xb] sm:$0x1]
  %v218 = vld [vmem:[%s2 + $0xc] sm:$0x1]
  %v219 = vld [vmem:[%s2 + $0xd] sm:$0x1]
  %v220 = vld [vmem:[%s2 + $0xe] sm:$0x1]
  %v221 = vld [vmem:[%s2 + $0xf] sm:$0x1]
  %v222 = vld [vmem:[%s2 + $0x10] sm:$0x1]
  %v223 = vld [vmem:[%s2 + $0x11] sm:$0x1]
  %v224 = vld [vmem:[%s2 + $0x12] sm:$0x1]
  %v225 = vld [vmem:[%s2 + $0x13] sm:$0x1]
  %v226 = vld [vmem:[%s2 + $0x14] sm:$0x1]
  %v227 = vld [vmem:[%s2 + $0x15] sm:$0x1]
  %v228 = vld [vmem:[%s2 + $0x16] sm:$0x1]
  %v229 = vld [vmem:[%s2 + $0x17] sm:$0x1]
  %v230 = vld [vmem:[%s2 + $0x18] sm:$0x1]
  %v231 = vld [vmem:[%s2 + $0x19] sm:$0x1]
  %v232 = vld [vmem:[%s2 + $0x1a] sm:$0x1]
  %v233 = vld [vmem:[%s2 + $0x1b] sm:$0x1]
  %v234 = vld [vmem:[%s2 + $0x1c] sm:$0x1]
  %v235 = vld [vmem:[%s2 + $0x1d] sm:$0x1]
  %v236 = vld [vmem:[%s2 + $0x1e] sm:$0x1]
  %v237 = vld [vmem:[%s2 + $0x1f] sm:$0x1]
  %v238 = vld [vmem:[%s2 + $0x20] sm:$0x1]
  %v239 = vld [vmem:[%s2 + $0x21] sm:$0x1]
  %v240 = vld [vmem:[%s2 + $0x22] sm:$0x1]
  %v241 = vld [vmem:[%s2 + $0x23] sm:$0x1]
  %v242 = vld [vmem:[%s2 + $0x24] sm:$0x1]
  %v243 = vld [vmem:[%s2 + $0x25] sm:$0x1]
  %v244 = vld [vmem:[%s2 + $0x26] sm:$0x1]
  %v245 = vld [vmem:[%s2 + $0x27] sm:$0x1]
  %v246 = vld [vmem:[%s2 + $0x28] sm:$0x1]
  %v247 = vld [vmem:[%s2 + $0x29] sm:$0x1]
  %v248 = vld [vmem:[%s2 + $0x2a] sm:$0x1]
  %v249 = vld [vmem:[%s2 + $0x2b] sm:$0x1]
  %v250 = vld [vmem:[%s2 + $0x2c] sm:$0x1]
  %v251 = vld [vmem:[%s2 + $0x2d] sm:$0x1]
  %v252 = vld [vmem:[%s2 + $0x2e] sm:$0x1]
  %v253 = vld [vmem:[%s2 + $0x2f] sm:$0x1]
  %vm254 = vcmask 113664
  %v255 = vsel %vm254, %v14, 0.0
  %256 = vadd.xlane.f32.xlu0 %v255
  %v257 = vpop.xlane.xlu0 %256
  %vm258 = vcmask 111616
  %v259 = vsel %vm258, %v15, 0.0
  %260 = vadd.xlane.f32.xlu0 %v259
  %v261 = vpop.xlane.xlu0 %260
  %v262 = vsel %vm254, %v16, 0.0
  %263 = vadd.xlane.f32.xlu0 %v262
  %v264 = vpop.xlane.xlu0 %263
  %v265 = vsel %vm258, %v17, 0.0
  %266 = vadd.xlane.f32.xlu0 %v265
  %v267 = vpop.xlane.xlu0 %266
  %v268 = vsel %vm254, %v18, 0.0
  %269 = vadd.xlane.f32.xlu0 %v268
  %v270 = vpop.xlane.xlu0 %269
  %v271 = vsel %vm258, %v19, 0.0
  %272 = vadd.xlane.f32.xlu0 %v271
  %v273 = vpop.xlane.xlu0 %272
  %v274 = vsel %vm254, %v20, 0.0
  %275 = vadd.xlane.f32.xlu0 %v274
  %v276 = vpop.xlane.xlu0 %275
  %v277 = vsel %vm258, %v21, 0.0
  %278 = vadd.xlane.f32.xlu0 %v277
  %v279 = vpop.xlane.xlu0 %278
  %v280 = vsel %vm254, %v22, 0.0
  %281 = vadd.xlane.f32.xlu0 %v280
  %v282 = vpop.xlane.xlu0 %281
  %v283 = vsel %vm258, %v23, 0.0
  %284 = vadd.xlane.f32.xlu0 %v283
  %v285 = vpop.xlane.xlu0 %284
  %v286 = vsel %vm254, %v24, 0.0
  %287 = vadd.xlane.f32.xlu0 %v286
  %v288 = vpop.xlane.xlu0 %287
  %v289 = vsel %vm258, %v25, 0.0
  %290 = vadd.xlane.f32.xlu0 %v289
  %v291 = vpop.xlane.xlu0 %290
  %v292 = vsel %vm254, %v26, 0.0
  %293 = vadd.xlane.f32.xlu0 %v292
  %v294 = vpop.xlane.xlu0 %293
  %v295 = vsel %vm258, %v27, 0.0
  %296 = vadd.xlane.f32.xlu0 %v295
  %v297 = vpop.xlane.xlu0 %296
  %v298 = vsel %vm254, %v28, 0.0
  %299 = vadd.xlane.f32.xlu0 %v298
  %v300 = vpop.xlane.xlu0 %299
  %v301 = vsel %vm258, %v29, 0.0
  %302 = vadd.xlane.f32.xlu0 %v301
  %v303 = vpop.xlane.xlu0 %302
  %v304 = vsel %vm254, %v30, 0.0
  %305 = vadd.xlane.f32.xlu0 %v304
  %v306 = vpop.xlane.xlu0 %305
  %v307 = vsel %vm258, %v31, 0.0
  %308 = vadd.xlane.f32.xlu0 %v307
  %v309 = vpop.xlane.xlu0 %308
  %v310 = vsel %vm254, %v32, 0.0
  %311 = vadd.xlane.f32.xlu0 %v310
  %v312 = vpop.xlane.xlu0 %311
  %v313 = vsel %vm258, %v33, 0.0
  %314 = vadd.xlane.f32.xlu0 %v313
  %v315 = vpop.xlane.xlu0 %314
  %v316 = vsel %vm254, %v34, 0.0
  %317 = vadd.xlane.f32.xlu0 %v316
  %v318 = vpop.xlane.xlu0 %317
  %v319 = vsel %vm258, %v35, 0.0
  %320 = vadd.xlane.f32.xlu0 %v319
  %v321 = vpop.xlane.xlu0 %320
  %v322 = vsel %vm254, %v36, 0.0
  %323 = vadd.xlane.f32.xlu0 %v322
  %v324 = vpop.xlane.xlu0 %323
  %v325 = vsel %vm258, %v37, 0.0
  %326 = vadd.xlane.f32.xlu0 %v325
  %v327 = vpop.xlane.xlu0 %326
  %v328 = vsel %vm254, %v38, 0.0
  %329 = vadd.xlane.f32.xlu0 %v328
  %v330 = vpop.xlane.xlu0 %329
  %v331 = vsel %vm258, %v39, 0.0
  %332 = vadd.xlane.f32.xlu0 %v331
  %v333 = vpop.xlane.xlu0 %332
  %v334 = vsel %vm254, %v40, 0.0
  %335 = vadd.xlane.f32.xlu0 %v334
  %v336 = vpop.xlane.xlu0 %335
  %v337 = vsel %vm258, %v41, 0.0
  %338 = vadd.xlane.f32.xlu0 %v337
  %v339 = vpop.xlane.xlu0 %338
  %v340 = vsel %vm254, %v42, 0.0
  %341 = vadd.xlane.f32.xlu0 %v340
  %v342 = vpop.xlane.xlu0 %341
  %v343 = vsel %vm258, %v43, 0.0
  %344 = vadd.xlane.f32.xlu0 %v343
  %v345 = vpop.xlane.xlu0 %344
  %v346 = vsel %vm254, %v44, 0.0
  %347 = vadd.xlane.f32.xlu0 %v346
  %v348 = vpop.xlane.xlu0 %347
  %v349 = vsel %vm258, %v45, 0.0
  %350 = vadd.xlane.f32.xlu0 %v349
  %v351 = vpop.xlane.xlu0 %350
  %v352 = vsel %vm254, %v46, 0.0
  %353 = vadd.xlane.f32.xlu0 %v352
  %v354 = vpop.xlane.xlu0 %353
  %v355 = vsel %vm258, %v47, 0.0
  %356 = vadd.xlane.f32.xlu0 %v355
  %v357 = vpop.xlane.xlu0 %356
  %v358 = vsel %vm254, %v48, 0.0
  %359 = vadd.xlane.f32.xlu0 %v358
  %v360 = vpop.xlane.xlu0 %359
  %v361 = vsel %vm258, %v49, 0.0
  %362 = vadd.xlane.f32.xlu0 %v361
  %v363 = vpop.xlane.xlu0 %362
  %v364 = vsel %vm254, %v50, 0.0
  %365 = vadd.xlane.f32.xlu0 %v364
  %v366 = vpop.xlane.xlu0 %365
  %v367 = vsel %vm258, %v51, 0.0
  %368 = vadd.xlane.f32.xlu0 %v367
  %v369 = vpop.xlane.xlu0 %368
  %v370 = vsel %vm254, %v52, 0.0
  %371 = vadd.xlane.f32.xlu0 %v370
  %v372 = vpop.xlane.xlu0 %371
  %v373 = vsel %vm258, %v53, 0.0
  %374 = vadd.xlane.f32.xlu0 %v373
  %v375 = vpop.xlane.xlu0 %374
  %v376 = vsel %vm254, %v54, 0.0
  %377 = vadd.xlane.f32.xlu0 %v376
  %v378 = vpop.xlane.xlu0 %377
  %v379 = vsel %vm258, %v55, 0.0
  %380 = vadd.xlane.f32.xlu0 %v379
  %v381 = vpop.xlane.xlu0 %380
  %v382 = vsel %vm254, %v56, 0.0
  %383 = vadd.xlane.f32.xlu0 %v382
  %v384 = vpop.xlane.xlu0 %383
  %v385 = vsel %vm258, %v57, 0.0
  %386 = vadd.xlane.f32.xlu0 %v385
  %v387 = vpop.xlane.xlu0 %386
  %v388 = vsel %vm254, %v58, 0.0
  %389 = vadd.xlane.f32.xlu0 %v388
  %v390 = vpop.xlane.xlu0 %389
  %v391 = vsel %vm258, %v59, 0.0
  %392 = vadd.xlane.f32.xlu0 %v391
  %v393 = vpop.xlane.xlu0 %392
  %v394 = vsel %vm254, %v60, 0.0
  %395 = vadd.xlane.f32.xlu0 %v394
  %v396 = vpop.xlane.xlu0 %395
  %v397 = vsel %vm258, %v61, 0.0
  %398 = vadd.xlane.f32.xlu0 %v397
  %v399 = vpop.xlane.xlu0 %398
  %v400 = vsel %vm254, %v62, 0.0
  %401 = vadd.xlane.f32.xlu0 %v400
  %v402 = vpop.xlane.xlu0 %401
  %v403 = vsel %vm258, %v63, 0.0
  %404 = vadd.xlane.f32.xlu0 %v403
  %v405 = vpop.xlane.xlu0 %404
  %v406 = vsel %vm254, %v64, 0.0
  %407 = vadd.xlane.f32.xlu0 %v406
  %v408 = vpop.xlane.xlu0 %407
  %v409 = vsel %vm258, %v65, 0.0
  %410 = vadd.xlane.f32.xlu0 %v409
  %v411 = vpop.xlane.xlu0 %410
  %v412 = vsel %vm254, %v66, 0.0
  %413 = vadd.xlane.f32.xlu0 %v412
  %v414 = vpop.xlane.xlu0 %413
  %v415 = vsel %vm258, %v67, 0.0
  %416 = vadd.xlane.f32.xlu0 %v415
  %v417 = vpop.xlane.xlu0 %416
  %v418 = vsel %vm254, %v68, 0.0
  %419 = vadd.xlane.f32.xlu0 %v418
  %v420 = vpop.xlane.xlu0 %419
  %v421 = vsel %vm258, %v69, 0.0
  %422 = vadd.xlane.f32.xlu0 %v421
  %v423 = vpop.xlane.xlu0 %422
  %v424 = vsel %vm254, %v70, 0.0
  %425 = vadd.xlane.f32.xlu0 %v424
  %v426 = vpop.xlane.xlu0 %425
  %v427 = vsel %vm258, %v71, 0.0
  %428 = vadd.xlane.f32.xlu0 %v427
  %v429 = vpop.xlane.xlu0 %428
  %v430 = vsel %vm254, %v72, 0.0
  %431 = vadd.xlane.f32.xlu0 %v430
  %v432 = vpop.xlane.xlu0 %431
  %v433 = vsel %vm258, %v73, 0.0
  %434 = vadd.xlane.f32.xlu0 %v433
  %v435 = vpop.xlane.xlu0 %434
  %v436 = vsel %vm254, %v74, 0.0
  %437 = vadd.xlane.f32.xlu0 %v436
  %v438 = vpop.xlane.xlu0 %437
  %v439 = vsel %vm258, %v75, 0.0
  %440 = vadd.xlane.f32.xlu0 %v439
  %v441 = vpop.xlane.xlu0 %440
  %v442 = vsel %vm254, %v76, 0.0
  %443 = vadd.xlane.f32.xlu0 %v442
  %v444 = vpop.xlane.xlu0 %443
  %v445 = vsel %vm258, %v77, 0.0
  %446 = vadd.xlane.f32.xlu0 %v445
  %v447 = vpop.xlane.xlu0 %446
  %v448 = vsel %vm254, %v78, 0.0
  %449 = vadd.xlane.f32.xlu0 %v448
  %v450 = vpop.xlane.xlu0 %449
  %v451 = vsel %vm258, %v79, 0.0
  %452 = vadd.xlane.f32.xlu0 %v451
  %v453 = vpop.xlane.xlu0 %452
  %v454 = vsel %vm254, %v80, 0.0
  %455 = vadd.xlane.f32.xlu0 %v454
  %v456 = vpop.xlane.xlu0 %455
  %v457 = vsel %vm258, %v81, 0.0
  %458 = vadd.xlane.f32.xlu0 %v457
  %v459 = vpop.xlane.xlu0 %458
  %v460 = vsel %vm254, %v82, 0.0
  %461 = vadd.xlane.f32.xlu0 %v460
  %v462 = vpop.xlane.xlu0 %461
  %v463 = vsel %vm258, %v83, 0.0
  %464 = vadd.xlane.f32.xlu0 %v463
  %v465 = vpop.xlane.xlu0 %464
  %v466 = vsel %vm254, %v84, 0.0
  %467 = vadd.xlane.f32.xlu0 %v466
  %v468 = vpop.xlane.xlu0 %467
  %v469 = vsel %vm258, %v85, 0.0
  %470 = vadd.xlane.f32.xlu0 %v469
  %v471 = vpop.xlane.xlu0 %470
  %v472 = vsel %vm254, %v86, 0.0
  %473 = vadd.xlane.f32.xlu0 %v472
  %v474 = vpop.xlane.xlu0 %473
  %v475 = vsel %vm258, %v87, 0.0
  %476 = vadd.xlane.f32.xlu0 %v475
  %v477 = vpop.xlane.xlu0 %476
  %v478 = vsel %vm254, %v88, 0.0
  %479 = vadd.xlane.f32.xlu0 %v478
  %v480 = vpop.xlane.xlu0 %479
  %v481 = vsel %vm258, %v89, 0.0
  %482 = vadd.xlane.f32.xlu0 %v481
  %v483 = vpop.xlane.xlu0 %482
  %v484 = vsel %vm254, %v90, 0.0
  %485 = vadd.xlane.f32.xlu0 %v484
  %v486 = vpop.xlane.xlu0 %485
  %v487 = vsel %vm258, %v91, 0.0
  %488 = vadd.xlane.f32.xlu0 %v487
  %v489 = vpop.xlane.xlu0 %488
  %v490 = vsel %vm254, %v92, 0.0
  %491 = vadd.xlane.f32.xlu0 %v490
  %v492 = vpop.xlane.xlu0 %491
  %v493 = vsel %vm258, %v93, 0.0
  %494 = vadd.xlane.f32.xlu0 %v493
  %v495 = vpop.xlane.xlu0 %494
  %v496 = vsel %vm254, %v94, 0.0
  %497 = vadd.xlane.f32.xlu0 %v496
  %v498 = vpop.xlane.xlu0 %497
  %v499 = vsel %vm258, %v95, 0.0
  %500 = vadd.xlane.f32.xlu0 %v499
  %v501 = vpop.xlane.xlu0 %500
  %v502 = vsel %vm254, %v96, 0.0
  %503 = vadd.xlane.f32.xlu0 %v502
  %v504 = vpop.xlane.xlu0 %503
  %v505 = vsel %vm258, %v97, 0.0
  %506 = vadd.xlane.f32.xlu0 %v505
  %v507 = vpop.xlane.xlu0 %506
  %v508 = vsel %vm254, %v98, 0.0
  %509 = vadd.xlane.f32.xlu0 %v508
  %v510 = vpop.xlane.xlu0 %509
  %v511 = vsel %vm258, %v99, 0.0
  %512 = vadd.xlane.f32.xlu0 %v511
  %v513 = vpop.xlane.xlu0 %512
  %v514 = vsel %vm254, %v100, 0.0
  %515 = vadd.xlane.f32.xlu0 %v514
  %v516 = vpop.xlane.xlu0 %515
  %v517 = vsel %vm258, %v101, 0.0
  %518 = vadd.xlane.f32.xlu0 %v517
  %v519 = vpop.xlane.xlu0 %518
  %v520 = vsel %vm254, %v102, 0.0
  %521 = vadd.xlane.f32.xlu0 %v520
  %v522 = vpop.xlane.xlu0 %521
  %v523 = vsel %vm258, %v103, 0.0
  %524 = vadd.xlane.f32.xlu0 %v523
  %v525 = vpop.xlane.xlu0 %524
  %v526 = vsel %vm254, %v104, 0.0
  %527 = vadd.xlane.f32.xlu0 %v526
  %v528 = vpop.xlane.xlu0 %527
  %v529 = vsel %vm258, %v105, 0.0
  %530 = vadd.xlane.f32.xlu0 %v529
  %v531 = vpop.xlane.xlu0 %530
  %v532 = vsel %vm254, %v106, 0.0
  %533 = vadd.xlane.f32.xlu0 %v532
  %v534 = vpop.xlane.xlu0 %533
  %v535 = vsel %vm258, %v107, 0.0
  %536 = vadd.xlane.f32.xlu0 %v535
  %v537 = vpop.xlane.xlu0 %536
  %v538 = vsel %vm254, %v108, 0.0
  %539 = vadd.xlane.f32.xlu0 %v538
  %v540 = vpop.xlane.xlu0 %539
  %v541 = vsel %vm258, %v109, 0.0
  %542 = vadd.xlane.f32.xlu0 %v541
  %v543 = vpop.xlane.xlu0 %542
  %vm544 = vcmask 1045504
  %v545 = vsel %vm544, %v261, 0.0
  %v546 = vadd.f32 %v257, %v545
  %v547 = vrot.slane %v546, 4
  %v548 = vadd.f32 %v546, %v547
  %v549 = vrot.slane %v548, 2
  %v550 = vadd.f32 %v548, %v549
  %v551 = vrot.slane %v550, 1
  %v552 = vadd.f32 %v550, %v551
  %v553 = vsel %vm544, %v267, 0.0
  %v554 = vadd.f32 %v264, %v553
  %v555 = vrot.slane %v554, 4
  %v556 = vadd.f32 %v554, %v555
  %v557 = vrot.slane %v556, 2
  %v558 = vadd.f32 %v556, %v557
  %v559 = vrot.slane %v558, 1
  %v560 = vadd.f32 %v558, %v559
  %v561 = vsel %vm544, %v273, 0.0
  %v562 = vadd.f32 %v270, %v561
  %v563 = vrot.slane %v562, 4
  %v564 = vadd.f32 %v562, %v563
  %v565 = vrot.slane %v564, 2
  %v566 = vadd.f32 %v564, %v565
  %v567 = vrot.slane %v566, 1
  %v568 = vadd.f32 %v566, %v567
  %v569 = vsel %vm544, %v279, 0.0
  %v570 = vadd.f32 %v276, %v569
  %v571 = vrot.slane %v570, 4
  %v572 = vadd.f32 %v570, %v571
  %v573 = vrot.slane %v572, 2
  %v574 = vadd.f32 %v572, %v573
  %v575 = vrot.slane %v574, 1
  %v576 = vadd.f32 %v574, %v575
  %v577 = vsel %vm544, %v285, 0.0
  %v578 = vadd.f32 %v282, %v577
  %v579 = vrot.slane %v578, 4
  %v580 = vadd.f32 %v578, %v579
  %v581 = vrot.slane %v580, 2
  %v582 = vadd.f32 %v580, %v581
  %v583 = vrot.slane %v582, 1
  %v584 = vadd.f32 %v582, %v583
  %v585 = vsel %vm544, %v291, 0.0
  %v586 = vadd.f32 %v288, %v585
  %v587 = vrot.slane %v586, 4
  %v588 = vadd.f32 %v586, %v587
  %v589 = vrot.slane %v588, 2
  %v590 = vadd.f32 %v588, %v589
  %v591 = vrot.slane %v590, 1
  %v592 = vadd.f32 %v590, %v591
  %v593 = vsel %vm544, %v297, 0.0
  %v594 = vadd.f32 %v294, %v593
  %v595 = vrot.slane %v594, 4
  %v596 = vadd.f32 %v594, %v595
  %v597 = vrot.slane %v596, 2
  %v598 = vadd.f32 %v596, %v597
  %v599 = vrot.slane %v598, 1
  %v600 = vadd.f32 %v598, %v599
  %v601 = vsel %vm544, %v303, 0.0
  %v602 = vadd.f32 %v300, %v601
  %v603 = vrot.slane %v602, 4
  %v604 = vadd.f32 %v602, %v603
  %v605 = vrot.slane %v604, 2
  %v606 = vadd.f32 %v604, %v605
  %v607 = vrot.slane %v606, 1
  %v608 = vadd.f32 %v606, %v607
  %v609 = vsel %vm544, %v309, 0.0
  %v610 = vadd.f32 %v306, %v609
  %v611 = vrot.slane %v610, 4
  %v612 = vadd.f32 %v610, %v611
  %v613 = vrot.slane %v612, 2
  %v614 = vadd.f32 %v612, %v613
  %v615 = vrot.slane %v614, 1
  %v616 = vadd.f32 %v614, %v615
  %v617 = vsel %vm544, %v315, 0.0
  %v618 = vadd.f32 %v312, %v617
  %v619 = vrot.slane %v618, 4
  %v620 = vadd.f32 %v618, %v619
  %v621 = vrot.slane %v620, 2
  %v622 = vadd.f32 %v620, %v621
  %v623 = vrot.slane %v622, 1
  %v624 = vadd.f32 %v622, %v623
  %v625 = vsel %vm544, %v321, 0.0
  %v626 = vadd.f32 %v318, %v625
  %v627 = vrot.slane %v626, 4
  %v628 = vadd.f32 %v626, %v627
  %v629 = vrot.slane %v628, 2
  %v630 = vadd.f32 %v628, %v629
  %v631 = vrot.slane %v630, 1
  %v632 = vadd.f32 %v630, %v631
  %v633 = vsel %vm544, %v327, 0.0
  %v634 = vadd.f32 %v324, %v633
  %v635 = vrot.slane %v634, 4
  %v636 = vadd.f32 %v634, %v635
  %v637 = vrot.slane %v636, 2
  %v638 = vadd.f32 %v636, %v637
  %v639 = vrot.slane %v638, 1
  %v640 = vadd.f32 %v638, %v639
  %v641 = vsel %vm544, %v333, 0.0
  %v642 = vadd.f32 %v330, %v641
  %v643 = vrot.slane %v642, 4
  %v644 = vadd.f32 %v642, %v643
  %v645 = vrot.slane %v644, 2
  %v646 = vadd.f32 %v644, %v645
  %v647 = vrot.slane %v646, 1
  %v648 = vadd.f32 %v646, %v647
  %v649 = vsel %vm544, %v339, 0.0
  %v650 = vadd.f32 %v336, %v649
  %v651 = vrot.slane %v650, 4
  %v652 = vadd.f32 %v650, %v651
  %v653 = vrot.slane %v652, 2
  %v654 = vadd.f32 %v652, %v653
  %v655 = vrot.slane %v654, 1
  %v656 = vadd.f32 %v654, %v655
  %v657 = vsel %vm544, %v345, 0.0
  %v658 = vadd.f32 %v342, %v657
  %v659 = vrot.slane %v658, 4
  %v660 = vadd.f32 %v658, %v659
  %v661 = vrot.slane %v660, 2
  %v662 = vadd.f32 %v660, %v661
  %v663 = vrot.slane %v662, 1
  %v664 = vadd.f32 %v662, %v663
  %v665 = vsel %vm544, %v351, 0.0
  %v666 = vadd.f32 %v348, %v665
  %v667 = vrot.slane %v666, 4
  %v668 = vadd.f32 %v666, %v667
  %v669 = vrot.slane %v668, 2
  %v670 = vadd.f32 %v668, %v669
  %v671 = vrot.slane %v670, 1
  %v672 = vadd.f32 %v670, %v671
  %v673 = vsel %vm544, %v357, 0.0
  %v674 = vadd.f32 %v354, %v673
  %v675 = vrot.slane %v674, 4
  %v676 = vadd.f32 %v674, %v675
  %v677 = vrot.slane %v676, 2
  %v678 = vadd.f32 %v676, %v677
  %v679 = vrot.slane %v678, 1
  %v680 = vadd.f32 %v678, %v679
  %v681 = vsel %vm544, %v363, 0.0
  %v682 = vadd.f32 %v360, %v681
  %v683 = vrot.slane %v682, 4
  %v684 = vadd.f32 %v682, %v683
  %v685 = vrot.slane %v684, 2
  %v686 = vadd.f32 %v684, %v685
  %v687 = vrot.slane %v686, 1
  %v688 = vadd.f32 %v686, %v687
  %v689 = vsel %vm544, %v369, 0.0
  %v690 = vadd.f32 %v366, %v689
  %v691 = vrot.slane %v690, 4
  %v692 = vadd.f32 %v690, %v691
  %v693 = vrot.slane %v692, 2
  %v694 = vadd.f32 %v692, %v693
  %v695 = vrot.slane %v694, 1
  %v696 = vadd.f32 %v694, %v695
  %v697 = vsel %vm544, %v375, 0.0
  %v698 = vadd.f32 %v372, %v697
  %v699 = vrot.slane %v698, 4
  %v700 = vadd.f32 %v698, %v699
  %v701 = vrot.slane %v700, 2
  %v702 = vadd.f32 %v700, %v701
  %v703 = vrot.slane %v702, 1
  %v704 = vadd.f32 %v702, %v703
  %v705 = vsel %vm544, %v381, 0.0
  %v706 = vadd.f32 %v378, %v705
  %v707 = vrot.slane %v706, 4
  %v708 = vadd.f32 %v706, %v707
  %v709 = vrot.slane %v708, 2
  %v710 = vadd.f32 %v708, %v709
  %v711 = vrot.slane %v710, 1
  %v712 = vadd.f32 %v710, %v711
  %v713 = vsel %vm544, %v387, 0.0
  %v714 = vadd.f32 %v384, %v713
  %v715 = vrot.slane %v714, 4
  %v716 = vadd.f32 %v714, %v715
  %v717 = vrot.slane %v716, 2
  %v718 = vadd.f32 %v716, %v717
  %v719 = vrot.slane %v718, 1
  %v720 = vadd.f32 %v718, %v719
  %v721 = vsel %vm544, %v393, 0.0
  %v722 = vadd.f32 %v390, %v721
  %v723 = vrot.slane %v722, 4
  %v724 = vadd.f32 %v722, %v723
  %v725 = vrot.slane %v724, 2
  %v726 = vadd.f32 %v724, %v725
  %v727 = vrot.slane %v726, 1
  %v728 = vadd.f32 %v726, %v727
  %v729 = vsel %vm544, %v399, 0.0
  %v730 = vadd.f32 %v396, %v729
  %v731 = vrot.slane %v730, 4
  %v732 = vadd.f32 %v730, %v731
  %v733 = vrot.slane %v732, 2
  %v734 = vadd.f32 %v732, %v733
  %v735 = vrot.slane %v734, 1
  %v736 = vadd.f32 %v734, %v735
  %v737 = vsel %vm544, %v405, 0.0
  %v738 = vadd.f32 %v402, %v737
  %v739 = vrot.slane %v738, 4
  %v740 = vadd.f32 %v738, %v739
  %v741 = vrot.slane %v740, 2
  %v742 = vadd.f32 %v740, %v741
  %v743 = vrot.slane %v742, 1
  %v744 = vadd.f32 %v742, %v743
  %v745 = vsel %vm544, %v411, 0.0
  %v746 = vadd.f32 %v408, %v745
  %v747 = vrot.slane %v746, 4
  %v748 = vadd.f32 %v746, %v747
  %v749 = vrot.slane %v748, 2
  %v750 = vadd.f32 %v748, %v749
  %v751 = vrot.slane %v750, 1
  %v752 = vadd.f32 %v750, %v751
  %v753 = vsel %vm544, %v417, 0.0
  %v754 = vadd.f32 %v414, %v753
  %v755 = vrot.slane %v754, 4
  %v756 = vadd.f32 %v754, %v755
  %v757 = vrot.slane %v756, 2
  %v758 = vadd.f32 %v756, %v757
  %v759 = vrot.slane %v758, 1
  %v760 = vadd.f32 %v758, %v759
  %v761 = vsel %vm544, %v423, 0.0
  %v762 = vadd.f32 %v420, %v761
  %v763 = vrot.slane %v762, 4
  %v764 = vadd.f32 %v762, %v763
  %v765 = vrot.slane %v764, 2
  %v766 = vadd.f32 %v764, %v765
  %v767 = vrot.slane %v766, 1
  %v768 = vadd.f32 %v766, %v767
  %v769 = vsel %vm544, %v429, 0.0
  %v770 = vadd.f32 %v426, %v769
  %v771 = vrot.slane %v770, 4
  %v772 = vadd.f32 %v770, %v771
  %v773 = vrot.slane %v772, 2
  %v774 = vadd.f32 %v772, %v773
  %v775 = vrot.slane %v774, 1
  %v776 = vadd.f32 %v774, %v775
  %v777 = vsel %vm544, %v435, 0.0
  %v778 = vadd.f32 %v432, %v777
  %v779 = vrot.slane %v778, 4
  %v780 = vadd.f32 %v778, %v779
  %v781 = vrot.slane %v780, 2
  %v782 = vadd.f32 %v780, %v781
  %v783 = vrot.slane %v782, 1
  %v784 = vadd.f32 %v782, %v783
  %v785 = vsel %vm544, %v441, 0.0
  %v786 = vadd.f32 %v438, %v785
  %v787 = vrot.slane %v786, 4
  %v788 = vadd.f32 %v786, %v787
  %v789 = vrot.slane %v788, 2
  %v790 = vadd.f32 %v788, %v789
  %v791 = vrot.slane %v790, 1
  %v792 = vadd.f32 %v790, %v791
  %v793 = vsel %vm544, %v447, 0.0
  %v794 = vadd.f32 %v444, %v793
  %v795 = vrot.slane %v794, 4
  %v796 = vadd.f32 %v794, %v795
  %v797 = vrot.slane %v796, 2
  %v798 = vadd.f32 %v796, %v797
  %v799 = vrot.slane %v798, 1
  %v800 = vadd.f32 %v798, %v799
  %v801 = vsel %vm544, %v453, 0.0
  %v802 = vadd.f32 %v450, %v801
  %v803 = vrot.slane %v802, 4
  %v804 = vadd.f32 %v802, %v803
  %v805 = vrot.slane %v804, 2
  %v806 = vadd.f32 %v804, %v805
  %v807 = vrot.slane %v806, 1
  %v808 = vadd.f32 %v806, %v807
  %v809 = vsel %vm544, %v459, 0.0
  %v810 = vadd.f32 %v456, %v809
  %v811 = vrot.slane %v810, 4
  %v812 = vadd.f32 %v810, %v811
  %v813 = vrot.slane %v812, 2
  %v814 = vadd.f32 %v812, %v813
  %v815 = vrot.slane %v814, 1
  %v816 = vadd.f32 %v814, %v815
  %v817 = vsel %vm544, %v465, 0.0
  %v818 = vadd.f32 %v462, %v817
  %v819 = vrot.slane %v818, 4
  %v820 = vadd.f32 %v818, %v819
  %v821 = vrot.slane %v820, 2
  %v822 = vadd.f32 %v820, %v821
  %v823 = vrot.slane %v822, 1
  %v824 = vadd.f32 %v822, %v823
  %v825 = vsel %vm544, %v471, 0.0
  %v826 = vadd.f32 %v468, %v825
  %v827 = vrot.slane %v826, 4
  %v828 = vadd.f32 %v826, %v827
  %v829 = vrot.slane %v828, 2
  %v830 = vadd.f32 %v828, %v829
  %v831 = vrot.slane %v830, 1
  %v832 = vadd.f32 %v830, %v831
  %v833 = vsel %vm544, %v477, 0.0
  %v834 = vadd.f32 %v474, %v833
  %v835 = vrot.slane %v834, 4
  %v836 = vadd.f32 %v834, %v835
  %v837 = vrot.slane %v836, 2
  %v838 = vadd.f32 %v836, %v837
  %v839 = vrot.slane %v838, 1
  %v840 = vadd.f32 %v838, %v839
  %v841 = vsel %vm544, %v483, 0.0
  %v842 = vadd.f32 %v480, %v841
  %v843 = vrot.slane %v842, 4
  %v844 = vadd.f32 %v842, %v843
  %v845 = vrot.slane %v844, 2
  %v846 = vadd.f32 %v844, %v845
  %v847 = vrot.slane %v846, 1
  %v848 = vadd.f32 %v846, %v847
  %v849 = vsel %vm544, %v489, 0.0
  %v850 = vadd.f32 %v486, %v849
  %v851 = vrot.slane %v850, 4
  %v852 = vadd.f32 %v850, %v851
  %v853 = vrot.slane %v852, 2
  %v854 = vadd.f32 %v852, %v853
  %v855 = vrot.slane %v854, 1
  %v856 = vadd.f32 %v854, %v855
  %v857 = vsel %vm544, %v495, 0.0
  %v858 = vadd.f32 %v492, %v857
  %v859 = vrot.slane %v858, 4
  %v860 = vadd.f32 %v858, %v859
  %v861 = vrot.slane %v860, 2
  %v862 = vadd.f32 %v860, %v861
  %v863 = vrot.slane %v862, 1
  %v864 = vadd.f32 %v862, %v863
  %v865 = vsel %vm544, %v501, 0.0
  %v866 = vadd.f32 %v498, %v865
  %v867 = vrot.slane %v866, 4
  %v868 = vadd.f32 %v866, %v867
  %v869 = vrot.slane %v868, 2
  %v870 = vadd.f32 %v868, %v869
  %v871 = vrot.slane %v870, 1
  %v872 = vadd.f32 %v870, %v871
  %v873 = vsel %vm544, %v507, 0.0
  %v874 = vadd.f32 %v504, %v873
  %v875 = vrot.slane %v874, 4
  %v876 = vadd.f32 %v874, %v875
  %v877 = vrot.slane %v876, 2
  %v878 = vadd.f32 %v876, %v877
  %v879 = vrot.slane %v878, 1
  %v880 = vadd.f32 %v878, %v879
  %v881 = vsel %vm544, %v513, 0.0
  %v882 = vadd.f32 %v510, %v881
  %v883 = vrot.slane %v882, 4
  %v884 = vadd.f32 %v882, %v883
  %v885 = vrot.slane %v884, 2
  %v886 = vadd.f32 %v884, %v885
  %v887 = vrot.slane %v886, 1
  %v888 = vadd.f32 %v886, %v887
  %v889 = vsel %vm544, %v519, 0.0
  %v890 = vadd.f32 %v516, %v889
  %v891 = vrot.slane %v890, 4
  %v892 = vadd.f32 %v890, %v891
  %v893 = vrot.slane %v892, 2
  %v894 = vadd.f32 %v892, %v893
  %v895 = vrot.slane %v894, 1
  %v896 = vadd.f32 %v894, %v895
  %v897 = vsel %vm544, %v525, 0.0
  %v898 = vadd.f32 %v522, %v897
  %v899 = vrot.slane %v898, 4
  %v900 = vadd.f32 %v898, %v899
  %v901 = vrot.slane %v900, 2
  %v902 = vadd.f32 %v900, %v901
  %v903 = vrot.slane %v902, 1
  %v904 = vadd.f32 %v902, %v903
  %v905 = vsel %vm544, %v531, 0.0
  %v906 = vadd.f32 %v528, %v905
  %v907 = vrot.slane %v906, 4
  %v908 = vadd.f32 %v906, %v907
  %v909 = vrot.slane %v908, 2
  %v910 = vadd.f32 %v908, %v909
  %v911 = vrot.slane %v910, 1
  %v912 = vadd.f32 %v910, %v911
  %v913 = vsel %vm544, %v537, 0.0
  %v914 = vadd.f32 %v534, %v913
  %v915 = vrot.slane %v914, 4
  %v916 = vadd.f32 %v914, %v915
  %v917 = vrot.slane %v916, 2
  %v918 = vadd.f32 %v916, %v917
  %v919 = vrot.slane %v918, 1
  %v920 = vadd.f32 %v918, %v919
  %v921 = vsel %vm544, %v543, 0.0
  %v922 = vadd.f32 %v540, %v921
  %v923 = vrot.slane %v922, 4
  %v924 = vadd.f32 %v922, %v923
  %v925 = vrot.slane %v924, 2
  %v926 = vadd.f32 %v924, %v925
  %v927 = vrot.slane %v926, 1
  %v928 = vadd.f32 %v926, %v927
  %v929 = vadd.f32 %v552, 0.0
  %v930 = vadd.f32 %v560, 0.0
  %v931 = vadd.f32 %v568, 0.0
  %v932 = vadd.f32 %v576, 0.0
  %v933 = vadd.f32 %v584, 0.0
  %v934 = vadd.f32 %v592, 0.0
  %v935 = vadd.f32 %v600, 0.0
  %v936 = vadd.f32 %v608, 0.0
  %v937 = vadd.f32 %v616, 0.0
  %v938 = vadd.f32 %v624, 0.0
  %v939 = vadd.f32 %v632, 0.0
  %v940 = vadd.f32 %v640, 0.0
  %v941 = vadd.f32 %v648, 0.0
  %v942 = vadd.f32 %v656, 0.0
  %v943 = vadd.f32 %v664, 0.0
  %v944 = vadd.f32 %v672, 0.0
  %v945 = vadd.f32 %v680, 0.0
  %v946 = vadd.f32 %v688, 0.0
  %v947 = vadd.f32 %v696, 0.0
  %v948 = vadd.f32 %v704, 0.0
  %v949 = vadd.f32 %v712, 0.0
  %v950 = vadd.f32 %v720, 0.0
  %v951 = vadd.f32 %v728, 0.0
  %v952 = vadd.f32 %v736, 0.0
  %v953 = vadd.f32 %v744, 0.0
  %v954 = vadd.f32 %v752, 0.0
  %v955 = vadd.f32 %v760, 0.0
  %v956 = vadd.f32 %v768, 0.0
  %v957 = vadd.f32 %v776, 0.0
  %v958 = vadd.f32 %v784, 0.0
  %v959 = vadd.f32 %v792, 0.0
  %v960 = vadd.f32 %v800, 0.0
  %v961 = vadd.f32 %v808, 0.0
  %v962 = vadd.f32 %v816, 0.0
  %v963 = vadd.f32 %v824, 0.0
  %v964 = vadd.f32 %v832, 0.0
  %v965 = vadd.f32 %v840, 0.0
  %v966 = vadd.f32 %v848, 0.0
  %v967 = vadd.f32 %v856, 0.0
  %v968 = vadd.f32 %v864, 0.0
  %v969 = vadd.f32 %v872, 0.0
  %v970 = vadd.f32 %v880, 0.0
  %v971 = vadd.f32 %v888, 0.0
  %v972 = vadd.f32 %v896, 0.0
  %v973 = vadd.f32 %v904, 0.0
  %v974 = vadd.f32 %v912, 0.0
  %v975 = vadd.f32 %v920, 0.0
  %v976 = vadd.f32 %v928, 0.0
  %v977 = vmul.f32 %v14, %v14
  %v978 = vmul.f32 %v15, %v15
  %v979 = vmul.f32 %v16, %v16
  %v980 = vmul.f32 %v17, %v17
  %v981 = vmul.f32 %v18, %v18
  %v982 = vmul.f32 %v19, %v19
  %v983 = vmul.f32 %v20, %v20
  %v984 = vmul.f32 %v21, %v21
  %v985 = vmul.f32 %v22, %v22
  %v986 = vmul.f32 %v23, %v23
  %v987 = vmul.f32 %v24, %v24
  %v988 = vmul.f32 %v25, %v25
  %v989 = vmul.f32 %v26, %v26
  %v990 = vmul.f32 %v27, %v27
  %v991 = vmul.f32 %v28, %v28
  %v992 = vmul.f32 %v29, %v29
  %v993 = vmul.f32 %v30, %v30
  %v994 = vmul.f32 %v31, %v31
  %v995 = vmul.f32 %v32, %v32
  %v996 = vmul.f32 %v33, %v33
  %v997 = vmul.f32 %v34, %v34
  %v998 = vmul.f32 %v35, %v35
  %v999 = vmul.f32 %v36, %v36
  %v1000 = vmul.f32 %v37, %v37
  %v1001 = vmul.f32 %v38, %v38
  %v1002 = vmul.f32 %v39, %v39
  %v1003 = vmul.f32 %v40, %v40
  %v1004 = vmul.f32 %v41, %v41
  %v1005 = vmul.f32 %v42, %v42
  %v1006 = vmul.f32 %v43, %v43
  %v1007 = vmul.f32 %v44, %v44
  %v1008 = vmul.f32 %v45, %v45
  %v1009 = vmul.f32 %v46, %v46
  %v1010 = vmul.f32 %v47, %v47
  %v1011 = vmul.f32 %v48, %v48
  %v1012 = vmul.f32 %v49, %v49
  %v1013 = vmul.f32 %v50, %v50
  %v1014 = vmul.f32 %v51, %v51
  %v1015 = vmul.f32 %v52, %v52
  %v1016 = vmul.f32 %v53, %v53
  %v1017 = vmul.f32 %v54, %v54
  %v1018 = vmul.f32 %v55, %v55
  %v1019 = vmul.f32 %v56, %v56
  %v1020 = vmul.f32 %v57, %v57
  %v1021 = vmul.f32 %v58, %v58
  %v1022 = vmul.f32 %v59, %v59
  %v1023 = vmul.f32 %v60, %v60
  %v1024 = vmul.f32 %v61, %v61
  %v1025 = vmul.f32 %v62, %v62
  %v1026 = vmul.f32 %v63, %v63
  %v1027 = vmul.f32 %v64, %v64
  %v1028 = vmul.f32 %v65, %v65
  %v1029 = vmul.f32 %v66, %v66
  %v1030 = vmul.f32 %v67, %v67
  %v1031 = vmul.f32 %v68, %v68
  %v1032 = vmul.f32 %v69, %v69
  %v1033 = vmul.f32 %v70, %v70
  %v1034 = vmul.f32 %v71, %v71
  %v1035 = vmul.f32 %v72, %v72
  %v1036 = vmul.f32 %v73, %v73
  %v1037 = vmul.f32 %v74, %v74
  %v1038 = vmul.f32 %v75, %v75
  %v1039 = vmul.f32 %v76, %v76
  %v1040 = vmul.f32 %v77, %v77
  %v1041 = vmul.f32 %v78, %v78
  %v1042 = vmul.f32 %v79, %v79
  %v1043 = vmul.f32 %v80, %v80
  %v1044 = vmul.f32 %v81, %v81
  %v1045 = vmul.f32 %v82, %v82
  %v1046 = vmul.f32 %v83, %v83
  %v1047 = vmul.f32 %v84, %v84
  %v1048 = vmul.f32 %v85, %v85
  %v1049 = vmul.f32 %v86, %v86
  %v1050 = vmul.f32 %v87, %v87
  %v1051 = vmul.f32 %v88, %v88
  %v1052 = vmul.f32 %v89, %v89
  %v1053 = vmul.f32 %v90, %v90
  %v1054 = vmul.f32 %v91, %v91
  %v1055 = vmul.f32 %v92, %v92
  %v1056 = vmul.f32 %v93, %v93
  %v1057 = vmul.f32 %v94, %v94
  %v1058 = vmul.f32 %v95, %v95
  %v1059 = vmul.f32 %v96, %v96
  %v1060 = vmul.f32 %v97, %v97
  %v1061 = vmul.f32 %v98, %v98
  %v1062 = vmul.f32 %v99, %v99
  %v1063 = vmul.f32 %v100, %v100
  %v1064 = vmul.f32 %v101, %v101
  %v1065 = vmul.f32 %v102, %v102
  %v1066 = vmul.f32 %v103, %v103
  %v1067 = vmul.f32 %v104, %v104
  %v1068 = vmul.f32 %v105, %v105
  %v1069 = vmul.f32 %v106, %v106
  %v1070 = vmul.f32 %v107, %v107
  %v1071 = vmul.f32 %v108, %v108
  %v1072 = vmul.f32 %v109, %v109
  %v1073 = vsel %vm254, %v977, 0.0
  %1074 = vadd.xlane.f32.xlu0 %v1073
  %v1075 = vpop.xlane.xlu0 %1074
  %v1076 = vsel %vm258, %v978, 0.0
  %1077 = vadd.xlane.f32.xlu0 %v1076
  %v1078 = vpop.xlane.xlu0 %1077
  %v1079 = vsel %vm254, %v979, 0.0
  %1080 = vadd.xlane.f32.xlu0 %v1079
  %v1081 = vpop.xlane.xlu0 %1080
  %v1082 = vsel %vm258, %v980, 0.0
  %1083 = vadd.xlane.f32.xlu0 %v1082
  %v1084 = vpop.xlane.xlu0 %1083
  %v1085 = vsel %vm254, %v981, 0.0
  %1086 = vadd.xlane.f32.xlu0 %v1085
  %v1087 = vpop.xlane.xlu0 %1086
  %v1088 = vsel %vm258, %v982, 0.0
  %1089 = vadd.xlane.f32.xlu0 %v1088
  %v1090 = vpop.xlane.xlu0 %1089
  %v1091 = vsel %vm254, %v983, 0.0
  %1092 = vadd.xlane.f32.xlu0 %v1091
  %v1093 = vpop.xlane.xlu0 %1092
  %v1094 = vsel %vm258, %v984, 0.0
  %1095 = vadd.xlane.f32.xlu0 %v1094
  %v1096 = vpop.xlane.xlu0 %1095
  %v1097 = vsel %vm254, %v985, 0.0
  %1098 = vadd.xlane.f32.xlu0 %v1097
  %v1099 = vpop.xlane.xlu0 %1098
  %v1100 = vsel %vm258, %v986, 0.0
  %1101 = vadd.xlane.f32.xlu0 %v1100
  %v1102 = vpop.xlane.xlu0 %1101
  %v1103 = vsel %vm254, %v987, 0.0
  %1104 = vadd.xlane.f32.xlu0 %v1103
  %v1105 = vpop.xlane.xlu0 %1104
  %v1106 = vsel %vm258, %v988, 0.0
  %1107 = vadd.xlane.f32.xlu0 %v1106
  %v1108 = vpop.xlane.xlu0 %1107
  %v1109 = vsel %vm254, %v989, 0.0
  %1110 = vadd.xlane.f32.xlu0 %v1109
  %v1111 = vpop.xlane.xlu0 %1110
  %v1112 = vsel %vm258, %v990, 0.0
  %1113 = vadd.xlane.f32.xlu0 %v1112
  %v1114 = vpop.xlane.xlu0 %1113
  %v1115 = vsel %vm254, %v991, 0.0
  %1116 = vadd.xlane.f32.xlu0 %v1115
  %v1117 = vpop.xlane.xlu0 %1116
  %v1118 = vsel %vm258, %v992, 0.0
  %1119 = vadd.xlane.f32.xlu0 %v1118
  %v1120 = vpop.xlane.xlu0 %1119
  %v1121 = vsel %vm254, %v993, 0.0
  %1122 = vadd.xlane.f32.xlu0 %v1121
  %v1123 = vpop.xlane.xlu0 %1122
  %v1124 = vsel %vm258, %v994, 0.0
  %1125 = vadd.xlane.f32.xlu0 %v1124
  %v1126 = vpop.xlane.xlu0 %1125
  %v1127 = vsel %vm254, %v995, 0.0
  %1128 = vadd.xlane.f32.xlu0 %v1127
  %v1129 = vpop.xlane.xlu0 %1128
  %v1130 = vsel %vm258, %v996, 0.0
  %1131 = vadd.xlane.f32.xlu0 %v1130
  %v1132 = vpop.xlane.xlu0 %1131
  %v1133 = vsel %vm254, %v997, 0.0
  %1134 = vadd.xlane.f32.xlu0 %v1133
  %v1135 = vpop.xlane.xlu0 %1134
  %v1136 = vsel %vm258, %v998, 0.0
  %1137 = vadd.xlane.f32.xlu0 %v1136
  %v1138 = vpop.xlane.xlu0 %1137
  %v1139 = vsel %vm254, %v999, 0.0
  %1140 = vadd.xlane.f32.xlu0 %v1139
  %v1141 = vpop.xlane.xlu0 %1140
  %v1142 = vsel %vm258, %v1000, 0.0
  %1143 = vadd.xlane.f32.xlu0 %v1142
  %v1144 = vpop.xlane.xlu0 %1143
  %v1145 = vsel %vm254, %v1001, 0.0
  %1146 = vadd.xlane.f32.xlu0 %v1145
  %v1147 = vpop.xlane.xlu0 %1146
  %v1148 = vsel %vm258, %v1002, 0.0
  %1149 = vadd.xlane.f32.xlu0 %v1148
  %v1150 = vpop.xlane.xlu0 %1149
  %v1151 = vsel %vm254, %v1003, 0.0
  %1152 = vadd.xlane.f32.xlu0 %v1151
  %v1153 = vpop.xlane.xlu0 %1152
  %v1154 = vsel %vm258, %v1004, 0.0
  %1155 = vadd.xlane.f32.xlu0 %v1154
  %v1156 = vpop.xlane.xlu0 %1155
  %v1157 = vsel %vm254, %v1005, 0.0
  %1158 = vadd.xlane.f32.xlu0 %v1157
  %v1159 = vpop.xlane.xlu0 %1158
  %v1160 = vsel %vm258, %v1006, 0.0
  %1161 = vadd.xlane.f32.xlu0 %v1160
  %v1162 = vpop.xlane.xlu0 %1161
  %v1163 = vsel %vm254, %v1007, 0.0
  %1164 = vadd.xlane.f32.xlu0 %v1163
  %v1165 = vpop.xlane.xlu0 %1164
  %v1166 = vsel %vm258, %v1008, 0.0
  %1167 = vadd.xlane.f32.xlu0 %v1166
  %v1168 = vpop.xlane.xlu0 %1167
  %v1169 = vsel %vm254, %v1009, 0.0
  %1170 = vadd.xlane.f32.xlu0 %v1169
  %v1171 = vpop.xlane.xlu0 %1170
  %v1172 = vsel %vm258, %v1010, 0.0
  %1173 = vadd.xlane.f32.xlu0 %v1172
  %v1174 = vpop.xlane.xlu0 %1173
  %v1175 = vsel %vm254, %v1011, 0.0
  %1176 = vadd.xlane.f32.xlu0 %v1175
  %v1177 = vpop.xlane.xlu0 %1176
  %v1178 = vsel %vm258, %v1012, 0.0
  %1179 = vadd.xlane.f32.xlu0 %v1178
  %v1180 = vpop.xlane.xlu0 %1179
  %v1181 = vsel %vm254, %v1013, 0.0
  %1182 = vadd.xlane.f32.xlu0 %v1181
  %v1183 = vpop.xlane.xlu0 %1182
  %v1184 = vsel %vm258, %v1014, 0.0
  %1185 = vadd.xlane.f32.xlu0 %v1184
  %v1186 = vpop.xlane.xlu0 %1185
  %v1187 = vsel %vm254, %v1015, 0.0
  %1188 = vadd.xlane.f32.xlu0 %v1187
  %v1189 = vpop.xlane.xlu0 %1188
  %v1190 = vsel %vm258, %v1016, 0.0
  %1191 = vadd.xlane.f32.xlu0 %v1190
  %v1192 = vpop.xlane.xlu0 %1191
  %v1193 = vsel %vm254, %v1017, 0.0
  %1194 = vadd.xlane.f32.xlu0 %v1193
  %v1195 = vpop.xlane.xlu0 %1194
  %v1196 = vsel %vm258, %v1018, 0.0
  %1197 = vadd.xlane.f32.xlu0 %v1196
  %v1198 = vpop.xlane.xlu0 %1197
  %v1199 = vsel %vm254, %v1019, 0.0
  %1200 = vadd.xlane.f32.xlu0 %v1199
  %v1201 = vpop.xlane.xlu0 %1200
  %v1202 = vsel %vm258, %v1020, 0.0
  %1203 = vadd.xlane.f32.xlu0 %v1202
  %v1204 = vpop.xlane.xlu0 %1203
  %v1205 = vsel %vm254, %v1021, 0.0
  %1206 = vadd.xlane.f32.xlu0 %v1205
  %v1207 = vpop.xlane.xlu0 %1206
  %v1208 = vsel %vm258, %v1022, 0.0
  %1209 = vadd.xlane.f32.xlu0 %v1208
  %v1210 = vpop.xlane.xlu0 %1209
  %v1211 = vsel %vm254, %v1023, 0.0
  %1212 = vadd.xlane.f32.xlu0 %v1211
  %v1213 = vpop.xlane.xlu0 %1212
  %v1214 = vsel %vm258, %v1024, 0.0
  %1215 = vadd.xlane.f32.xlu0 %v1214
  %v1216 = vpop.xlane.xlu0 %1215
  %v1217 = vsel %vm254, %v1025, 0.0
  %1218 = vadd.xlane.f32.xlu0 %v1217
  %v1219 = vpop.xlane.xlu0 %1218
  %v1220 = vsel %vm258, %v1026, 0.0
  %1221 = vadd.xlane.f32.xlu0 %v1220
  %v1222 = vpop.xlane.xlu0 %1221
  %v1223 = vsel %vm254, %v1027, 0.0
  %1224 = vadd.xlane.f32.xlu0 %v1223
  %v1225 = vpop.xlane.xlu0 %1224
  %v1226 = vsel %vm258, %v1028, 0.0
  %1227 = vadd.xlane.f32.xlu0 %v1226
  %v1228 = vpop.xlane.xlu0 %1227
  %v1229 = vsel %vm254, %v1029, 0.0
  %1230 = vadd.xlane.f32.xlu0 %v1229
  %v1231 = vpop.xlane.xlu0 %1230
  %v1232 = vsel %vm258, %v1030, 0.0
  %1233 = vadd.xlane.f32.xlu0 %v1232
  %v1234 = vpop.xlane.xlu0 %1233
  %v1235 = vsel %vm254, %v1031, 0.0
  %1236 = vadd.xlane.f32.xlu0 %v1235
  %v1237 = vpop.xlane.xlu0 %1236
  %v1238 = vsel %vm258, %v1032, 0.0
  %1239 = vadd.xlane.f32.xlu0 %v1238
  %v1240 = vpop.xlane.xlu0 %1239
  %v1241 = vsel %vm254, %v1033, 0.0
  %1242 = vadd.xlane.f32.xlu0 %v1241
  %v1243 = vpop.xlane.xlu0 %1242
  %v1244 = vsel %vm258, %v1034, 0.0
  %1245 = vadd.xlane.f32.xlu0 %v1244
  %v1246 = vpop.xlane.xlu0 %1245
  %v1247 = vsel %vm254, %v1035, 0.0
  %1248 = vadd.xlane.f32.xlu0 %v1247
  %v1249 = vpop.xlane.xlu0 %1248
  %v1250 = vsel %vm258, %v1036, 0.0
  %1251 = vadd.xlane.f32.xlu0 %v1250
  %v1252 = vpop.xlane.xlu0 %1251
  %v1253 = vsel %vm254, %v1037, 0.0
  %1254 = vadd.xlane.f32.xlu0 %v1253
  %v1255 = vpop.xlane.xlu0 %1254
  %v1256 = vsel %vm258, %v1038, 0.0
  %1257 = vadd.xlane.f32.xlu0 %v1256
  %v1258 = vpop.xlane.xlu0 %1257
  %v1259 = vsel %vm254, %v1039, 0.0
  %1260 = vadd.xlane.f32.xlu0 %v1259
  %v1261 = vpop.xlane.xlu0 %1260
  %v1262 = vsel %vm258, %v1040, 0.0
  %1263 = vadd.xlane.f32.xlu0 %v1262
  %v1264 = vpop.xlane.xlu0 %1263
  %v1265 = vsel %vm254, %v1041, 0.0
  %1266 = vadd.xlane.f32.xlu0 %v1265
  %v1267 = vpop.xlane.xlu0 %1266
  %v1268 = vsel %vm258, %v1042, 0.0
  %1269 = vadd.xlane.f32.xlu0 %v1268
  %v1270 = vpop.xlane.xlu0 %1269
  %v1271 = vsel %vm254, %v1043, 0.0
  %1272 = vadd.xlane.f32.xlu0 %v1271
  %v1273 = vpop.xlane.xlu0 %1272
  %v1274 = vsel %vm258, %v1044, 0.0
  %1275 = vadd.xlane.f32.xlu0 %v1274
  %v1276 = vpop.xlane.xlu0 %1275
  %v1277 = vsel %vm254, %v1045, 0.0
  %1278 = vadd.xlane.f32.xlu0 %v1277
  %v1279 = vpop.xlane.xlu0 %1278
  %v1280 = vsel %vm258, %v1046, 0.0
  %1281 = vadd.xlane.f32.xlu0 %v1280
  %v1282 = vpop.xlane.xlu0 %1281
  %v1283 = vsel %vm254, %v1047, 0.0
  %1284 = vadd.xlane.f32.xlu0 %v1283
  %v1285 = vpop.xlane.xlu0 %1284
  %v1286 = vsel %vm258, %v1048, 0.0
  %1287 = vadd.xlane.f32.xlu0 %v1286
  %v1288 = vpop.xlane.xlu0 %1287
  %v1289 = vsel %vm254, %v1049, 0.0
  %1290 = vadd.xlane.f32.xlu0 %v1289
  %v1291 = vpop.xlane.xlu0 %1290
  %v1292 = vsel %vm258, %v1050, 0.0
  %1293 = vadd.xlane.f32.xlu0 %v1292
  %v1294 = vpop.xlane.xlu0 %1293
  %v1295 = vsel %vm254, %v1051, 0.0
  %1296 = vadd.xlane.f32.xlu0 %v1295
  %v1297 = vpop.xlane.xlu0 %1296
  %v1298 = vsel %vm258, %v1052, 0.0
  %1299 = vadd.xlane.f32.xlu0 %v1298
  %v1300 = vpop.xlane.xlu0 %1299
  %v1301 = vsel %vm254, %v1053, 0.0
  %1302 = vadd.xlane.f32.xlu0 %v1301
  %v1303 = vpop.xlane.xlu0 %1302
  %v1304 = vsel %vm258, %v1054, 0.0
  %1305 = vadd.xlane.f32.xlu0 %v1304
  %v1306 = vpop.xlane.xlu0 %1305
  %v1307 = vsel %vm254, %v1055, 0.0
  %1308 = vadd.xlane.f32.xlu0 %v1307
  %v1309 = vpop.xlane.xlu0 %1308
  %v1310 = vsel %vm258, %v1056, 0.0
  %1311 = vadd.xlane.f32.xlu0 %v1310
  %v1312 = vpop.xlane.xlu0 %1311
  %v1313 = vsel %vm254, %v1057, 0.0
  %1314 = vadd.xlane.f32.xlu0 %v1313
  %v1315 = vpop.xlane.xlu0 %1314
  %v1316 = vsel %vm258, %v1058, 0.0
  %1317 = vadd.xlane.f32.xlu0 %v1316
  %v1318 = vpop.xlane.xlu0 %1317
  %v1319 = vsel %vm254, %v1059, 0.0
  %1320 = vadd.xlane.f32.xlu0 %v1319
  %v1321 = vpop.xlane.xlu0 %1320
  %v1322 = vsel %vm258, %v1060, 0.0
  %1323 = vadd.xlane.f32.xlu0 %v1322
  %v1324 = vpop.xlane.xlu0 %1323
  %v1325 = vsel %vm254, %v1061, 0.0
  %1326 = vadd.xlane.f32.xlu0 %v1325
  %v1327 = vpop.xlane.xlu0 %1326
  %v1328 = vsel %vm258, %v1062, 0.0
  %1329 = vadd.xlane.f32.xlu0 %v1328
  %v1330 = vpop.xlane.xlu0 %1329
  %v1331 = vsel %vm254, %v1063, 0.0
  %1332 = vadd.xlane.f32.xlu0 %v1331
  %v1333 = vpop.xlane.xlu0 %1332
  %v1334 = vsel %vm258, %v1064, 0.0
  %1335 = vadd.xlane.f32.xlu0 %v1334
  %v1336 = vpop.xlane.xlu0 %1335
  %v1337 = vsel %vm254, %v1065, 0.0
  %1338 = vadd.xlane.f32.xlu0 %v1337
  %v1339 = vpop.xlane.xlu0 %1338
  %v1340 = vsel %vm258, %v1066, 0.0
  %1341 = vadd.xlane.f32.xlu0 %v1340
  %v1342 = vpop.xlane.xlu0 %1341
  %v1343 = vsel %vm254, %v1067, 0.0
  %1344 = vadd.xlane.f32.xlu0 %v1343
  %v1345 = vpop.xlane.xlu0 %1344
  %v1346 = vsel %vm258, %v1068, 0.0
  %1347 = vadd.xlane.f32.xlu0 %v1346
  %v1348 = vpop.xlane.xlu0 %1347
  %v1349 = vsel %vm254, %v1069, 0.0
  %1350 = vadd.xlane.f32.xlu0 %v1349
  %v1351 = vpop.xlane.xlu0 %1350
  %v1352 = vsel %vm258, %v1070, 0.0
  %1353 = vadd.xlane.f32.xlu0 %v1352
  %v1354 = vpop.xlane.xlu0 %1353
  %v1355 = vsel %vm254, %v1071, 0.0
  %1356 = vadd.xlane.f32.xlu0 %v1355
  %v1357 = vpop.xlane.xlu0 %1356
  %v1358 = vsel %vm258, %v1072, 0.0
  %1359 = vadd.xlane.f32.xlu0 %v1358
  %v1360 = vpop.xlane.xlu0 %1359
  %v1361 = vsel %vm544, %v1078, 0.0
  %v1362 = vadd.f32 %v1075, %v1361
  %v1363 = vrot.slane %v1362, 4
  %v1364 = vadd.f32 %v1362, %v1363
  %v1365 = vrot.slane %v1364, 2
  %v1366 = vadd.f32 %v1364, %v1365
  %v1367 = vrot.slane %v1366, 1
  %v1368 = vadd.f32 %v1366, %v1367
  %v1369 = vsel %vm544, %v1084, 0.0
  %v1370 = vadd.f32 %v1081, %v1369
  %v1371 = vrot.slane %v1370, 4
  %v1372 = vadd.f32 %v1370, %v1371
  %v1373 = vrot.slane %v1372, 2
  %v1374 = vadd.f32 %v1372, %v1373
  %v1375 = vrot.slane %v1374, 1
  %v1376 = vadd.f32 %v1374, %v1375
  %v1377 = vsel %vm544, %v1090, 0.0
  %v1378 = vadd.f32 %v1087, %v1377
  %v1379 = vrot.slane %v1378, 4
  %v1380 = vadd.f32 %v1378, %v1379
  %v1381 = vrot.slane %v1380, 2
  %v1382 = vadd.f32 %v1380, %v1381
  %v1383 = vrot.slane %v1382, 1
  %v1384 = vadd.f32 %v1382, %v1383
  %v1385 = vsel %vm544, %v1096, 0.0
  %v1386 = vadd.f32 %v1093, %v1385
  %v1387 = vrot.slane %v1386, 4
  %v1388 = vadd.f32 %v1386, %v1387
  %v1389 = vrot.slane %v1388, 2
  %v1390 = vadd.f32 %v1388, %v1389
  %v1391 = vrot.slane %v1390, 1
  %v1392 = vadd.f32 %v1390, %v1391
  %v1393 = vsel %vm544, %v1102, 0.0
  %v1394 = vadd.f32 %v1099, %v1393
  %v1395 = vrot.slane %v1394, 4
  %v1396 = vadd.f32 %v1394, %v1395
  %v1397 = vrot.slane %v1396, 2
  %v1398 = vadd.f32 %v1396, %v1397
  %v1399 = vrot.slane %v1398, 1
  %v1400 = vadd.f32 %v1398, %v1399
  %v1401 = vsel %vm544, %v1108, 0.0
  %v1402 = vadd.f32 %v1105, %v1401
  %v1403 = vrot.slane %v1402, 4
  %v1404 = vadd.f32 %v1402, %v1403
  %v1405 = vrot.slane %v1404, 2
  %v1406 = vadd.f32 %v1404, %v1405
  %v1407 = vrot.slane %v1406, 1
  %v1408 = vadd.f32 %v1406, %v1407
  %v1409 = vsel %vm544, %v1114, 0.0
  %v1410 = vadd.f32 %v1111, %v1409
  %v1411 = vrot.slane %v1410, 4
  %v1412 = vadd.f32 %v1410, %v1411
  %v1413 = vrot.slane %v1412, 2
  %v1414 = vadd.f32 %v1412, %v1413
  %v1415 = vrot.slane %v1414, 1
  %v1416 = vadd.f32 %v1414, %v1415
  %v1417 = vsel %vm544, %v1120, 0.0
  %v1418 = vadd.f32 %v1117, %v1417
  %v1419 = vrot.slane %v1418, 4
  %v1420 = vadd.f32 %v1418, %v1419
  %v1421 = vrot.slane %v1420, 2
  %v1422 = vadd.f32 %v1420, %v1421
  %v1423 = vrot.slane %v1422, 1
  %v1424 = vadd.f32 %v1422, %v1423
  %v1425 = vsel %vm544, %v1126, 0.0
  %v1426 = vadd.f32 %v1123, %v1425
  %v1427 = vrot.slane %v1426, 4
  %v1428 = vadd.f32 %v1426, %v1427
  %v1429 = vrot.slane %v1428, 2
  %v1430 = vadd.f32 %v1428, %v1429
  %v1431 = vrot.slane %v1430, 1
  %v1432 = vadd.f32 %v1430, %v1431
  %v1433 = vsel %vm544, %v1132, 0.0
  %v1434 = vadd.f32 %v1129, %v1433
  %v1435 = vrot.slane %v1434, 4
  %v1436 = vadd.f32 %v1434, %v1435
  %v1437 = vrot.slane %v1436, 2
  %v1438 = vadd.f32 %v1436, %v1437
  %v1439 = vrot.slane %v1438, 1
  %v1440 = vadd.f32 %v1438, %v1439
  %v1441 = vsel %vm544, %v1138, 0.0
  %v1442 = vadd.f32 %v1135, %v1441
  %v1443 = vrot.slane %v1442, 4
  %v1444 = vadd.f32 %v1442, %v1443
  %v1445 = vrot.slane %v1444, 2
  %v1446 = vadd.f32 %v1444, %v1445
  %v1447 = vrot.slane %v1446, 1
  %v1448 = vadd.f32 %v1446, %v1447
  %v1449 = vsel %vm544, %v1144, 0.0
  %v1450 = vadd.f32 %v1141, %v1449
  %v1451 = vrot.slane %v1450, 4
  %v1452 = vadd.f32 %v1450, %v1451
  %v1453 = vrot.slane %v1452, 2
  %v1454 = vadd.f32 %v1452, %v1453
  %v1455 = vrot.slane %v1454, 1
  %v1456 = vadd.f32 %v1454, %v1455
  %v1457 = vsel %vm544, %v1150, 0.0
  %v1458 = vadd.f32 %v1147, %v1457
  %v1459 = vrot.slane %v1458, 4
  %v1460 = vadd.f32 %v1458, %v1459
  %v1461 = vrot.slane %v1460, 2
  %v1462 = vadd.f32 %v1460, %v1461
  %v1463 = vrot.slane %v1462, 1
  %v1464 = vadd.f32 %v1462, %v1463
  %v1465 = vsel %vm544, %v1156, 0.0
  %v1466 = vadd.f32 %v1153, %v1465
  %v1467 = vrot.slane %v1466, 4
  %v1468 = vadd.f32 %v1466, %v1467
  %v1469 = vrot.slane %v1468, 2
  %v1470 = vadd.f32 %v1468, %v1469
  %v1471 = vrot.slane %v1470, 1
  %v1472 = vadd.f32 %v1470, %v1471
  %v1473 = vsel %vm544, %v1162, 0.0
  %v1474 = vadd.f32 %v1159, %v1473
  %v1475 = vrot.slane %v1474, 4
  %v1476 = vadd.f32 %v1474, %v1475
  %v1477 = vrot.slane %v1476, 2
  %v1478 = vadd.f32 %v1476, %v1477
  %v1479 = vrot.slane %v1478, 1
  %v1480 = vadd.f32 %v1478, %v1479
  %v1481 = vsel %vm544, %v1168, 0.0
  %v1482 = vadd.f32 %v1165, %v1481
  %v1483 = vrot.slane %v1482, 4
  %v1484 = vadd.f32 %v1482, %v1483
  %v1485 = vrot.slane %v1484, 2
  %v1486 = vadd.f32 %v1484, %v1485
  %v1487 = vrot.slane %v1486, 1
  %v1488 = vadd.f32 %v1486, %v1487
  %v1489 = vsel %vm544, %v1174, 0.0
  %v1490 = vadd.f32 %v1171, %v1489
  %v1491 = vrot.slane %v1490, 4
  %v1492 = vadd.f32 %v1490, %v1491
  %v1493 = vrot.slane %v1492, 2
  %v1494 = vadd.f32 %v1492, %v1493
  %v1495 = vrot.slane %v1494, 1
  %v1496 = vadd.f32 %v1494, %v1495
  %v1497 = vsel %vm544, %v1180, 0.0
  %v1498 = vadd.f32 %v1177, %v1497
  %v1499 = vrot.slane %v1498, 4
  %v1500 = vadd.f32 %v1498, %v1499
  %v1501 = vrot.slane %v1500, 2
  %v1502 = vadd.f32 %v1500, %v1501
  %v1503 = vrot.slane %v1502, 1
  %v1504 = vadd.f32 %v1502, %v1503
  %v1505 = vsel %vm544, %v1186, 0.0
  %v1506 = vadd.f32 %v1183, %v1505
  %v1507 = vrot.slane %v1506, 4
  %v1508 = vadd.f32 %v1506, %v1507
  %v1509 = vrot.slane %v1508, 2
  %v1510 = vadd.f32 %v1508, %v1509
  %v1511 = vrot.slane %v1510, 1
  %v1512 = vadd.f32 %v1510, %v1511
  %v1513 = vsel %vm544, %v1192, 0.0
  %v1514 = vadd.f32 %v1189, %v1513
  %v1515 = vrot.slane %v1514, 4
  %v1516 = vadd.f32 %v1514, %v1515
  %v1517 = vrot.slane %v1516, 2
  %v1518 = vadd.f32 %v1516, %v1517
  %v1519 = vrot.slane %v1518, 1
  %v1520 = vadd.f32 %v1518, %v1519
  %v1521 = vsel %vm544, %v1198, 0.0
  %v1522 = vadd.f32 %v1195, %v1521
  %v1523 = vrot.slane %v1522, 4
  %v1524 = vadd.f32 %v1522, %v1523
  %v1525 = vrot.slane %v1524, 2
  %v1526 = vadd.f32 %v1524, %v1525
  %v1527 = vrot.slane %v1526, 1
  %v1528 = vadd.f32 %v1526, %v1527
  %v1529 = vsel %vm544, %v1204, 0.0
  %v1530 = vadd.f32 %v1201, %v1529
  %v1531 = vrot.slane %v1530, 4
  %v1532 = vadd.f32 %v1530, %v1531
  %v1533 = vrot.slane %v1532, 2
  %v1534 = vadd.f32 %v1532, %v1533
  %v1535 = vrot.slane %v1534, 1
  %v1536 = vadd.f32 %v1534, %v1535
  %v1537 = vsel %vm544, %v1210, 0.0
  %v1538 = vadd.f32 %v1207, %v1537
  %v1539 = vrot.slane %v1538, 4
  %v1540 = vadd.f32 %v1538, %v1539
  %v1541 = vrot.slane %v1540, 2
  %v1542 = vadd.f32 %v1540, %v1541
  %v1543 = vrot.slane %v1542, 1
  %v1544 = vadd.f32 %v1542, %v1543
  %v1545 = vsel %vm544, %v1216, 0.0
  %v1546 = vadd.f32 %v1213, %v1545
  %v1547 = vrot.slane %v1546, 4
  %v1548 = vadd.f32 %v1546, %v1547
  %v1549 = vrot.slane %v1548, 2
  %v1550 = vadd.f32 %v1548, %v1549
  %v1551 = vrot.slane %v1550, 1
  %v1552 = vadd.f32 %v1550, %v1551
  %v1553 = vsel %vm544, %v1222, 0.0
  %v1554 = vadd.f32 %v1219, %v1553
  %v1555 = vrot.slane %v1554, 4
  %v1556 = vadd.f32 %v1554, %v1555
  %v1557 = vrot.slane %v1556, 2
  %v1558 = vadd.f32 %v1556, %v1557
  %v1559 = vrot.slane %v1558, 1
  %v1560 = vadd.f32 %v1558, %v1559
  %v1561 = vsel %vm544, %v1228, 0.0
  %v1562 = vadd.f32 %v1225, %v1561
  %v1563 = vrot.slane %v1562, 4
  %v1564 = vadd.f32 %v1562, %v1563
  %v1565 = vrot.slane %v1564, 2
  %v1566 = vadd.f32 %v1564, %v1565
  %v1567 = vrot.slane %v1566, 1
  %v1568 = vadd.f32 %v1566, %v1567
  %v1569 = vsel %vm544, %v1234, 0.0
  %v1570 = vadd.f32 %v1231, %v1569
  %v1571 = vrot.slane %v1570, 4
  %v1572 = vadd.f32 %v1570, %v1571
  %v1573 = vrot.slane %v1572, 2
  %v1574 = vadd.f32 %v1572, %v1573
  %v1575 = vrot.slane %v1574, 1
  %v1576 = vadd.f32 %v1574, %v1575
  %v1577 = vsel %vm544, %v1240, 0.0
  %v1578 = vadd.f32 %v1237, %v1577
  %v1579 = vrot.slane %v1578, 4
  %v1580 = vadd.f32 %v1578, %v1579
  %v1581 = vrot.slane %v1580, 2
  %v1582 = vadd.f32 %v1580, %v1581
  %v1583 = vrot.slane %v1582, 1
  %v1584 = vadd.f32 %v1582, %v1583
  %v1585 = vsel %vm544, %v1246, 0.0
  %v1586 = vadd.f32 %v1243, %v1585
  %v1587 = vrot.slane %v1586, 4
  %v1588 = vadd.f32 %v1586, %v1587
  %v1589 = vrot.slane %v1588, 2
  %v1590 = vadd.f32 %v1588, %v1589
  %v1591 = vrot.slane %v1590, 1
  %v1592 = vadd.f32 %v1590, %v1591
  %v1593 = vsel %vm544, %v1252, 0.0
  %v1594 = vadd.f32 %v1249, %v1593
  %v1595 = vrot.slane %v1594, 4
  %v1596 = vadd.f32 %v1594, %v1595
  %v1597 = vrot.slane %v1596, 2
  %v1598 = vadd.f32 %v1596, %v1597
  %v1599 = vrot.slane %v1598, 1
  %v1600 = vadd.f32 %v1598, %v1599
  %v1601 = vsel %vm544, %v1258, 0.0
  %v1602 = vadd.f32 %v1255, %v1601
  %v1603 = vrot.slane %v1602, 4
  %v1604 = vadd.f32 %v1602, %v1603
  %v1605 = vrot.slane %v1604, 2
  %v1606 = vadd.f32 %v1604, %v1605
  %v1607 = vrot.slane %v1606, 1
  %v1608 = vadd.f32 %v1606, %v1607
  %v1609 = vsel %vm544, %v1264, 0.0
  %v1610 = vadd.f32 %v1261, %v1609
  %v1611 = vrot.slane %v1610, 4
  %v1612 = vadd.f32 %v1610, %v1611
  %v1613 = vrot.slane %v1612, 2
  %v1614 = vadd.f32 %v1612, %v1613
  %v1615 = vrot.slane %v1614, 1
  %v1616 = vadd.f32 %v1614, %v1615
  %v1617 = vsel %vm544, %v1270, 0.0
  %v1618 = vadd.f32 %v1267, %v1617
  %v1619 = vrot.slane %v1618, 4
  %v1620 = vadd.f32 %v1618, %v1619
  %v1621 = vrot.slane %v1620, 2
  %v1622 = vadd.f32 %v1620, %v1621
  %v1623 = vrot.slane %v1622, 1
  %v1624 = vadd.f32 %v1622, %v1623
  %v1625 = vsel %vm544, %v1276, 0.0
  %v1626 = vadd.f32 %v1273, %v1625
  %v1627 = vrot.slane %v1626, 4
  %v1628 = vadd.f32 %v1626, %v1627
  %v1629 = vrot.slane %v1628, 2
  %v1630 = vadd.f32 %v1628, %v1629
  %v1631 = vrot.slane %v1630, 1
  %v1632 = vadd.f32 %v1630, %v1631
  %v1633 = vsel %vm544, %v1282, 0.0
  %v1634 = vadd.f32 %v1279, %v1633
  %v1635 = vrot.slane %v1634, 4
  %v1636 = vadd.f32 %v1634, %v1635
  %v1637 = vrot.slane %v1636, 2
  %v1638 = vadd.f32 %v1636, %v1637
  %v1639 = vrot.slane %v1638, 1
  %v1640 = vadd.f32 %v1638, %v1639
  %v1641 = vsel %vm544, %v1288, 0.0
  %v1642 = vadd.f32 %v1285, %v1641
  %v1643 = vrot.slane %v1642, 4
  %v1644 = vadd.f32 %v1642, %v1643
  %v1645 = vrot.slane %v1644, 2
  %v1646 = vadd.f32 %v1644, %v1645
  %v1647 = vrot.slane %v1646, 1
  %v1648 = vadd.f32 %v1646, %v1647
  %v1649 = vsel %vm544, %v1294, 0.0
  %v1650 = vadd.f32 %v1291, %v1649
  %v1651 = vrot.slane %v1650, 4
  %v1652 = vadd.f32 %v1650, %v1651
  %v1653 = vrot.slane %v1652, 2
  %v1654 = vadd.f32 %v1652, %v1653
  %v1655 = vrot.slane %v1654, 1
  %v1656 = vadd.f32 %v1654, %v1655
  %v1657 = vsel %vm544, %v1300, 0.0
  %v1658 = vadd.f32 %v1297, %v1657
  %v1659 = vrot.slane %v1658, 4
  %v1660 = vadd.f32 %v1658, %v1659
  %v1661 = vrot.slane %v1660, 2
  %v1662 = vadd.f32 %v1660, %v1661
  %v1663 = vrot.slane %v1662, 1
  %v1664 = vadd.f32 %v1662, %v1663
  %v1665 = vsel %vm544, %v1306, 0.0
  %v1666 = vadd.f32 %v1303, %v1665
  %v1667 = vrot.slane %v1666, 4
  %v1668 = vadd.f32 %v1666, %v1667
  %v1669 = vrot.slane %v1668, 2
  %v1670 = vadd.f32 %v1668, %v1669
  %v1671 = vrot.slane %v1670, 1
  %v1672 = vadd.f32 %v1670, %v1671
  %v1673 = vsel %vm544, %v1312, 0.0
  %v1674 = vadd.f32 %v1309, %v1673
  %v1675 = vrot.slane %v1674, 4
  %v1676 = vadd.f32 %v1674, %v1675
  %v1677 = vrot.slane %v1676, 2
  %v1678 = vadd.f32 %v1676, %v1677
  %v1679 = vrot.slane %v1678, 1
  %v1680 = vadd.f32 %v1678, %v1679
  %v1681 = vsel %vm544, %v1318, 0.0
  %v1682 = vadd.f32 %v1315, %v1681
  %v1683 = vrot.slane %v1682, 4
  %v1684 = vadd.f32 %v1682, %v1683
  %v1685 = vrot.slane %v1684, 2
  %v1686 = vadd.f32 %v1684, %v1685
  %v1687 = vrot.slane %v1686, 1
  %v1688 = vadd.f32 %v1686, %v1687
  %v1689 = vsel %vm544, %v1324, 0.0
  %v1690 = vadd.f32 %v1321, %v1689
  %v1691 = vrot.slane %v1690, 4
  %v1692 = vadd.f32 %v1690, %v1691
  %v1693 = vrot.slane %v1692, 2
  %v1694 = vadd.f32 %v1692, %v1693
  %v1695 = vrot.slane %v1694, 1
  %v1696 = vadd.f32 %v1694, %v1695
  %v1697 = vsel %vm544, %v1330, 0.0
  %v1698 = vadd.f32 %v1327, %v1697
  %v1699 = vrot.slane %v1698, 4
  %v1700 = vadd.f32 %v1698, %v1699
  %v1701 = vrot.slane %v1700, 2
  %v1702 = vadd.f32 %v1700, %v1701
  %v1703 = vrot.slane %v1702, 1
  %v1704 = vadd.f32 %v1702, %v1703
  %v1705 = vsel %vm544, %v1336, 0.0
  %v1706 = vadd.f32 %v1333, %v1705
  %v1707 = vrot.slane %v1706, 4
  %v1708 = vadd.f32 %v1706, %v1707
  %v1709 = vrot.slane %v1708, 2
  %v1710 = vadd.f32 %v1708, %v1709
  %v1711 = vrot.slane %v1710, 1
  %v1712 = vadd.f32 %v1710, %v1711
  %v1713 = vsel %vm544, %v1342, 0.0
  %v1714 = vadd.f32 %v1339, %v1713
  %v1715 = vrot.slane %v1714, 4
  %v1716 = vadd.f32 %v1714, %v1715
  %v1717 = vrot.slane %v1716, 2
  %v1718 = vadd.f32 %v1716, %v1717
  %v1719 = vrot.slane %v1718, 1
  %v1720 = vadd.f32 %v1718, %v1719
  %v1721 = vsel %vm544, %v1348, 0.0
  %v1722 = vadd.f32 %v1345, %v1721
  %v1723 = vrot.slane %v1722, 4
  %v1724 = vadd.f32 %v1722, %v1723
  %v1725 = vrot.slane %v1724, 2
  %v1726 = vadd.f32 %v1724, %v1725
  %v1727 = vrot.slane %v1726, 1
  %v1728 = vadd.f32 %v1726, %v1727
  %v1729 = vsel %vm544, %v1354, 0.0
  %v1730 = vadd.f32 %v1351, %v1729
  %v1731 = vrot.slane %v1730, 4
  %v1732 = vadd.f32 %v1730, %v1731
  %v1733 = vrot.slane %v1732, 2
  %v1734 = vadd.f32 %v1732, %v1733
  %v1735 = vrot.slane %v1734, 1
  %v1736 = vadd.f32 %v1734, %v1735
  %v1737 = vsel %vm544, %v1360, 0.0
  %v1738 = vadd.f32 %v1357, %v1737
  %v1739 = vrot.slane %v1738, 4
  %v1740 = vadd.f32 %v1738, %v1739
  %v1741 = vrot.slane %v1740, 2
  %v1742 = vadd.f32 %v1740, %v1741
  %v1743 = vrot.slane %v1742, 1
  %v1744 = vadd.f32 %v1742, %v1743
  %v1745 = vadd.f32 %v1368, 0.0
  %v1746 = vadd.f32 %v1376, 0.0
  %v1747 = vadd.f32 %v1384, 0.0
  %v1748 = vadd.f32 %v1392, 0.0
  %v1749 = vadd.f32 %v1400, 0.0
  %v1750 = vadd.f32 %v1408, 0.0
  %v1751 = vadd.f32 %v1416, 0.0
  %v1752 = vadd.f32 %v1424, 0.0
  %v1753 = vadd.f32 %v1432, 0.0
  %v1754 = vadd.f32 %v1440, 0.0
  %v1755 = vadd.f32 %v1448, 0.0
  %v1756 = vadd.f32 %v1456, 0.0
  %v1757 = vadd.f32 %v1464, 0.0
  %v1758 = vadd.f32 %v1472, 0.0
  %v1759 = vadd.f32 %v1480, 0.0
  %v1760 = vadd.f32 %v1488, 0.0
  %v1761 = vadd.f32 %v1496, 0.0
  %v1762 = vadd.f32 %v1504, 0.0
  %v1763 = vadd.f32 %v1512, 0.0
  %v1764 = vadd.f32 %v1520, 0.0
  %v1765 = vadd.f32 %v1528, 0.0
  %v1766 = vadd.f32 %v1536, 0.0
  %v1767 = vadd.f32 %v1544, 0.0
  %v1768 = vadd.f32 %v1552, 0.0
  %v1769 = vadd.f32 %v1560, 0.0
  %v1770 = vadd.f32 %v1568, 0.0
  %v1771 = vadd.f32 %v1576, 0.0
  %v1772 = vadd.f32 %v1584, 0.0
  %v1773 = vadd.f32 %v1592, 0.0
  %v1774 = vadd.f32 %v1600, 0.0
  %v1775 = vadd.f32 %v1608, 0.0
  %v1776 = vadd.f32 %v1616, 0.0
  %v1777 = vadd.f32 %v1624, 0.0
  %v1778 = vadd.f32 %v1632, 0.0
  %v1779 = vadd.f32 %v1640, 0.0
  %v1780 = vadd.f32 %v1648, 0.0
  %v1781 = vadd.f32 %v1656, 0.0
  %v1782 = vadd.f32 %v1664, 0.0
  %v1783 = vadd.f32 %v1672, 0.0
  %v1784 = vadd.f32 %v1680, 0.0
  %v1785 = vadd.f32 %v1688, 0.0
  %v1786 = vadd.f32 %v1696, 0.0
  %v1787 = vadd.f32 %v1704, 0.0
  %v1788 = vadd.f32 %v1712, 0.0
  %v1789 = vadd.f32 %v1720, 0.0
  %v1790 = vadd.f32 %v1728, 0.0
  %v1791 = vadd.f32 %v1736, 0.0
  %v1792 = vadd.f32 %v1744, 0.0
  %v1793 = vmul.f32 %v929, 0.0051020407
  %v1794 = vmul.f32 %v930, 0.0051020407
  %v1795 = vmul.f32 %v931, 0.0051020407
  %v1796 = vmul.f32 %v932, 0.0051020407
  %v1797 = vmul.f32 %v933, 0.0051020407
  %v1798 = vmul.f32 %v934, 0.0051020407
  %v1799 = vmul.f32 %v935, 0.0051020407
  %v1800 = vmul.f32 %v936, 0.0051020407
  %v1801 = vmul.f32 %v937, 0.0051020407
  %v1802 = vmul.f32 %v938, 0.0051020407
  %v1803 = vmul.f32 %v939, 0.0051020407
  %v1804 = vmul.f32 %v940, 0.0051020407
  %v1805 = vmul.f32 %v941, 0.0051020407
  %v1806 = vmul.f32 %v942, 0.0051020407
  %v1807 = vmul.f32 %v943, 0.0051020407
  %v1808 = vmul.f32 %v944, 0.0051020407
  %v1809 = vmul.f32 %v945, 0.0051020407
  %v1810 = vmul.f32 %v946, 0.0051020407
  %v1811 = vmul.f32 %v947, 0.0051020407
  %v1812 = vmul.f32 %v948, 0.0051020407
  %v1813 = vmul.f32 %v949, 0.0051020407
  %v1814 = vmul.f32 %v950, 0.0051020407
  %v1815 = vmul.f32 %v951, 0.0051020407
  %v1816 = vmul.f32 %v952, 0.0051020407
  %v1817 = vmul.f32 %v953, 0.0051020407
  %v1818 = vmul.f32 %v954, 0.0051020407
  %v1819 = vmul.f32 %v955, 0.0051020407
  %v1820 = vmul.f32 %v956, 0.0051020407
  %v1821 = vmul.f32 %v957, 0.0051020407
  %v1822 = vmul.f32 %v958, 0.0051020407
  %v1823 = vmul.f32 %v959, 0.0051020407
  %v1824 = vmul.f32 %v960, 0.0051020407
  %v1825 = vmul.f32 %v961, 0.0051020407
  %v1826 = vmul.f32 %v962, 0.0051020407
  %v1827 = vmul.f32 %v963, 0.0051020407
  %v1828 = vmul.f32 %v964, 0.0051020407
  %v1829 = vmul.f32 %v965, 0.0051020407
  %v1830 = vmul.f32 %v966, 0.0051020407
  %v1831 = vmul.f32 %v967, 0.0051020407
  %v1832 = vmul.f32 %v968, 0.0051020407
  %v1833 = vmul.f32 %v969, 0.0051020407
  %v1834 = vmul.f32 %v970, 0.0051020407
  %v1835 = vmul.f32 %v971, 0.0051020407
  %v1836 = vmul.f32 %v972, 0.0051020407
  %v1837 = vmul.f32 %v973, 0.0051020407
  %v1838 = vmul.f32 %v974, 0.0051020407
  %v1839 = vmul.f32 %v975, 0.0051020407
  %v1840 = vmul.f32 %v976, 0.0051020407
  %v1841 = vmul.f32 %v1745, 0.0051020407
  %v1842 = vmul.f32 %v1746, 0.0051020407
  %v1843 = vmul.f32 %v1747, 0.0051020407
  %v1844 = vmul.f32 %v1748, 0.0051020407
  %v1845 = vmul.f32 %v1749, 0.0051020407
  %v1846 = vmul.f32 %v1750, 0.0051020407
  %v1847 = vmul.f32 %v1751, 0.0051020407
  %v1848 = vmul.f32 %v1752, 0.0051020407
  %v1849 = vmul.f32 %v1753, 0.0051020407
  %v1850 = vmul.f32 %v1754, 0.0051020407
  %v1851 = vmul.f32 %v1755, 0.0051020407
  %v1852 = vmul.f32 %v1756, 0.0051020407
  %v1853 = vmul.f32 %v1757, 0.0051020407
  %v1854 = vmul.f32 %v1758, 0.0051020407
  %v1855 = vmul.f32 %v1759, 0.0051020407
  %v1856 = vmul.f32 %v1760, 0.0051020407
  %v1857 = vmul.f32 %v1761, 0.0051020407
  %v1858 = vmul.f32 %v1762, 0.0051020407
  %v1859 = vmul.f32 %v1763, 0.0051020407
  %v1860 = vmul.f32 %v1764, 0.0051020407
  %v1861 = vmul.f32 %v1765, 0.0051020407
  %v1862 = vmul.f32 %v1766, 0.0051020407
  %v1863 = vmul.f32 %v1767, 0.0051020407
  %v1864 = vmul.f32 %v1768, 0.0051020407
  %v1865 = vmul.f32 %v1769, 0.0051020407
  %v1866 = vmul.f32 %v1770, 0.0051020407
  %v1867 = vmul.f32 %v1771, 0.0051020407
  %v1868 = vmul.f32 %v1772, 0.0051020407
  %v1869 = vmul.f32 %v1773, 0.0051020407
  %v1870 = vmul.f32 %v1774, 0.0051020407
  %v1871 = vmul.f32 %v1775, 0.0051020407
  %v1872 = vmul.f32 %v1776, 0.0051020407
  %v1873 = vmul.f32 %v1777, 0.0051020407
  %v1874 = vmul.f32 %v1778, 0.0051020407
  %v1875 = vmul.f32 %v1779, 0.0051020407
  %v1876 = vmul.f32 %v1780, 0.0051020407
  %v1877 = vmul.f32 %v1781, 0.0051020407
  %v1878 = vmul.f32 %v1782, 0.0051020407
  %v1879 = vmul.f32 %v1783, 0.0051020407
  %v1880 = vmul.f32 %v1784, 0.0051020407
  %v1881 = vmul.f32 %v1785, 0.0051020407
  %v1882 = vmul.f32 %v1786, 0.0051020407
  %v1883 = vmul.f32 %v1787, 0.0051020407
  %v1884 = vmul.f32 %v1788, 0.0051020407
  %v1885 = vmul.f32 %v1789, 0.0051020407
  %v1886 = vmul.f32 %v1790, 0.0051020407
  %v1887 = vmul.f32 %v1791, 0.0051020407
  %v1888 = vmul.f32 %v1792, 0.0051020407
  %v1889 = vmul.f32 %v1793, %v1793
  %v1890 = vmul.f32 %v1794, %v1794
  %v1891 = vmul.f32 %v1795, %v1795
  %v1892 = vmul.f32 %v1796, %v1796
  %v1893 = vmul.f32 %v1797, %v1797
  %v1894 = vmul.f32 %v1798, %v1798
  %v1895 = vmul.f32 %v1799, %v1799
  %v1896 = vmul.f32 %v1800, %v1800
  %v1897 = vmul.f32 %v1801, %v1801
  %v1898 = vmul.f32 %v1802, %v1802
  %v1899 = vmul.f32 %v1803, %v1803
  %v1900 = vmul.f32 %v1804, %v1804
  %v1901 = vmul.f32 %v1805, %v1805
  %v1902 = vmul.f32 %v1806, %v1806
  %v1903 = vmul.f32 %v1807, %v1807
  %v1904 = vmul.f32 %v1808, %v1808
  %v1905 = vmul.f32 %v1809, %v1809
  %v1906 = vmul.f32 %v1810, %v1810
  %v1907 = vmul.f32 %v1811, %v1811
  %v1908 = vmul.f32 %v1812, %v1812
  %v1909 = vmul.f32 %v1813, %v1813
  %v1910 = vmul.f32 %v1814, %v1814
  %v1911 = vmul.f32 %v1815, %v1815
  %v1912 = vmul.f32 %v1816, %v1816
  %v1913 = vmul.f32 %v1817, %v1817
  %v1914 = vmul.f32 %v1818, %v1818
  %v1915 = vmul.f32 %v1819, %v1819
  %v1916 = vmul.f32 %v1820, %v1820
  %v1917 = vmul.f32 %v1821, %v1821
  %v1918 = vmul.f32 %v1822, %v1822
  %v1919 = vmul.f32 %v1823, %v1823
  %v1920 = vmul.f32 %v1824, %v1824
  %v1921 = vmul.f32 %v1825, %v1825
  %v1922 = vmul.f32 %v1826, %v1826
  %v1923 = vmul.f32 %v1827, %v1827
  %v1924 = vmul.f32 %v1828, %v1828
  %v1925 = vmul.f32 %v1829, %v1829
  %v1926 = vmul.f32 %v1830, %v1830
  %v1927 = vmul.f32 %v1831, %v1831
  %v1928 = vmul.f32 %v1832, %v1832
  %v1929 = vmul.f32 %v1833, %v1833
  %v1930 = vmul.f32 %v1834, %v1834
  %v1931 = vmul.f32 %v1835, %v1835
  %v1932 = vmul.f32 %v1836, %v1836
  %v1933 = vmul.f32 %v1837, %v1837
  %v1934 = vmul.f32 %v1838, %v1838
  %v1935 = vmul.f32 %v1839, %v1839
  %v1936 = vmul.f32 %v1840, %v1840
  %v1937 = vsub.f32 %v1841, %v1889
  %v1938 = vsub.f32 %v1842, %v1890
  %v1939 = vsub.f32 %v1843, %v1891
  %v1940 = vsub.f32 %v1844, %v1892
  %v1941 = vsub.f32 %v1845, %v1893
  %v1942 = vsub.f32 %v1846, %v1894
  %v1943 = vsub.f32 %v1847, %v1895
  %v1944 = vsub.f32 %v1848, %v1896
  %v1945 = vsub.f32 %v1849, %v1897
  %v1946 = vsub.f32 %v1850, %v1898
  %v1947 = vsub.f32 %v1851, %v1899
  %v1948 = vsub.f32 %v1852, %v1900
  %v1949 = vsub.f32 %v1853, %v1901
  %v1950 = vsub.f32 %v1854, %v1902
  %v1951 = vsub.f32 %v1855, %v1903
  %v1952 = vsub.f32 %v1856, %v1904
  %v1953 = vsub.f32 %v1857, %v1905
  %v1954 = vsub.f32 %v1858, %v1906
  %v1955 = vsub.f32 %v1859, %v1907
  %v1956 = vsub.f32 %v1860, %v1908
  %v1957 = vsub.f32 %v1861, %v1909
  %v1958 = vsub.f32 %v1862, %v1910
  %v1959 = vsub.f32 %v1863, %v1911
  %v1960 = vsub.f32 %v1864, %v1912
  %v1961 = vsub.f32 %v1865, %v1913
  %v1962 = vsub.f32 %v1866, %v1914
  %v1963 = vsub.f32 %v1867, %v1915
  %v1964 = vsub.f32 %v1868, %v1916
  %v1965 = vsub.f32 %v1869, %v1917
  %v1966 = vsub.f32 %v1870, %v1918
  %v1967 = vsub.f32 %v1871, %v1919
  %v1968 = vsub.f32 %v1872, %v1920
  %v1969 = vsub.f32 %v1873, %v1921
  %v1970 = vsub.f32 %v1874, %v1922
  %v1971 = vsub.f32 %v1875, %v1923
  %v1972 = vsub.f32 %v1876, %v1924
  %v1973 = vsub.f32 %v1877, %v1925
  %v1974 = vsub.f32 %v1878, %v1926
  %v1975 = vsub.f32 %v1879, %v1927
  %v1976 = vsub.f32 %v1880, %v1928
  %v1977 = vsub.f32 %v1881, %v1929
  %v1978 = vsub.f32 %v1882, %v1930
  %v1979 = vsub.f32 %v1883, %v1931
  %v1980 = vsub.f32 %v1884, %v1932
  %v1981 = vsub.f32 %v1885, %v1933
  %v1982 = vsub.f32 %v1886, %v1934
  %v1983 = vsub.f32 %v1887, %v1935
  %v1984 = vsub.f32 %v1888, %v1936
  %v1985 = vmax.f32 %v1937, 0.0
  %v1986 = vmax.f32 %v1938, 0.0
  %v1987 = vmax.f32 %v1939, 0.0
  %v1988 = vmax.f32 %v1940, 0.0
  %v1989 = vmax.f32 %v1941, 0.0
  %v1990 = vmax.f32 %v1942, 0.0
  %v1991 = vmax.f32 %v1943, 0.0
  %v1992 = vmax.f32 %v1944, 0.0
  %v1993 = vmax.f32 %v1945, 0.0
  %v1994 = vmax.f32 %v1946, 0.0
  %v1995 = vmax.f32 %v1947, 0.0
  %v1996 = vmax.f32 %v1948, 0.0
  %v1997 = vmax.f32 %v1949, 0.0
  %v1998 = vmax.f32 %v1950, 0.0
  %v1999 = vmax.f32 %v1951, 0.0
  %v2000 = vmax.f32 %v1952, 0.0
  %v2001 = vmax.f32 %v1953, 0.0
  %v2002 = vmax.f32 %v1954, 0.0
  %v2003 = vmax.f32 %v1955, 0.0
  %v2004 = vmax.f32 %v1956, 0.0
  %v2005 = vmax.f32 %v1957, 0.0
  %v2006 = vmax.f32 %v1958, 0.0
  %v2007 = vmax.f32 %v1959, 0.0
  %v2008 = vmax.f32 %v1960, 0.0
  %v2009 = vmax.f32 %v1961, 0.0
  %v2010 = vmax.f32 %v1962, 0.0
  %v2011 = vmax.f32 %v1963, 0.0
  %v2012 = vmax.f32 %v1964, 0.0
  %v2013 = vmax.f32 %v1965, 0.0
  %v2014 = vmax.f32 %v1966, 0.0
  %v2015 = vmax.f32 %v1967, 0.0
  %v2016 = vmax.f32 %v1968, 0.0
  %v2017 = vmax.f32 %v1969, 0.0
  %v2018 = vmax.f32 %v1970, 0.0
  %v2019 = vmax.f32 %v1971, 0.0
  %v2020 = vmax.f32 %v1972, 0.0
  %v2021 = vmax.f32 %v1973, 0.0
  %v2022 = vmax.f32 %v1974, 0.0
  %v2023 = vmax.f32 %v1975, 0.0
  %v2024 = vmax.f32 %v1976, 0.0
  %v2025 = vmax.f32 %v1977, 0.0
  %v2026 = vmax.f32 %v1978, 0.0
  %v2027 = vmax.f32 %v1979, 0.0
  %v2028 = vmax.f32 %v1980, 0.0
  %v2029 = vmax.f32 %v1981, 0.0
  %v2030 = vmax.f32 %v1982, 0.0
  %v2031 = vmax.f32 %v1983, 0.0
  %v2032 = vmax.f32 %v1984, 0.0
  %v2033 = vadd.f32 %v1985, 0.001
  %v2034 = vadd.f32 %v1986, 0.001
  %v2035 = vadd.f32 %v1987, 0.001
  %v2036 = vadd.f32 %v1988, 0.001
  %v2037 = vadd.f32 %v1989, 0.001
  %v2038 = vadd.f32 %v1990, 0.001
  %v2039 = vadd.f32 %v1991, 0.001
  %v2040 = vadd.f32 %v1992, 0.001
  %v2041 = vadd.f32 %v1993, 0.001
  %v2042 = vadd.f32 %v1994, 0.001
  %v2043 = vadd.f32 %v1995, 0.001
  %v2044 = vadd.f32 %v1996, 0.001
  %v2045 = vadd.f32 %v1997, 0.001
  %v2046 = vadd.f32 %v1998, 0.001
  %v2047 = vadd.f32 %v1999, 0.001
  %v2048 = vadd.f32 %v2000, 0.001
  %v2049 = vadd.f32 %v2001, 0.001
  %v2050 = vadd.f32 %v2002, 0.001
  %v2051 = vadd.f32 %v2003, 0.001
  %v2052 = vadd.f32 %v2004, 0.001
  %v2053 = vadd.f32 %v2005, 0.001
  %v2054 = vadd.f32 %v2006, 0.001
  %v2055 = vadd.f32 %v2007, 0.001
  %v2056 = vadd.f32 %v2008, 0.001
  %v2057 = vadd.f32 %v2009, 0.001
  %v2058 = vadd.f32 %v2010, 0.001
  %v2059 = vadd.f32 %v2011, 0.001
  %v2060 = vadd.f32 %v2012, 0.001
  %v2061 = vadd.f32 %v2013, 0.001
  %v2062 = vadd.f32 %v2014, 0.001
  %v2063 = vadd.f32 %v2015, 0.001
  %v2064 = vadd.f32 %v2016, 0.001
  %v2065 = vadd.f32 %v2017, 0.001
  %v2066 = vadd.f32 %v2018, 0.001
  %v2067 = vadd.f32 %v2019, 0.001
  %v2068 = vadd.f32 %v2020, 0.001
  %v2069 = vadd.f32 %v2021, 0.001
  %v2070 = vadd.f32 %v2022, 0.001
  %v2071 = vadd.f32 %v2023, 0.001
  %v2072 = vadd.f32 %v2024, 0.001
  %v2073 = vadd.f32 %v2025, 0.001
  %v2074 = vadd.f32 %v2026, 0.001
  %v2075 = vadd.f32 %v2027, 0.001
  %v2076 = vadd.f32 %v2028, 0.001
  %v2077 = vadd.f32 %v2029, 0.001
  %v2078 = vadd.f32 %v2030, 0.001
  %v2079 = vadd.f32 %v2031, 0.001
  %v2080 = vadd.f32 %v2032, 0.001
  %v2081 = vrsqrt.pop %v2033
  %v2082 = vrsqrt.pop %v2034
  %v2083 = vrsqrt.pop %v2035
  %v2084 = vrsqrt.pop %v2036
  %v2085 = vrsqrt.pop %v2037
  %v2086 = vrsqrt.pop %v2038
  %v2087 = vrsqrt.pop %v2039
  %v2088 = vrsqrt.pop %v2040
  %v2089 = vrsqrt.pop %v2041
  %v2090 = vrsqrt.pop %v2042
  %v2091 = vrsqrt.pop %v2043
  %v2092 = vrsqrt.pop %v2044
  %v2093 = vrsqrt.pop %v2045
  %v2094 = vrsqrt.pop %v2046
  %v2095 = vrsqrt.pop %v2047
  %v2096 = vrsqrt.pop %v2048
  %v2097 = vrsqrt.pop %v2049
  %v2098 = vrsqrt.pop %v2050
  %v2099 = vrsqrt.pop %v2051
  %v2100 = vrsqrt.pop %v2052
  %v2101 = vrsqrt.pop %v2053
  %v2102 = vrsqrt.pop %v2054
  %v2103 = vrsqrt.pop %v2055
  %v2104 = vrsqrt.pop %v2056
  %v2105 = vrsqrt.pop %v2057
  %v2106 = vrsqrt.pop %v2058
  %v2107 = vrsqrt.pop %v2059
  %v2108 = vrsqrt.pop %v2060
  %v2109 = vrsqrt.pop %v2061
  %v2110 = vrsqrt.pop %v2062
  %v2111 = vrsqrt.pop %v2063
  %v2112 = vrsqrt.pop %v2064
  %v2113 = vrsqrt.pop %v2065
  %v2114 = vrsqrt.pop %v2066
  %v2115 = vrsqrt.pop %v2067
  %v2116 = vrsqrt.pop %v2068
  %v2117 = vrsqrt.pop %v2069
  %v2118 = vrsqrt.pop %v2070
  %v2119 = vrsqrt.pop %v2071
  %v2120 = vrsqrt.pop %v2072
  %v2121 = vrsqrt.pop %v2073
  %v2122 = vrsqrt.pop %v2074
  %v2123 = vrsqrt.pop %v2075
  %v2124 = vrsqrt.pop %v2076
  %v2125 = vrsqrt.pop %v2077
  %v2126 = vrsqrt.pop %v2078
  %v2127 = vrsqrt.pop %v2079
  %v2128 = vrsqrt.pop %v2080
  %v2129 = vmul.f32 %v206, %v2081
  %v2130 = vmul.f32 %v207, %v2082
  %v2131 = vmul.f32 %v208, %v2083
  %v2132 = vmul.f32 %v209, %v2084
  %v2133 = vmul.f32 %v210, %v2085
  %v2134 = vmul.f32 %v211, %v2086
  %v2135 = vmul.f32 %v212, %v2087
  %v2136 = vmul.f32 %v213, %v2088
  %v2137 = vmul.f32 %v214, %v2089
  %v2138 = vmul.f32 %v215, %v2090
  %v2139 = vmul.f32 %v216, %v2091
  %v2140 = vmul.f32 %v217, %v2092
  %v2141 = vmul.f32 %v218, %v2093
  %v2142 = vmul.f32 %v219, %v2094
  %v2143 = vmul.f32 %v220, %v2095
  %v2144 = vmul.f32 %v221, %v2096
  %v2145 = vmul.f32 %v222, %v2097
  %v2146 = vmul.f32 %v223, %v2098
  %v2147 = vmul.f32 %v224, %v2099
  %v2148 = vmul.f32 %v225, %v2100
  %v2149 = vmul.f32 %v226, %v2101
  %v2150 = vmul.f32 %v227, %v2102
  %v2151 = vmul.f32 %v228, %v2103
  %v2152 = vmul.f32 %v229, %v2104
  %v2153 = vmul.f32 %v230, %v2105
  %v2154 = vmul.f32 %v231, %v2106
  %v2155 = vmul.f32 %v232, %v2107
  %v2156 = vmul.f32 %v233, %v2108
  %v2157 = vmul.f32 %v234, %v2109
  %v2158 = vmul.f32 %v235, %v2110
  %v2159 = vmul.f32 %v236, %v2111
  %v2160 = vmul.f32 %v237, %v2112
  %v2161 = vmul.f32 %v238, %v2113
  %v2162 = vmul.f32 %v239, %v2114
  %v2163 = vmul.f32 %v240, %v2115
  %v2164 = vmul.f32 %v241, %v2116
  %v2165 = vmul.f32 %v242, %v2117
  %v2166 = vmul.f32 %v243, %v2118
  %v2167 = vmul.f32 %v244, %v2119
  %v2168 = vmul.f32 %v245, %v2120
  %v2169 = vmul.f32 %v246, %v2121
  %v2170 = vmul.f32 %v247, %v2122
  %v2171 = vmul.f32 %v248, %v2123
  %v2172 = vmul.f32 %v249, %v2124
  %v2173 = vmul.f32 %v250, %v2125
  %v2174 = vmul.f32 %v251, %v2126
  %v2175 = vmul.f32 %v252, %v2127
  %v2176 = vmul.f32 %v253, %v2128
  %v2177 = vmul.f32 %v1793, %v2129
  %v2178 = vmul.f32 %v1794, %v2130
  %v2179 = vmul.f32 %v1795, %v2131
  %v2180 = vmul.f32 %v1796, %v2132
  %v2181 = vmul.f32 %v1797, %v2133
  %v2182 = vmul.f32 %v1798, %v2134
  %v2183 = vmul.f32 %v1799, %v2135
  %v2184 = vmul.f32 %v1800, %v2136
  %v2185 = vmul.f32 %v1801, %v2137
  %v2186 = vmul.f32 %v1802, %v2138
  %v2187 = vmul.f32 %v1803, %v2139
  %v2188 = vmul.f32 %v1804, %v2140
  %v2189 = vmul.f32 %v1805, %v2141
  %v2190 = vmul.f32 %v1806, %v2142
  %v2191 = vmul.f32 %v1807, %v2143
  %v2192 = vmul.f32 %v1808, %v2144
  %v2193 = vmul.f32 %v1809, %v2145
  %v2194 = vmul.f32 %v1810, %v2146
  %v2195 = vmul.f32 %v1811, %v2147
  %v2196 = vmul.f32 %v1812, %v2148
  %v2197 = vmul.f32 %v1813, %v2149
  %v2198 = vmul.f32 %v1814, %v2150
  %v2199 = vmul.f32 %v1815, %v2151
  %v2200 = vmul.f32 %v1816, %v2152
  %v2201 = vmul.f32 %v1817, %v2153
  %v2202 = vmul.f32 %v1818, %v2154
  %v2203 = vmul.f32 %v1819, %v2155
  %v2204 = vmul.f32 %v1820, %v2156
  %v2205 = vmul.f32 %v1821, %v2157
  %v2206 = vmul.f32 %v1822, %v2158
  %v2207 = vmul.f32 %v1823, %v2159
  %v2208 = vmul.f32 %v1824, %v2160
  %v2209 = vmul.f32 %v1825, %v2161
  %v2210 = vmul.f32 %v1826, %v2162
  %v2211 = vmul.f32 %v1827, %v2163
  %v2212 = vmul.f32 %v1828, %v2164
  %v2213 = vmul.f32 %v1829, %v2165
  %v2214 = vmul.f32 %v1830, %v2166
  %v2215 = vmul.f32 %v1831, %v2167
  %v2216 = vmul.f32 %v1832, %v2168
  %v2217 = vmul.f32 %v1833, %v2169
  %v2218 = vmul.f32 %v1834, %v2170
  %v2219 = vmul.f32 %v1835, %v2171
  %v2220 = vmul.f32 %v1836, %v2172
  %v2221 = vmul.f32 %v1837, %v2173
  %v2222 = vmul.f32 %v1838, %v2174
  %v2223 = vmul.f32 %v1839, %v2175
  %v2224 = vmul.f32 %v1840, %v2176
  %2273 = vrot.lane.b32.xlu0 %v2177, 1
  %v2274 = vpop.permute.xlu0 %2273
  %2275 = vrot.lane.b32.xlu0 %v2178, 1
  %v2276 = vpop.permute.xlu0 %2275
  %2277 = vrot.lane.b32.xlu0 %v2179, 1
  %v2278 = vpop.permute.xlu0 %2277
  %2279 = vrot.lane.b32.xlu0 %v2180, 1
  %v2280 = vpop.permute.xlu0 %2279
  %2281 = vrot.lane.b32.xlu0 %v2181, 1
  %v2282 = vpop.permute.xlu0 %2281
  %2283 = vrot.lane.b32.xlu0 %v2182, 1
  %v2284 = vpop.permute.xlu0 %2283
  %2285 = vrot.lane.b32.xlu0 %v2183, 1
  %v2286 = vpop.permute.xlu0 %2285
  %2287 = vrot.lane.b32.xlu0 %v2184, 1
  %v2288 = vpop.permute.xlu0 %2287
  %2289 = vrot.lane.b32.xlu0 %v2185, 1
  %v2290 = vpop.permute.xlu0 %2289
  %2291 = vrot.lane.b32.xlu0 %v2186, 1
  %v2292 = vpop.permute.xlu0 %2291
  %2293 = vrot.lane.b32.xlu0 %v2187, 1
  %v2294 = vpop.permute.xlu0 %2293
  %2295 = vrot.lane.b32.xlu0 %v2188, 1
  %v2296 = vpop.permute.xlu0 %2295
  %2297 = vrot.lane.b32.xlu0 %v2189, 1
  %v2298 = vpop.permute.xlu0 %2297
  %2299 = vrot.lane.b32.xlu0 %v2190, 1
  %v2300 = vpop.permute.xlu0 %2299
  %2301 = vrot.lane.b32.xlu0 %v2191, 1
  %v2302 = vpop.permute.xlu0 %2301
  %2303 = vrot.lane.b32.xlu0 %v2192, 1
  %v2304 = vpop.permute.xlu0 %2303
  %2305 = vrot.lane.b32.xlu0 %v2193, 1
  %v2306 = vpop.permute.xlu0 %2305
  %2307 = vrot.lane.b32.xlu0 %v2194, 1
  %v2308 = vpop.permute.xlu0 %2307
  %2309 = vrot.lane.b32.xlu0 %v2195, 1
  %v2310 = vpop.permute.xlu0 %2309
  %2311 = vrot.lane.b32.xlu0 %v2196, 1
  %v2312 = vpop.permute.xlu0 %2311
  %2313 = vrot.lane.b32.xlu0 %v2197, 1
  %v2314 = vpop.permute.xlu0 %2313
  %2315 = vrot.lane.b32.xlu0 %v2198, 1
  %v2316 = vpop.permute.xlu0 %2315
  %2317 = vrot.lane.b32.xlu0 %v2199, 1
  %v2318 = vpop.permute.xlu0 %2317
  %2319 = vrot.lane.b32.xlu0 %v2200, 1
  %v2320 = vpop.permute.xlu0 %2319
  %2321 = vrot.lane.b32.xlu0 %v2201, 1
  %v2322 = vpop.permute.xlu0 %2321
  %2323 = vrot.lane.b32.xlu0 %v2202, 1
  %v2324 = vpop.permute.xlu0 %2323
  %2325 = vrot.lane.b32.xlu0 %v2203, 1
  %v2326 = vpop.permute.xlu0 %2325
  %2327 = vrot.lane.b32.xlu0 %v2204, 1
  %v2328 = vpop.permute.xlu0 %2327
  %2329 = vrot.lane.b32.xlu0 %v2205, 1
  %v2330 = vpop.permute.xlu0 %2329
  %2331 = vrot.lane.b32.xlu0 %v2206, 1
  %v2332 = vpop.permute.xlu0 %2331
  %2333 = vrot.lane.b32.xlu0 %v2207, 1
  %v2334 = vpop.permute.xlu0 %2333
  %2335 = vrot.lane.b32.xlu0 %v2208, 1
  %v2336 = vpop.permute.xlu0 %2335
  %2337 = vrot.lane.b32.xlu0 %v2209, 1
  %v2338 = vpop.permute.xlu0 %2337
  %2339 = vrot.lane.b32.xlu0 %v2210, 1
  %v2340 = vpop.permute.xlu0 %2339
  %2341 = vrot.lane.b32.xlu0 %v2211, 1
  %v2342 = vpop.permute.xlu0 %2341
  %2343 = vrot.lane.b32.xlu0 %v2212, 1
  %v2344 = vpop.permute.xlu0 %2343
  %2345 = vrot.lane.b32.xlu0 %v2213, 1
  %v2346 = vpop.permute.xlu0 %2345
  %2347 = vrot.lane.b32.xlu0 %v2214, 1
  %v2348 = vpop.permute.xlu0 %2347
  %2349 = vrot.lane.b32.xlu0 %v2215, 1
  %v2350 = vpop.permute.xlu0 %2349
  %2351 = vrot.lane.b32.xlu0 %v2216, 1
  %v2352 = vpop.permute.xlu0 %2351
  %2353 = vrot.lane.b32.xlu0 %v2217, 1
  %v2354 = vpop.permute.xlu0 %2353
  %2355 = vrot.lane.b32.xlu0 %v2218, 1
  %v2356 = vpop.permute.xlu0 %2355
  %2357 = vrot.lane.b32.xlu0 %v2219, 1
  %v2358 = vpop.permute.xlu0 %2357
  %2359 = vrot.lane.b32.xlu0 %v2220, 1
  %v2360 = vpop.permute.xlu0 %2359
  %2361 = vrot.lane.b32.xlu0 %v2221, 1
  %v2362 = vpop.permute.xlu0 %2361
  %2363 = vrot.lane.b32.xlu0 %v2222, 1
  %v2364 = vpop.permute.xlu0 %2363
  %2365 = vrot.lane.b32.xlu0 %v2223, 1
  %v2366 = vpop.permute.xlu0 %2365
  %2367 = vrot.lane.b32.xlu0 %v2224, 1
  %v2368 = vpop.permute.xlu0 %2367
  %v2417 = vsub.f32 %v206, %v2274
  %v2418 = vsub.f32 %v207, %v2276
  %v2419 = vsub.f32 %v208, %v2278
  %v2420 = vsub.f32 %v209, %v2280
  %v2421 = vsub.f32 %v210, %v2282
  %v2422 = vsub.f32 %v211, %v2284
  %v2423 = vsub.f32 %v212, %v2286
  %v2424 = vsub.f32 %v213, %v2288
  %v2425 = vsub.f32 %v214, %v2290
  %v2426 = vsub.f32 %v215, %v2292
  %v2427 = vsub.f32 %v216, %v2294
  %v2428 = vsub.f32 %v217, %v2296
  %v2429 = vsub.f32 %v218, %v2298
  %v2430 = vsub.f32 %v219, %v2300
  %v2431 = vsub.f32 %v220, %v2302
  %v2432 = vsub.f32 %v221, %v2304
  %v2433 = vsub.f32 %v222, %v2306
  %v2434 = vsub.f32 %v223, %v2308
  %v2435 = vsub.f32 %v224, %v2310
  %v2436 = vsub.f32 %v225, %v2312
  %v2437 = vsub.f32 %v226, %v2314
  %v2438 = vsub.f32 %v227, %v2316
  %v2439 = vsub.f32 %v228, %v2318
  %v2440 = vsub.f32 %v229, %v2320
  %v2441 = vsub.f32 %v230, %v2322
  %v2442 = vsub.f32 %v231, %v2324
  %v2443 = vsub.f32 %v232, %v2326
  %v2444 = vsub.f32 %v233, %v2328
  %v2445 = vsub.f32 %v234, %v2330
  %v2446 = vsub.f32 %v235, %v2332
  %v2447 = vsub.f32 %v236, %v2334
  %v2448 = vsub.f32 %v237, %v2336
  %v2449 = vsub.f32 %v238, %v2338
  %v2450 = vsub.f32 %v239, %v2340
  %v2451 = vsub.f32 %v240, %v2342
  %v2452 = vsub.f32 %v241, %v2344
  %v2453 = vsub.f32 %v242, %v2346
  %v2454 = vsub.f32 %v243, %v2348
  %v2455 = vsub.f32 %v244, %v2350
  %v2456 = vsub.f32 %v245, %v2352
  %v2457 = vsub.f32 %v246, %v2354
  %v2458 = vsub.f32 %v247, %v2356
  %v2459 = vsub.f32 %v248, %v2358
  %v2460 = vsub.f32 %v249, %v2360
  %v2461 = vsub.f32 %v250, %v2362
  %v2462 = vsub.f32 %v251, %v2364
  %v2463 = vsub.f32 %v252, %v2366
  %v2464 = vsub.f32 %v253, %v2368
  %v2513 = vlaneseq
  %v2514 = vshrl.u32 %v2513, 7
  %v2515 = vsub.s32 0, %v2514
  %v2516 = vrot.slane %v2129, %v2515
  %v2517 = vlaneseq
  %v2518 = vshrl.u32 %v2517, 7
  %v2519 = vsub.s32 0, %v2518
  %v2520 = vrot.slane %v2130, %v2519
  %v2521 = vlaneseq
  %v2522 = vshrl.u32 %v2521, 7
  %v2523 = vsub.s32 0, %v2522
  %v2524 = vrot.slane %v2131, %v2523
  %v2525 = vlaneseq
  %v2526 = vshrl.u32 %v2525, 7
  %v2527 = vsub.s32 0, %v2526
  %v2528 = vrot.slane %v2132, %v2527
  %v2529 = vlaneseq
  %v2530 = vshrl.u32 %v2529, 7
  %v2531 = vsub.s32 0, %v2530
  %v2532 = vrot.slane %v2133, %v2531
  %v2533 = vlaneseq
  %v2534 = vshrl.u32 %v2533, 7
  %v2535 = vsub.s32 0, %v2534
  %v2536 = vrot.slane %v2134, %v2535
  %v2537 = vlaneseq
  %v2538 = vshrl.u32 %v2537, 7
  %v2539 = vsub.s32 0, %v2538
  %v2540 = vrot.slane %v2135, %v2539
  %v2541 = vlaneseq
  %v2542 = vshrl.u32 %v2541, 7
  %v2543 = vsub.s32 0, %v2542
  %v2544 = vrot.slane %v2136, %v2543
  %v2545 = vlaneseq
  %v2546 = vshrl.u32 %v2545, 7
  %v2547 = vsub.s32 0, %v2546
  %v2548 = vrot.slane %v2137, %v2547
  %v2549 = vlaneseq
  %v2550 = vshrl.u32 %v2549, 7
  %v2551 = vsub.s32 0, %v2550
  %v2552 = vrot.slane %v2138, %v2551
  %v2553 = vlaneseq
  %v2554 = vshrl.u32 %v2553, 7
  %v2555 = vsub.s32 0, %v2554
  %v2556 = vrot.slane %v2139, %v2555
  %v2557 = vlaneseq
  %v2558 = vshrl.u32 %v2557, 7
  %v2559 = vsub.s32 0, %v2558
  %v2560 = vrot.slane %v2140, %v2559
  %v2561 = vlaneseq
  %v2562 = vshrl.u32 %v2561, 7
  %v2563 = vsub.s32 0, %v2562
  %v2564 = vrot.slane %v2141, %v2563
  %v2565 = vlaneseq
  %v2566 = vshrl.u32 %v2565, 7
  %v2567 = vsub.s32 0, %v2566
  %v2568 = vrot.slane %v2142, %v2567
  %v2569 = vlaneseq
  %v2570 = vshrl.u32 %v2569, 7
  %v2571 = vsub.s32 0, %v2570
  %v2572 = vrot.slane %v2143, %v2571
  %v2573 = vlaneseq
  %v2574 = vshrl.u32 %v2573, 7
  %v2575 = vsub.s32 0, %v2574
  %v2576 = vrot.slane %v2144, %v2575
  %v2577 = vlaneseq
  %v2578 = vshrl.u32 %v2577, 7
  %v2579 = vsub.s32 0, %v2578
  %v2580 = vrot.slane %v2145, %v2579
  %v2581 = vlaneseq
  %v2582 = vshrl.u32 %v2581, 7
  %v2583 = vsub.s32 0, %v2582
  %v2584 = vrot.slane %v2146, %v2583
  %v2585 = vlaneseq
  %v2586 = vshrl.u32 %v2585, 7
  %v2587 = vsub.s32 0, %v2586
  %v2588 = vrot.slane %v2147, %v2587
  %v2589 = vlaneseq
  %v2590 = vshrl.u32 %v2589, 7
  %v2591 = vsub.s32 0, %v2590
  %v2592 = vrot.slane %v2148, %v2591
  %v2593 = vlaneseq
  %v2594 = vshrl.u32 %v2593, 7
  %v2595 = vsub.s32 0, %v2594
  %v2596 = vrot.slane %v2149, %v2595
  %v2597 = vlaneseq
  %v2598 = vshrl.u32 %v2597, 7
  %v2599 = vsub.s32 0, %v2598
  %v2600 = vrot.slane %v2150, %v2599
  %v2601 = vlaneseq
  %v2602 = vshrl.u32 %v2601, 7
  %v2603 = vsub.s32 0, %v2602
  %v2604 = vrot.slane %v2151, %v2603
  %v2605 = vlaneseq
  %v2606 = vshrl.u32 %v2605, 7
  %v2607 = vsub.s32 0, %v2606
  %v2608 = vrot.slane %v2152, %v2607
  %v2609 = vlaneseq
  %v2610 = vshrl.u32 %v2609, 7
  %v2611 = vsub.s32 0, %v2610
  %v2612 = vrot.slane %v2153, %v2611
  %v2613 = vlaneseq
  %v2614 = vshrl.u32 %v2613, 7
  %v2615 = vsub.s32 0, %v2614
  %v2616 = vrot.slane %v2154, %v2615
  %v2617 = vlaneseq
  %v2618 = vshrl.u32 %v2617, 7
  %v2619 = vsub.s32 0, %v2618
  %v2620 = vrot.slane %v2155, %v2619
  %v2621 = vlaneseq
  %v2622 = vshrl.u32 %v2621, 7
  %v2623 = vsub.s32 0, %v2622
  %v2624 = vrot.slane %v2156, %v2623
  %v2625 = vlaneseq
  %v2626 = vshrl.u32 %v2625, 7
  %v2627 = vsub.s32 0, %v2626
  %v2628 = vrot.slane %v2157, %v2627
  %v2629 = vlaneseq
  %v2630 = vshrl.u32 %v2629, 7
  %v2631 = vsub.s32 0, %v2630
  %v2632 = vrot.slane %v2158, %v2631
  %v2633 = vlaneseq
  %v2634 = vshrl.u32 %v2633, 7
  %v2635 = vsub.s32 0, %v2634
  %v2636 = vrot.slane %v2159, %v2635
  %v2637 = vlaneseq
  %v2638 = vshrl.u32 %v2637, 7
  %v2639 = vsub.s32 0, %v2638
  %v2640 = vrot.slane %v2160, %v2639
  %v2641 = vlaneseq
  %v2642 = vshrl.u32 %v2641, 7
  %v2643 = vsub.s32 0, %v2642
  %v2644 = vrot.slane %v2161, %v2643
  %v2645 = vlaneseq
  %v2646 = vshrl.u32 %v2645, 7
  %v2647 = vsub.s32 0, %v2646
  %v2648 = vrot.slane %v2162, %v2647
  %v2649 = vlaneseq
  %v2650 = vshrl.u32 %v2649, 7
  %v2651 = vsub.s32 0, %v2650
  %v2652 = vrot.slane %v2163, %v2651
  %v2653 = vlaneseq
  %v2654 = vshrl.u32 %v2653, 7
  %v2655 = vsub.s32 0, %v2654
  %v2656 = vrot.slane %v2164, %v2655
  %v2657 = vlaneseq
  %v2658 = vshrl.u32 %v2657, 7
  %v2659 = vsub.s32 0, %v2658
  %v2660 = vrot.slane %v2165, %v2659
  %v2661 = vlaneseq
  %v2662 = vshrl.u32 %v2661, 7
  %v2663 = vsub.s32 0, %v2662
  %v2664 = vrot.slane %v2166, %v2663
  %v2665 = vlaneseq
  %v2666 = vshrl.u32 %v2665, 7
  %v2667 = vsub.s32 0, %v2666
  %v2668 = vrot.slane %v2167, %v2667
  %v2669 = vlaneseq
  %v2670 = vshrl.u32 %v2669, 7
  %v2671 = vsub.s32 0, %v2670
  %v2672 = vrot.slane %v2168, %v2671
  %v2673 = vlaneseq
  %v2674 = vshrl.u32 %v2673, 7
  %v2675 = vsub.s32 0, %v2674
  %v2676 = vrot.slane %v2169, %v2675
  %v2677 = vlaneseq
  %v2678 = vshrl.u32 %v2677, 7
  %v2679 = vsub.s32 0, %v2678
  %v2680 = vrot.slane %v2170, %v2679
  %v2681 = vlaneseq
  %v2682 = vshrl.u32 %v2681, 7
  %v2683 = vsub.s32 0, %v2682
  %v2684 = vrot.slane %v2171, %v2683
  %v2685 = vlaneseq
  %v2686 = vshrl.u32 %v2685, 7
  %v2687 = vsub.s32 0, %v2686
  %v2688 = vrot.slane %v2172, %v2687
  %v2689 = vlaneseq
  %v2690 = vshrl.u32 %v2689, 7
  %v2691 = vsub.s32 0, %v2690
  %v2692 = vrot.slane %v2173, %v2691
  %v2693 = vlaneseq
  %v2694 = vshrl.u32 %v2693, 7
  %v2695 = vsub.s32 0, %v2694
  %v2696 = vrot.slane %v2174, %v2695
  %v2697 = vlaneseq
  %v2698 = vshrl.u32 %v2697, 7
  %v2699 = vsub.s32 0, %v2698
  %v2700 = vrot.slane %v2175, %v2699
  %v2701 = vlaneseq
  %v2702 = vshrl.u32 %v2701, 7
  %v2703 = vsub.s32 0, %v2702
  %v2704 = vrot.slane %v2176, %v2703
  %2705 = vset.pattern.permute.xlu0 0
  %2706 = vperm.xlu0 %2705, %v2516
  %v2707 = vpop.permute.xlu0 %2706
  %2709 = vset.pattern.permute.xlu0 0
  %2710 = vperm.xlu0 %2709, %v2520
  %v2711 = vpop.permute.xlu0 %2710
  %2713 = vset.pattern.permute.xlu0 0
  %2714 = vperm.xlu0 %2713, %v2524
  %v2715 = vpop.permute.xlu0 %2714
  %2717 = vset.pattern.permute.xlu0 0
  %2718 = vperm.xlu0 %2717, %v2528
  %v2719 = vpop.permute.xlu0 %2718
  %2721 = vset.pattern.permute.xlu0 0
  %2722 = vperm.xlu0 %2721, %v2532
  %v2723 = vpop.permute.xlu0 %2722
  %2725 = vset.pattern.permute.xlu0 0
  %2726 = vperm.xlu0 %2725, %v2536
  %v2727 = vpop.permute.xlu0 %2726
  %2729 = vset.pattern.permute.xlu0 0
  %2730 = vperm.xlu0 %2729, %v2540
  %v2731 = vpop.permute.xlu0 %2730
  %2733 = vset.pattern.permute.xlu0 0
  %2734 = vperm.xlu0 %2733, %v2544
  %v2735 = vpop.permute.xlu0 %2734
  %2737 = vset.pattern.permute.xlu0 0
  %2738 = vperm.xlu0 %2737, %v2548
  %v2739 = vpop.permute.xlu0 %2738
  %2741 = vset.pattern.permute.xlu0 0
  %2742 = vperm.xlu0 %2741, %v2552
  %v2743 = vpop.permute.xlu0 %2742
  %2745 = vset.pattern.permute.xlu0 0
  %2746 = vperm.xlu0 %2745, %v2556
  %v2747 = vpop.permute.xlu0 %2746
  %2749 = vset.pattern.permute.xlu0 0
  %2750 = vperm.xlu0 %2749, %v2560
  %v2751 = vpop.permute.xlu0 %2750
  %2753 = vset.pattern.permute.xlu0 0
  %2754 = vperm.xlu0 %2753, %v2564
  %v2755 = vpop.permute.xlu0 %2754
  %2757 = vset.pattern.permute.xlu0 0
  %2758 = vperm.xlu0 %2757, %v2568
  %v2759 = vpop.permute.xlu0 %2758
  %2761 = vset.pattern.permute.xlu0 0
  %2762 = vperm.xlu0 %2761, %v2572
  %v2763 = vpop.permute.xlu0 %2762
  %2765 = vset.pattern.permute.xlu0 0
  %2766 = vperm.xlu0 %2765, %v2576
  %v2767 = vpop.permute.xlu0 %2766
  %2769 = vset.pattern.permute.xlu0 0
  %2770 = vperm.xlu0 %2769, %v2580
  %v2771 = vpop.permute.xlu0 %2770
  %2773 = vset.pattern.permute.xlu0 0
  %2774 = vperm.xlu0 %2773, %v2584
  %v2775 = vpop.permute.xlu0 %2774
  %2777 = vset.pattern.permute.xlu0 0
  %2778 = vperm.xlu0 %2777, %v2588
  %v2779 = vpop.permute.xlu0 %2778
  %2781 = vset.pattern.permute.xlu0 0
  %2782 = vperm.xlu0 %2781, %v2592
  %v2783 = vpop.permute.xlu0 %2782
  %2785 = vset.pattern.permute.xlu0 0
  %2786 = vperm.xlu0 %2785, %v2596
  %v2787 = vpop.permute.xlu0 %2786
  %2789 = vset.pattern.permute.xlu0 0
  %2790 = vperm.xlu0 %2789, %v2600
  %v2791 = vpop.permute.xlu0 %2790
  %2793 = vset.pattern.permute.xlu0 0
  %2794 = vperm.xlu0 %2793, %v2604
  %v2795 = vpop.permute.xlu0 %2794
  %2797 = vset.pattern.permute.xlu0 0
  %2798 = vperm.xlu0 %2797, %v2608
  %v2799 = vpop.permute.xlu0 %2798
  %2801 = vset.pattern.permute.xlu0 0
  %2802 = vperm.xlu0 %2801, %v2612
  %v2803 = vpop.permute.xlu0 %2802
  %2805 = vset.pattern.permute.xlu0 0
  %2806 = vperm.xlu0 %2805, %v2616
  %v2807 = vpop.permute.xlu0 %2806
  %2809 = vset.pattern.permute.xlu0 0
  %2810 = vperm.xlu0 %2809, %v2620
  %v2811 = vpop.permute.xlu0 %2810
  %2813 = vset.pattern.permute.xlu0 0
  %2814 = vperm.xlu0 %2813, %v2624
  %v2815 = vpop.permute.xlu0 %2814
  %2817 = vset.pattern.permute.xlu0 0
  %2818 = vperm.xlu0 %2817, %v2628
  %v2819 = vpop.permute.xlu0 %2818
  %2821 = vset.pattern.permute.xlu0 0
  %2822 = vperm.xlu0 %2821, %v2632
  %v2823 = vpop.permute.xlu0 %2822
  %2825 = vset.pattern.permute.xlu0 0
  %2826 = vperm.xlu0 %2825, %v2636
  %v2827 = vpop.permute.xlu0 %2826
  %2829 = vset.pattern.permute.xlu0 0
  %2830 = vperm.xlu0 %2829, %v2640
  %v2831 = vpop.permute.xlu0 %2830
  %2833 = vset.pattern.permute.xlu0 0
  %2834 = vperm.xlu0 %2833, %v2644
  %v2835 = vpop.permute.xlu0 %2834
  %2837 = vset.pattern.permute.xlu0 0
  %2838 = vperm.xlu0 %2837, %v2648
  %v2839 = vpop.permute.xlu0 %2838
  %2841 = vset.pattern.permute.xlu0 0
  %2842 = vperm.xlu0 %2841, %v2652
  %v2843 = vpop.permute.xlu0 %2842
  %2845 = vset.pattern.permute.xlu0 0
  %2846 = vperm.xlu0 %2845, %v2656
  %v2847 = vpop.permute.xlu0 %2846
  %2849 = vset.pattern.permute.xlu0 0
  %2850 = vperm.xlu0 %2849, %v2660
  %v2851 = vpop.permute.xlu0 %2850
  %2853 = vset.pattern.permute.xlu0 0
  %2854 = vperm.xlu0 %2853, %v2664
  %v2855 = vpop.permute.xlu0 %2854
  %2857 = vset.pattern.permute.xlu0 0
  %2858 = vperm.xlu0 %2857, %v2668
  %v2859 = vpop.permute.xlu0 %2858
  %2861 = vset.pattern.permute.xlu0 0
  %2862 = vperm.xlu0 %2861, %v2672
  %v2863 = vpop.permute.xlu0 %2862
  %2865 = vset.pattern.permute.xlu0 0
  %2866 = vperm.xlu0 %2865, %v2676
  %v2867 = vpop.permute.xlu0 %2866
  %2869 = vset.pattern.permute.xlu0 0
  %2870 = vperm.xlu0 %2869, %v2680
  %v2871 = vpop.permute.xlu0 %2870
  %2873 = vset.pattern.permute.xlu0 0
  %2874 = vperm.xlu0 %2873, %v2684
  %v2875 = vpop.permute.xlu0 %2874
  %2877 = vset.pattern.permute.xlu0 0
  %2878 = vperm.xlu0 %2877, %v2688
  %v2879 = vpop.permute.xlu0 %2878
  %2881 = vset.pattern.permute.xlu0 0
  %2882 = vperm.xlu0 %2881, %v2692
  %v2883 = vpop.permute.xlu0 %2882
  %2885 = vset.pattern.permute.xlu0 0
  %2886 = vperm.xlu0 %2885, %v2696
  %v2887 = vpop.permute.xlu0 %2886
  %2889 = vset.pattern.permute.xlu0 0
  %2890 = vperm.xlu0 %2889, %v2700
  %v2891 = vpop.permute.xlu0 %2890
  %2893 = vset.pattern.permute.xlu0 0
  %2894 = vperm.xlu0 %2893, %v2704
  %v2895 = vpop.permute.xlu0 %2894
  %v2897 = vmul.f32 %v14, %v2707
  %v2898 = vmul.f32 %v15, %v2707
  %v2899 = vmul.f32 %v16, %v2711
  %v2900 = vmul.f32 %v17, %v2711
  %v2901 = vmul.f32 %v18, %v2715
  %v2902 = vmul.f32 %v19, %v2715
  %v2903 = vmul.f32 %v20, %v2719
  %v2904 = vmul.f32 %v21, %v2719
  %v2905 = vmul.f32 %v22, %v2723
  %v2906 = vmul.f32 %v23, %v2723
  %v2907 = vmul.f32 %v24, %v2727
  %v2908 = vmul.f32 %v25, %v2727
  %v2909 = vmul.f32 %v26, %v2731
  %v2910 = vmul.f32 %v27, %v2731
  %v2911 = vmul.f32 %v28, %v2735
  %v2912 = vmul.f32 %v29, %v2735
  %v2913 = vmul.f32 %v30, %v2739
  %v2914 = vmul.f32 %v31, %v2739
  %v2915 = vmul.f32 %v32, %v2743
  %v2916 = vmul.f32 %v33, %v2743
  %v2917 = vmul.f32 %v34, %v2747
  %v2918 = vmul.f32 %v35, %v2747
  %v2919 = vmul.f32 %v36, %v2751
  %v2920 = vmul.f32 %v37, %v2751
  %v2921 = vmul.f32 %v38, %v2755
  %v2922 = vmul.f32 %v39, %v2755
  %v2923 = vmul.f32 %v40, %v2759
  %v2924 = vmul.f32 %v41, %v2759
  %v2925 = vmul.f32 %v42, %v2763
  %v2926 = vmul.f32 %v43, %v2763
  %v2927 = vmul.f32 %v44, %v2767
  %v2928 = vmul.f32 %v45, %v2767
  %v2929 = vmul.f32 %v46, %v2771
  %v2930 = vmul.f32 %v47, %v2771
  %v2931 = vmul.f32 %v48, %v2775
  %v2932 = vmul.f32 %v49, %v2775
  %v2933 = vmul.f32 %v50, %v2779
  %v2934 = vmul.f32 %v51, %v2779
  %v2935 = vmul.f32 %v52, %v2783
  %v2936 = vmul.f32 %v53, %v2783
  %v2937 = vmul.f32 %v54, %v2787
  %v2938 = vmul.f32 %v55, %v2787
  %v2939 = vmul.f32 %v56, %v2791
  %v2940 = vmul.f32 %v57, %v2791
  %v2941 = vmul.f32 %v58, %v2795
  %v2942 = vmul.f32 %v59, %v2795
  %v2943 = vmul.f32 %v60, %v2799
  %v2944 = vmul.f32 %v61, %v2799
  %v2945 = vmul.f32 %v62, %v2803
  %v2946 = vmul.f32 %v63, %v2803
  %v2947 = vmul.f32 %v64, %v2807
  %v2948 = vmul.f32 %v65, %v2807
  %v2949 = vmul.f32 %v66, %v2811
  %v2950 = vmul.f32 %v67, %v2811
  %v2951 = vmul.f32 %v68, %v2815
  %v2952 = vmul.f32 %v69, %v2815
  %v2953 = vmul.f32 %v70, %v2819
  %v2954 = vmul.f32 %v71, %v2819
  %v2955 = vmul.f32 %v72, %v2823
  %v2956 = vmul.f32 %v73, %v2823
  %v2957 = vmul.f32 %v74, %v2827
  %v2958 = vmul.f32 %v75, %v2827
  %v2959 = vmul.f32 %v76, %v2831
  %v2960 = vmul.f32 %v77, %v2831
  %v2961 = vmul.f32 %v78, %v2835
  %v2962 = vmul.f32 %v79, %v2835
  %v2963 = vmul.f32 %v80, %v2839
  %v2964 = vmul.f32 %v81, %v2839
  %v2965 = vmul.f32 %v82, %v2843
  %v2966 = vmul.f32 %v83, %v2843
  %v2967 = vmul.f32 %v84, %v2847
  %v2968 = vmul.f32 %v85, %v2847
  %v2969 = vmul.f32 %v86, %v2851
  %v2970 = vmul.f32 %v87, %v2851
  %v2971 = vmul.f32 %v88, %v2855
  %v2972 = vmul.f32 %v89, %v2855
  %v2973 = vmul.f32 %v90, %v2859
  %v2974 = vmul.f32 %v91, %v2859
  %v2975 = vmul.f32 %v92, %v2863
  %v2976 = vmul.f32 %v93, %v2863
  %v2977 = vmul.f32 %v94, %v2867
  %v2978 = vmul.f32 %v95, %v2867
  %v2979 = vmul.f32 %v96, %v2871
  %v2980 = vmul.f32 %v97, %v2871
  %v2981 = vmul.f32 %v98, %v2875
  %v2982 = vmul.f32 %v99, %v2875
  %v2983 = vmul.f32 %v100, %v2879
  %v2984 = vmul.f32 %v101, %v2879
  %v2985 = vmul.f32 %v102, %v2883
  %v2986 = vmul.f32 %v103, %v2883
  %v2987 = vmul.f32 %v104, %v2887
  %v2988 = vmul.f32 %v105, %v2887
  %v2989 = vmul.f32 %v106, %v2891
  %v2990 = vmul.f32 %v107, %v2891
  %v2991 = vmul.f32 %v108, %v2895
  %v2992 = vmul.f32 %v109, %v2895
  %v3041 = vlaneseq
  %v3042 = vshrl.u32 %v3041, 7
  %v3043 = vsub.s32 0, %v3042
  %v3044 = vrot.slane %v2417, %v3043
  %v3045 = vlaneseq
  %v3046 = vshrl.u32 %v3045, 7
  %v3047 = vsub.s32 0, %v3046
  %v3048 = vrot.slane %v2418, %v3047
  %v3049 = vlaneseq
  %v3050 = vshrl.u32 %v3049, 7
  %v3051 = vsub.s32 0, %v3050
  %v3052 = vrot.slane %v2419, %v3051
  %v3053 = vlaneseq
  %v3054 = vshrl.u32 %v3053, 7
  %v3055 = vsub.s32 0, %v3054
  %v3056 = vrot.slane %v2420, %v3055
  %v3057 = vlaneseq
  %v3058 = vshrl.u32 %v3057, 7
  %v3059 = vsub.s32 0, %v3058
  %v3060 = vrot.slane %v2421, %v3059
  %v3061 = vlaneseq
  %v3062 = vshrl.u32 %v3061, 7
  %v3063 = vsub.s32 0, %v3062
  %v3064 = vrot.slane %v2422, %v3063
  %v3065 = vlaneseq
  %v3066 = vshrl.u32 %v3065, 7
  %v3067 = vsub.s32 0, %v3066
  %v3068 = vrot.slane %v2423, %v3067
  %v3069 = vlaneseq
  %v3070 = vshrl.u32 %v3069, 7
  %v3071 = vsub.s32 0, %v3070
  %v3072 = vrot.slane %v2424, %v3071
  %v3073 = vlaneseq
  %v3074 = vshrl.u32 %v3073, 7
  %v3075 = vsub.s32 0, %v3074
  %v3076 = vrot.slane %v2425, %v3075
  %v3077 = vlaneseq
  %v3078 = vshrl.u32 %v3077, 7
  %v3079 = vsub.s32 0, %v3078
  %v3080 = vrot.slane %v2426, %v3079
  %v3081 = vlaneseq
  %v3082 = vshrl.u32 %v3081, 7
  %v3083 = vsub.s32 0, %v3082
  %v3084 = vrot.slane %v2427, %v3083
  %v3085 = vlaneseq
  %v3086 = vshrl.u32 %v3085, 7
  %v3087 = vsub.s32 0, %v3086
  %v3088 = vrot.slane %v2428, %v3087
  %v3089 = vlaneseq
  %v3090 = vshrl.u32 %v3089, 7
  %v3091 = vsub.s32 0, %v3090
  %v3092 = vrot.slane %v2429, %v3091
  %v3093 = vlaneseq
  %v3094 = vshrl.u32 %v3093, 7
  %v3095 = vsub.s32 0, %v3094
  %v3096 = vrot.slane %v2430, %v3095
  %v3097 = vlaneseq
  %v3098 = vshrl.u32 %v3097, 7
  %v3099 = vsub.s32 0, %v3098
  %v3100 = vrot.slane %v2431, %v3099
  %v3101 = vlaneseq
  %v3102 = vshrl.u32 %v3101, 7
  %v3103 = vsub.s32 0, %v3102
  %v3104 = vrot.slane %v2432, %v3103
  %v3105 = vlaneseq
  %v3106 = vshrl.u32 %v3105, 7
  %v3107 = vsub.s32 0, %v3106
  %v3108 = vrot.slane %v2433, %v3107
  %v3109 = vlaneseq
  %v3110 = vshrl.u32 %v3109, 7
  %v3111 = vsub.s32 0, %v3110
  %v3112 = vrot.slane %v2434, %v3111
  %v3113 = vlaneseq
  %v3114 = vshrl.u32 %v3113, 7
  %v3115 = vsub.s32 0, %v3114
  %v3116 = vrot.slane %v2435, %v3115
  %v3117 = vlaneseq
  %v3118 = vshrl.u32 %v3117, 7
  %v3119 = vsub.s32 0, %v3118
  %v3120 = vrot.slane %v2436, %v3119
  %v3121 = vlaneseq
  %v3122 = vshrl.u32 %v3121, 7
  %v3123 = vsub.s32 0, %v3122
  %v3124 = vrot.slane %v2437, %v3123
  %v3125 = vlaneseq
  %v3126 = vshrl.u32 %v3125, 7
  %v3127 = vsub.s32 0, %v3126
  %v3128 = vrot.slane %v2438, %v3127
  %v3129 = vlaneseq
  %v3130 = vshrl.u32 %v3129, 7
  %v3131 = vsub.s32 0, %v3130
  %v3132 = vrot.slane %v2439, %v3131
  %v3133 = vlaneseq
  %v3134 = vshrl.u32 %v3133, 7
  %v3135 = vsub.s32 0, %v3134
  %v3136 = vrot.slane %v2440, %v3135
  %v3137 = vlaneseq
  %v3138 = vshrl.u32 %v3137, 7
  %v3139 = vsub.s32 0, %v3138
  %v3140 = vrot.slane %v2441, %v3139
  %v3141 = vlaneseq
  %v3142 = vshrl.u32 %v3141, 7
  %v3143 = vsub.s32 0, %v3142
  %v3144 = vrot.slane %v2442, %v3143
  %v3145 = vlaneseq
  %v3146 = vshrl.u32 %v3145, 7
  %v3147 = vsub.s32 0, %v3146
  %v3148 = vrot.slane %v2443, %v3147
  %v3149 = vlaneseq
  %v3150 = vshrl.u32 %v3149, 7
  %v3151 = vsub.s32 0, %v3150
  %v3152 = vrot.slane %v2444, %v3151
  %v3153 = vlaneseq
  %v3154 = vshrl.u32 %v3153, 7
  %v3155 = vsub.s32 0, %v3154
  %v3156 = vrot.slane %v2445, %v3155
  %v3157 = vlaneseq
  %v3158 = vshrl.u32 %v3157, 7
  %v3159 = vsub.s32 0, %v3158
  %v3160 = vrot.slane %v2446, %v3159
  %v3161 = vlaneseq
  %v3162 = vshrl.u32 %v3161, 7
  %v3163 = vsub.s32 0, %v3162
  %v3164 = vrot.slane %v2447, %v3163
  %v3165 = vlaneseq
  %v3166 = vshrl.u32 %v3165, 7
  %v3167 = vsub.s32 0, %v3166
  %v3168 = vrot.slane %v2448, %v3167
  %v3169 = vlaneseq
  %v3170 = vshrl.u32 %v3169, 7
  %v3171 = vsub.s32 0, %v3170
  %v3172 = vrot.slane %v2449, %v3171
  %v3173 = vlaneseq
  %v3174 = vshrl.u32 %v3173, 7
  %v3175 = vsub.s32 0, %v3174
  %v3176 = vrot.slane %v2450, %v3175
  %v3177 = vlaneseq
  %v3178 = vshrl.u32 %v3177, 7
  %v3179 = vsub.s32 0, %v3178
  %v3180 = vrot.slane %v2451, %v3179
  %v3181 = vlaneseq
  %v3182 = vshrl.u32 %v3181, 7
  %v3183 = vsub.s32 0, %v3182
  %v3184 = vrot.slane %v2452, %v3183
  %v3185 = vlaneseq
  %v3186 = vshrl.u32 %v3185, 7
  %v3187 = vsub.s32 0, %v3186
  %v3188 = vrot.slane %v2453, %v3187
  %v3189 = vlaneseq
  %v3190 = vshrl.u32 %v3189, 7
  %v3191 = vsub.s32 0, %v3190
  %v3192 = vrot.slane %v2454, %v3191
  %v3193 = vlaneseq
  %v3194 = vshrl.u32 %v3193, 7
  %v3195 = vsub.s32 0, %v3194
  %v3196 = vrot.slane %v2455, %v3195
  %v3197 = vlaneseq
  %v3198 = vshrl.u32 %v3197, 7
  %v3199 = vsub.s32 0, %v3198
  %v3200 = vrot.slane %v2456, %v3199
  %v3201 = vlaneseq
  %v3202 = vshrl.u32 %v3201, 7
  %v3203 = vsub.s32 0, %v3202
  %v3204 = vrot.slane %v2457, %v3203
  %v3205 = vlaneseq
  %v3206 = vshrl.u32 %v3205, 7
  %v3207 = vsub.s32 0, %v3206
  %v3208 = vrot.slane %v2458, %v3207
  %v3209 = vlaneseq
  %v3210 = vshrl.u32 %v3209, 7
  %v3211 = vsub.s32 0, %v3210
  %v3212 = vrot.slane %v2459, %v3211
  %v3213 = vlaneseq
  %v3214 = vshrl.u32 %v3213, 7
  %v3215 = vsub.s32 0, %v3214
  %v3216 = vrot.slane %v2460, %v3215
  %v3217 = vlaneseq
  %v3218 = vshrl.u32 %v3217, 7
  %v3219 = vsub.s32 0, %v3218
  %v3220 = vrot.slane %v2461, %v3219
  %v3221 = vlaneseq
  %v3222 = vshrl.u32 %v3221, 7
  %v3223 = vsub.s32 0, %v3222
  %v3224 = vrot.slane %v2462, %v3223
  %v3225 = vlaneseq
  %v3226 = vshrl.u32 %v3225, 7
  %v3227 = vsub.s32 0, %v3226
  %v3228 = vrot.slane %v2463, %v3227
  %v3229 = vlaneseq
  %v3230 = vshrl.u32 %v3229, 7
  %v3231 = vsub.s32 0, %v3230
  %v3232 = vrot.slane %v2464, %v3231
  %3233 = vset.pattern.permute.xlu0 1
  %3234 = vperm.xlu0 %3233, %v3044
  %v3235 = vpop.permute.xlu0 %3234
  %3237 = vset.pattern.permute.xlu0 1
  %3238 = vperm.xlu0 %3237, %v3048
  %v3239 = vpop.permute.xlu0 %3238
  %3241 = vset.pattern.permute.xlu0 1
  %3242 = vperm.xlu0 %3241, %v3052
  %v3243 = vpop.permute.xlu0 %3242
  %3245 = vset.pattern.permute.xlu0 1
  %3246 = vperm.xlu0 %3245, %v3056
  %v3247 = vpop.permute.xlu0 %3246
  %3249 = vset.pattern.permute.xlu0 1
  %3250 = vperm.xlu0 %3249, %v3060
  %v3251 = vpop.permute.xlu0 %3250
  %3253 = vset.pattern.permute.xlu0 1
  %3254 = vperm.xlu0 %3253, %v3064
  %v3255 = vpop.permute.xlu0 %3254
  %3257 = vset.pattern.permute.xlu0 1
  %3258 = vperm.xlu0 %3257, %v3068
  %v3259 = vpop.permute.xlu0 %3258
  %3261 = vset.pattern.permute.xlu0 1
  %3262 = vperm.xlu0 %3261, %v3072
  %v3263 = vpop.permute.xlu0 %3262
  %3265 = vset.pattern.permute.xlu0 1
  %3266 = vperm.xlu0 %3265, %v3076
  %v3267 = vpop.permute.xlu0 %3266
  %3269 = vset.pattern.permute.xlu0 1
  %3270 = vperm.xlu0 %3269, %v3080
  %v3271 = vpop.permute.xlu0 %3270
  %3273 = vset.pattern.permute.xlu0 1
  %3274 = vperm.xlu0 %3273, %v3084
  %v3275 = vpop.permute.xlu0 %3274
  %3277 = vset.pattern.permute.xlu0 1
  %3278 = vperm.xlu0 %3277, %v3088
  %v3279 = vpop.permute.xlu0 %3278
  %3281 = vset.pattern.permute.xlu0 1
  %3282 = vperm.xlu0 %3281, %v3092
  %v3283 = vpop.permute.xlu0 %3282
  %3285 = vset.pattern.permute.xlu0 1
  %3286 = vperm.xlu0 %3285, %v3096
  %v3287 = vpop.permute.xlu0 %3286
  %3289 = vset.pattern.permute.xlu0 1
  %3290 = vperm.xlu0 %3289, %v3100
  %v3291 = vpop.permute.xlu0 %3290
  %3293 = vset.pattern.permute.xlu0 1
  %3294 = vperm.xlu0 %3293, %v3104
  %v3295 = vpop.permute.xlu0 %3294
  %3297 = vset.pattern.permute.xlu0 1
  %3298 = vperm.xlu0 %3297, %v3108
  %v3299 = vpop.permute.xlu0 %3298
  %3301 = vset.pattern.permute.xlu0 1
  %3302 = vperm.xlu0 %3301, %v3112
  %v3303 = vpop.permute.xlu0 %3302
  %3305 = vset.pattern.permute.xlu0 1
  %3306 = vperm.xlu0 %3305, %v3116
  %v3307 = vpop.permute.xlu0 %3306
  %3309 = vset.pattern.permute.xlu0 1
  %3310 = vperm.xlu0 %3309, %v3120
  %v3311 = vpop.permute.xlu0 %3310
  %3313 = vset.pattern.permute.xlu0 1
  %3314 = vperm.xlu0 %3313, %v3124
  %v3315 = vpop.permute.xlu0 %3314
  %3317 = vset.pattern.permute.xlu0 1
  %3318 = vperm.xlu0 %3317, %v3128
  %v3319 = vpop.permute.xlu0 %3318
  %3321 = vset.pattern.permute.xlu0 1
  %3322 = vperm.xlu0 %3321, %v3132
  %v3323 = vpop.permute.xlu0 %3322
  %3325 = vset.pattern.permute.xlu0 1
  %3326 = vperm.xlu0 %3325, %v3136
  %v3327 = vpop.permute.xlu0 %3326
  %3329 = vset.pattern.permute.xlu0 1
  %3330 = vperm.xlu0 %3329, %v3140
  %v3331 = vpop.permute.xlu0 %3330
  %3333 = vset.pattern.permute.xlu0 1
  %3334 = vperm.xlu0 %3333, %v3144
  %v3335 = vpop.permute.xlu0 %3334
  %3337 = vset.pattern.permute.xlu0 1
  %3338 = vperm.xlu0 %3337, %v3148
  %v3339 = vpop.permute.xlu0 %3338
  %3341 = vset.pattern.permute.xlu0 1
  %3342 = vperm.xlu0 %3341, %v3152
  %v3343 = vpop.permute.xlu0 %3342
  %3345 = vset.pattern.permute.xlu0 1
  %3346 = vperm.xlu0 %3345, %v3156
  %v3347 = vpop.permute.xlu0 %3346
  %3349 = vset.pattern.permute.xlu0 1
  %3350 = vperm.xlu0 %3349, %v3160
  %v3351 = vpop.permute.xlu0 %3350
  %3353 = vset.pattern.permute.xlu0 1
  %3354 = vperm.xlu0 %3353, %v3164
  %v3355 = vpop.permute.xlu0 %3354
  %3357 = vset.pattern.permute.xlu0 1
  %3358 = vperm.xlu0 %3357, %v3168
  %v3359 = vpop.permute.xlu0 %3358
  %3361 = vset.pattern.permute.xlu0 1
  %3362 = vperm.xlu0 %3361, %v3172
  %v3363 = vpop.permute.xlu0 %3362
  %3365 = vset.pattern.permute.xlu0 1
  %3366 = vperm.xlu0 %3365, %v3176
  %v3367 = vpop.permute.xlu0 %3366
  %3369 = vset.pattern.permute.xlu0 1
  %3370 = vperm.xlu0 %3369, %v3180
  %v3371 = vpop.permute.xlu0 %3370
  %3373 = vset.pattern.permute.xlu0 1
  %3374 = vperm.xlu0 %3373, %v3184
  %v3375 = vpop.permute.xlu0 %3374
  %3377 = vset.pattern.permute.xlu0 1
  %3378 = vperm.xlu0 %3377, %v3188
  %v3379 = vpop.permute.xlu0 %3378
  %3381 = vset.pattern.permute.xlu0 1
  %3382 = vperm.xlu0 %3381, %v3192
  %v3383 = vpop.permute.xlu0 %3382
  %3385 = vset.pattern.permute.xlu0 1
  %3386 = vperm.xlu0 %3385, %v3196
  %v3387 = vpop.permute.xlu0 %3386
  %3389 = vset.pattern.permute.xlu0 1
  %3390 = vperm.xlu0 %3389, %v3200
  %v3391 = vpop.permute.xlu0 %3390
  %3393 = vset.pattern.permute.xlu0 1
  %3394 = vperm.xlu0 %3393, %v3204
  %v3395 = vpop.permute.xlu0 %3394
  %3397 = vset.pattern.permute.xlu0 1
  %3398 = vperm.xlu0 %3397, %v3208
  %v3399 = vpop.permute.xlu0 %3398
  %3401 = vset.pattern.permute.xlu0 1
  %3402 = vperm.xlu0 %3401, %v3212
  %v3403 = vpop.permute.xlu0 %3402
  %3405 = vset.pattern.permute.xlu0 1
  %3406 = vperm.xlu0 %3405, %v3216
  %v3407 = vpop.permute.xlu0 %3406
  %3409 = vset.pattern.permute.xlu0 1
  %3410 = vperm.xlu0 %3409, %v3220
  %v3411 = vpop.permute.xlu0 %3410
  %3413 = vset.pattern.permute.xlu0 1
  %3414 = vperm.xlu0 %3413, %v3224
  %v3415 = vpop.permute.xlu0 %3414
  %3417 = vset.pattern.permute.xlu0 1
  %3418 = vperm.xlu0 %3417, %v3228
  %v3419 = vpop.permute.xlu0 %3418
  %3421 = vset.pattern.permute.xlu0 1
  %3422 = vperm.xlu0 %3421, %v3232
  %v3423 = vpop.permute.xlu0 %3422
  %v3425 = vadd.f32 %v2897, %v3235
  %v3426 = vadd.f32 %v2898, %v3235
  %v3427 = vadd.f32 %v2899, %v3239
  %v3428 = vadd.f32 %v2900, %v3239
  %v3429 = vadd.f32 %v2901, %v3243
  %v3430 = vadd.f32 %v2902, %v3243
  %v3431 = vadd.f32 %v2903, %v3247
  %v3432 = vadd.f32 %v2904, %v3247
  %v3433 = vadd.f32 %v2905, %v3251
  %v3434 = vadd.f32 %v2906, %v3251
  %v3435 = vadd.f32 %v2907, %v3255
  %v3436 = vadd.f32 %v2908, %v3255
  %v3437 = vadd.f32 %v2909, %v3259
  %v3438 = vadd.f32 %v2910, %v3259
  %v3439 = vadd.f32 %v2911, %v3263
  %v3440 = vadd.f32 %v2912, %v3263
  %v3441 = vadd.f32 %v2913, %v3267
  %v3442 = vadd.f32 %v2914, %v3267
  %v3443 = vadd.f32 %v2915, %v3271
  %v3444 = vadd.f32 %v2916, %v3271
  %v3445 = vadd.f32 %v2917, %v3275
  %v3446 = vadd.f32 %v2918, %v3275
  %v3447 = vadd.f32 %v2919, %v3279
  %v3448 = vadd.f32 %v2920, %v3279
  %v3449 = vadd.f32 %v2921, %v3283
  %v3450 = vadd.f32 %v2922, %v3283
  %v3451 = vadd.f32 %v2923, %v3287
  %v3452 = vadd.f32 %v2924, %v3287
  %v3453 = vadd.f32 %v2925, %v3291
  %v3454 = vadd.f32 %v2926, %v3291
  %v3455 = vadd.f32 %v2927, %v3295
  %v3456 = vadd.f32 %v2928, %v3295
  %v3457 = vadd.f32 %v2929, %v3299
  %v3458 = vadd.f32 %v2930, %v3299
  %v3459 = vadd.f32 %v2931, %v3303
  %v3460 = vadd.f32 %v2932, %v3303
  %v3461 = vadd.f32 %v2933, %v3307
  %v3462 = vadd.f32 %v2934, %v3307
  %v3463 = vadd.f32 %v2935, %v3311
  %v3464 = vadd.f32 %v2936, %v3311
  %v3465 = vadd.f32 %v2937, %v3315
  %v3466 = vadd.f32 %v2938, %v3315
  %v3467 = vadd.f32 %v2939, %v3319
  %v3468 = vadd.f32 %v2940, %v3319
  %v3469 = vadd.f32 %v2941, %v3323
  %v3470 = vadd.f32 %v2942, %v3323
  %v3471 = vadd.f32 %v2943, %v3327
  %v3472 = vadd.f32 %v2944, %v3327
  %v3473 = vadd.f32 %v2945, %v3331
  %v3474 = vadd.f32 %v2946, %v3331
  %v3475 = vadd.f32 %v2947, %v3335
  %v3476 = vadd.f32 %v2948, %v3335
  %v3477 = vadd.f32 %v2949, %v3339
  %v3478 = vadd.f32 %v2950, %v3339
  %v3479 = vadd.f32 %v2951, %v3343
  %v3480 = vadd.f32 %v2952, %v3343
  %v3481 = vadd.f32 %v2953, %v3347
  %v3482 = vadd.f32 %v2954, %v3347
  %v3483 = vadd.f32 %v2955, %v3351
  %v3484 = vadd.f32 %v2956, %v3351
  %v3485 = vadd.f32 %v2957, %v3355
  %v3486 = vadd.f32 %v2958, %v3355
  %v3487 = vadd.f32 %v2959, %v3359
  %v3488 = vadd.f32 %v2960, %v3359
  %v3489 = vadd.f32 %v2961, %v3363
  %v3490 = vadd.f32 %v2962, %v3363
  %v3491 = vadd.f32 %v2963, %v3367
  %v3492 = vadd.f32 %v2964, %v3367
  %v3493 = vadd.f32 %v2965, %v3371
  %v3494 = vadd.f32 %v2966, %v3371
  %v3495 = vadd.f32 %v2967, %v3375
  %v3496 = vadd.f32 %v2968, %v3375
  %v3497 = vadd.f32 %v2969, %v3379
  %v3498 = vadd.f32 %v2970, %v3379
  %v3499 = vadd.f32 %v2971, %v3383
  %v3500 = vadd.f32 %v2972, %v3383
  %v3501 = vadd.f32 %v2973, %v3387
  %v3502 = vadd.f32 %v2974, %v3387
  %v3503 = vadd.f32 %v2975, %v3391
  %v3504 = vadd.f32 %v2976, %v3391
  %v3505 = vadd.f32 %v2977, %v3395
  %v3506 = vadd.f32 %v2978, %v3395
  %v3507 = vadd.f32 %v2979, %v3399
  %v3508 = vadd.f32 %v2980, %v3399
  %v3509 = vadd.f32 %v2981, %v3403
  %v3510 = vadd.f32 %v2982, %v3403
  %v3511 = vadd.f32 %v2983, %v3407
  %v3512 = vadd.f32 %v2984, %v3407
  %v3513 = vadd.f32 %v2985, %v3411
  %v3514 = vadd.f32 %v2986, %v3411
  %v3515 = vadd.f32 %v2987, %v3415
  %v3516 = vadd.f32 %v2988, %v3415
  %v3517 = vadd.f32 %v2989, %v3419
  %v3518 = vadd.f32 %v2990, %v3419
  %v3519 = vadd.f32 %v2991, %v3423
  %v3520 = vadd.f32 %v2992, %v3423
  %v3521 = vadd.f32 %v3425, %v110
  %v3522 = vadd.f32 %v3426, %v111
  %v3523 = vadd.f32 %v3427, %v112
  %v3524 = vadd.f32 %v3428, %v113
  %v3525 = vadd.f32 %v3429, %v114
  %v3526 = vadd.f32 %v3430, %v115
  %v3527 = vadd.f32 %v3431, %v116
  %v3528 = vadd.f32 %v3432, %v117
  %v3529 = vadd.f32 %v3433, %v118
  %v3530 = vadd.f32 %v3434, %v119
  %v3531 = vadd.f32 %v3435, %v120
  %v3532 = vadd.f32 %v3436, %v121
  %v3533 = vadd.f32 %v3437, %v122
  %v3534 = vadd.f32 %v3438, %v123
  %v3535 = vadd.f32 %v3439, %v124
  %v3536 = vadd.f32 %v3440, %v125
  %v3537 = vadd.f32 %v3441, %v126
  %v3538 = vadd.f32 %v3442, %v127
  %v3539 = vadd.f32 %v3443, %v128
  %v3540 = vadd.f32 %v3444, %v129
  %v3541 = vadd.f32 %v3445, %v130
  %v3542 = vadd.f32 %v3446, %v131
  %v3543 = vadd.f32 %v3447, %v132
  %v3544 = vadd.f32 %v3448, %v133
  %v3545 = vadd.f32 %v3449, %v134
  %v3546 = vadd.f32 %v3450, %v135
  %v3547 = vadd.f32 %v3451, %v136
  %v3548 = vadd.f32 %v3452, %v137
  %v3549 = vadd.f32 %v3453, %v138
  %v3550 = vadd.f32 %v3454, %v139
  %v3551 = vadd.f32 %v3455, %v140
  %v3552 = vadd.f32 %v3456, %v141
  %v3553 = vadd.f32 %v3457, %v142
  %v3554 = vadd.f32 %v3458, %v143
  %v3555 = vadd.f32 %v3459, %v144
  %v3556 = vadd.f32 %v3460, %v145
  %v3557 = vadd.f32 %v3461, %v146
  %v3558 = vadd.f32 %v3462, %v147
  %v3559 = vadd.f32 %v3463, %v148
  %v3560 = vadd.f32 %v3464, %v149
  %v3561 = vadd.f32 %v3465, %v150
  %v3562 = vadd.f32 %v3466, %v151
  %v3563 = vadd.f32 %v3467, %v152
  %v3564 = vadd.f32 %v3468, %v153
  %v3565 = vadd.f32 %v3469, %v154
  %v3566 = vadd.f32 %v3470, %v155
  %v3567 = vadd.f32 %v3471, %v156
  %v3568 = vadd.f32 %v3472, %v157
  %v3569 = vadd.f32 %v3473, %v158
  %v3570 = vadd.f32 %v3474, %v159
  %v3571 = vadd.f32 %v3475, %v160
  %v3572 = vadd.f32 %v3476, %v161
  %v3573 = vadd.f32 %v3477, %v162
  %v3574 = vadd.f32 %v3478, %v163
  %v3575 = vadd.f32 %v3479, %v164
  %v3576 = vadd.f32 %v3480, %v165
  %v3577 = vadd.f32 %v3481, %v166
  %v3578 = vadd.f32 %v3482, %v167
  %v3579 = vadd.f32 %v3483, %v168
  %v3580 = vadd.f32 %v3484, %v169
  %v3581 = vadd.f32 %v3485, %v170
  %v3582 = vadd.f32 %v3486, %v171
  %v3583 = vadd.f32 %v3487, %v172
  %v3584 = vadd.f32 %v3488, %v173
  %v3585 = vadd.f32 %v3489, %v174
  %v3586 = vadd.f32 %v3490, %v175
  %v3587 = vadd.f32 %v3491, %v176
  %v3588 = vadd.f32 %v3492, %v177
  %v3589 = vadd.f32 %v3493, %v178
  %v3590 = vadd.f32 %v3494, %v179
  %v3591 = vadd.f32 %v3495, %v180
  %v3592 = vadd.f32 %v3496, %v181
  %v3593 = vadd.f32 %v3497, %v182
  %v3594 = vadd.f32 %v3498, %v183
  %v3595 = vadd.f32 %v3499, %v184
  %v3596 = vadd.f32 %v3500, %v185
  %v3597 = vadd.f32 %v3501, %v186
  %v3598 = vadd.f32 %v3502, %v187
  %v3599 = vadd.f32 %v3503, %v188
  %v3600 = vadd.f32 %v3504, %v189
  %v3601 = vadd.f32 %v3505, %v190
  %v3602 = vadd.f32 %v3506, %v191
  %v3603 = vadd.f32 %v3507, %v192
  %v3604 = vadd.f32 %v3508, %v193
  %v3605 = vadd.f32 %v3509, %v194
  %v3606 = vadd.f32 %v3510, %v195
  %v3607 = vadd.f32 %v3511, %v196
  %v3608 = vadd.f32 %v3512, %v197
  %v3609 = vadd.f32 %v3513, %v198
  %v3610 = vadd.f32 %v3514, %v199
  %v3611 = vadd.f32 %v3515, %v200
  %v3612 = vadd.f32 %v3516, %v201
  %v3613 = vadd.f32 %v3517, %v202
  %v3614 = vadd.f32 %v3518, %v203
  %v3615 = vadd.f32 %v3519, %v204
  %v3616 = vadd.f32 %v3520, %v205
  %3617 = vst.msk [vmem:[%s3] sm:$0xff] %vm254, %v3521
  %3618 = vst.msk [vmem:[%s3 + $0x8] sm:$0x3f] %vm258, %v3522
  %3619 = vst.msk [vmem:[%s3 + $0x10] sm:$0xff] %vm254, %v3523
  %3620 = vst.msk [vmem:[%s3 + $0x18] sm:$0x3f] %vm258, %v3524
  %3621 = vst.msk [vmem:[%s3 + $0x20] sm:$0xff] %vm254, %v3525
  %3622 = vst.msk [vmem:[%s3 + $0x28] sm:$0x3f] %vm258, %v3526
  %3623 = vst.msk [vmem:[%s3 + $0x30] sm:$0xff] %vm254, %v3527
  %3624 = vst.msk [vmem:[%s3 + $0x38] sm:$0x3f] %vm258, %v3528
  %3625 = vst.msk [vmem:[%s3 + $0x40] sm:$0xff] %vm254, %v3529
  %3626 = vst.msk [vmem:[%s3 + $0x48] sm:$0x3f] %vm258, %v3530
  %3627 = vst.msk [vmem:[%s3 + $0x50] sm:$0xff] %vm254, %v3531
  %3628 = vst.msk [vmem:[%s3 + $0x58] sm:$0x3f] %vm258, %v3532
  %3629 = vst.msk [vmem:[%s3 + $0x60] sm:$0xff] %vm254, %v3533
  %3630 = vst.msk [vmem:[%s3 + $0x68] sm:$0x3f] %vm258, %v3534
  %3631 = vst.msk [vmem:[%s3 + $0x70] sm:$0xff] %vm254, %v3535
  %3632 = vst.msk [vmem:[%s3 + $0x78] sm:$0x3f] %vm258, %v3536
  %3633 = vst.msk [vmem:[%s3 + $0x80] sm:$0xff] %vm254, %v3537
  %3634 = vst.msk [vmem:[%s3 + $0x88] sm:$0x3f] %vm258, %v3538
  %3635 = vst.msk [vmem:[%s3 + $0x90] sm:$0xff] %vm254, %v3539
  %3636 = vst.msk [vmem:[%s3 + $0x98] sm:$0x3f] %vm258, %v3540
  %3637 = vst.msk [vmem:[%s3 + $0xa0] sm:$0xff] %vm254, %v3541
  %3638 = vst.msk [vmem:[%s3 + $0xa8] sm:$0x3f] %vm258, %v3542
  %3639 = vst.msk [vmem:[%s3 + $0xb0] sm:$0xff] %vm254, %v3543
  %3640 = vst.msk [vmem:[%s3 + $0xb8] sm:$0x3f] %vm258, %v3544
  %3641 = vst.msk [vmem:[%s3 + $0xc0] sm:$0xff] %vm254, %v3545
  %3642 = vst.msk [vmem:[%s3 + $0xc8] sm:$0x3f] %vm258, %v3546
  %3643 = vst.msk [vmem:[%s3 + $0xd0] sm:$0xff] %vm254, %v3547
  %3644 = vst.msk [vmem:[%s3 + $0xd8] sm:$0x3f] %vm258, %v3548
  %3645 = vst.msk [vmem:[%s3 + $0xe0] sm:$0xff] %vm254, %v3549
  %3646 = vst.msk [vmem:[%s3 + $0xe8] sm:$0x3f] %vm258, %v3550
  %3647 = vst.msk [vmem:[%s3 + $0xf0] sm:$0xff] %vm254, %v3551
  %3648 = vst.msk [vmem:[%s3 + $0xf8] sm:$0x3f] %vm258, %v3552
  %3649 = vst.msk [vmem:[%s3 + $0x100] sm:$0xff] %vm254, %v3553
  %3650 = vst.msk [vmem:[%s3 + $0x108] sm:$0x3f] %vm258, %v3554
  %3651 = vst.msk [vmem:[%s3 + $0x110] sm:$0xff] %vm254, %v3555
  %3652 = vst.msk [vmem:[%s3 + $0x118] sm:$0x3f] %vm258, %v3556
  %3653 = vst.msk [vmem:[%s3 + $0x120] sm:$0xff] %vm254, %v3557
  %3654 = vst.msk [vmem:[%s3 + $0x128] sm:$0x3f] %vm258, %v3558
  %3655 = vst.msk [vmem:[%s3 + $0x130] sm:$0xff] %vm254, %v3559
  %3656 = vst.msk [vmem:[%s3 + $0x138] sm:$0x3f] %vm258, %v3560
  %3657 = vst.msk [vmem:[%s3 + $0x140] sm:$0xff] %vm254, %v3561
  %3658 = vst.msk [vmem:[%s3 + $0x148] sm:$0x3f] %vm258, %v3562
  %3659 = vst.msk [vmem:[%s3 + $0x150] sm:$0xff] %vm254, %v3563
  %3660 = vst.msk [vmem:[%s3 + $0x158] sm:$0x3f] %vm258, %v3564
  %3661 = vst.msk [vmem:[%s3 + $0x160] sm:$0xff] %vm254, %v3565
  %3662 = vst.msk [vmem:[%s3 + $0x168] sm:$0x3f] %vm258, %v3566
  %3663 = vst.msk [vmem:[%s3 + $0x170] sm:$0xff] %vm254, %v3567
  %3664 = vst.msk [vmem:[%s3 + $0x178] sm:$0x3f] %vm258, %v3568
  %3665 = vst.msk [vmem:[%s3 + $0x180] sm:$0xff] %vm254, %v3569
  %3666 = vst.msk [vmem:[%s3 + $0x188] sm:$0x3f] %vm258, %v3570
  %3667 = vst.msk [vmem:[%s3 + $0x190] sm:$0xff] %vm254, %v3571
  %3668 = vst.msk [vmem:[%s3 + $0x198] sm:$0x3f] %vm258, %v3572
  %3669 = vst.msk [vmem:[%s3 + $0x1a0] sm:$0xff] %vm254, %v3573
  %3670 = vst.msk [vmem:[%s3 + $0x1a8] sm:$0x3f] %vm258, %v3574
  %3671 = vst.msk [vmem:[%s3 + $0x1b0] sm:$0xff] %vm254, %v3575
  %3672 = vst.msk [vmem:[%s3 + $0x1b8] sm:$0x3f] %vm258, %v3576
  %3673 = vst.msk [vmem:[%s3 + $0x1c0] sm:$0xff] %vm254, %v3577
  %3674 = vst.msk [vmem:[%s3 + $0x1c8] sm:$0x3f] %vm258, %v3578
  %3675 = vst.msk [vmem:[%s3 + $0x1d0] sm:$0xff] %vm254, %v3579
  %3676 = vst.msk [vmem:[%s3 + $0x1d8] sm:$0x3f] %vm258, %v3580
  %3677 = vst.msk [vmem:[%s3 + $0x1e0] sm:$0xff] %vm254, %v3581
  %3678 = vst.msk [vmem:[%s3 + $0x1e8] sm:$0x3f] %vm258, %v3582
  %3679 = vst.msk [vmem:[%s3 + $0x1f0] sm:$0xff] %vm254, %v3583
  %3680 = vst.msk [vmem:[%s3 + $0x1f8] sm:$0x3f] %vm258, %v3584
  %3681 = vst.msk [vmem:[%s3 + $0x200] sm:$0xff] %vm254, %v3585
  %3682 = vst.msk [vmem:[%s3 + $0x208] sm:$0x3f] %vm258, %v3586
  %3683 = vst.msk [vmem:[%s3 + $0x210] sm:$0xff] %vm254, %v3587
  %3684 = vst.msk [vmem:[%s3 + $0x218] sm:$0x3f] %vm258, %v3588
  %3685 = vst.msk [vmem:[%s3 + $0x220] sm:$0xff] %vm254, %v3589
  %3686 = vst.msk [vmem:[%s3 + $0x228] sm:$0x3f] %vm258, %v3590
  %3687 = vst.msk [vmem:[%s3 + $0x230] sm:$0xff] %vm254, %v3591
  %3688 = vst.msk [vmem:[%s3 + $0x238] sm:$0x3f] %vm258, %v3592
  %3689 = vst.msk [vmem:[%s3 + $0x240] sm:$0xff] %vm254, %v3593
  %3690 = vst.msk [vmem:[%s3 + $0x248] sm:$0x3f] %vm258, %v3594
  %3691 = vst.msk [vmem:[%s3 + $0x250] sm:$0xff] %vm254, %v3595
  %3692 = vst.msk [vmem:[%s3 + $0x258] sm:$0x3f] %vm258, %v3596
  %3693 = vst.msk [vmem:[%s3 + $0x260] sm:$0xff] %vm254, %v3597
  %3694 = vst.msk [vmem:[%s3 + $0x268] sm:$0x3f] %vm258, %v3598
  %3695 = vst.msk [vmem:[%s3 + $0x270] sm:$0xff] %vm254, %v3599
  %3696 = vst.msk [vmem:[%s3 + $0x278] sm:$0x3f] %vm258, %v3600
  %3697 = vst.msk [vmem:[%s3 + $0x280] sm:$0xff] %vm254, %v3601
  %3698 = vst.msk [vmem:[%s3 + $0x288] sm:$0x3f] %vm258, %v3602
  %3699 = vst.msk [vmem:[%s3 + $0x290] sm:$0xff] %vm254, %v3603
  %3700 = vst.msk [vmem:[%s3 + $0x298] sm:$0x3f] %vm258, %v3604
  %3701 = vst.msk [vmem:[%s3 + $0x2a0] sm:$0xff] %vm254, %v3605
  %3702 = vst.msk [vmem:[%s3 + $0x2a8] sm:$0x3f] %vm258, %v3606
  %3703 = vst.msk [vmem:[%s3 + $0x2b0] sm:$0xff] %vm254, %v3607
  %3704 = vst.msk [vmem:[%s3 + $0x2b8] sm:$0x3f] %vm258, %v3608
  %3705 = vst.msk [vmem:[%s3 + $0x2c0] sm:$0xff] %vm254, %v3609
  %3706 = vst.msk [vmem:[%s3 + $0x2c8] sm:$0x3f] %vm258, %v3610
  %3707 = vst.msk [vmem:[%s3 + $0x2d0] sm:$0xff] %vm254, %v3611
  %3708 = vst.msk [vmem:[%s3 + $0x2d8] sm:$0x3f] %vm258, %v3612
  %3709 = vst.msk [vmem:[%s3 + $0x2e0] sm:$0xff] %vm254, %v3613
  %3710 = vst.msk [vmem:[%s3 + $0x2e8] sm:$0x3f] %vm258, %v3614
  %3711 = vst.msk [vmem:[%s3 + $0x2f0] sm:$0xff] %vm254, %v3615
  %3712 = vst.msk [vmem:[%s3 + $0x2f8] sm:$0x3f] %vm258, %v3616
  // Predicated region
  $region14: #{batchnorm_add.1} parent=0 // pred_check
    _
  $region15: #{batchnorm_add.1} parent=0 // pred_check_branch
    %3714 = sbr.rel (0) target = $region17
  $region16: #{batchnorm_add.1} parent=0 // pred_region
    _
  $region17: #{batchnorm_add.1} parent=0 // pred_fallthru
    _
  // Predicated region
  $region18: #{batchnorm_add.1} parent=0 // pred_check
    _
  $region19: #{batchnorm_add.1} parent=0 // pred_check_branch
    %3716 = sbr.rel (0) target = $region21
  $region20: #{batchnorm_add.1} parent=0 // pred_region
    _
  $region21: #{batchnorm_add.1} parent=0 // pred_fallthru
    _

</llo_original>
